<compile_context>
chip_gen: v7x
topology: tpu7x:2x2x1
jax: 0.10.0
libtpu: 0.0.40
codegen_flags: <defaults>
</compile_context>

<pallas_src>
import functools
import math

import jax
import jax.numpy as jnp
from jax.experimental import pallas as pl
from jax.experimental.pallas import tpu as pltpu


# ----------------------------------------------------------------------------
# Fused BiLSTM + multi-head self-attention kernel (one grid step = BB sequences)
# ----------------------------------------------------------------------------
def fused_kernel(xp_ref, wih_ref, whh_ref, b_ref,
                 wqkv_ref, bqkv_ref, wo_ref, bo_ref,
                 vmask_ref, seg_ref,
                 lstm_out_ref, ctx_ref, *, num_heads):
    # xp_ref:   (T*BB, 2I) bf16   row (t*BB + b) = [x_b(t) | x_b(T-1-t)]
    # wih_ref:  (2I, 8H)   bf16   gate layout [i_f i_b | f_f f_b | g_f g_b | o_f o_b]
    # whh_ref:  (2H, 8H)   bf16   same column layout (block structure)
    # b_ref:    (1, 8H)    f32
    # wqkv_ref: (E, 3E)    bf16   (Q columns pre-scaled by 1/sqrt(d) on host)
    # bqkv_ref: (1, 3E)    f32 ; wo_ref: (E, E) bf16 ; bo_ref: (1, E) f32
    # vmask_ref:(P, E)     bf16   block-diagonal head-packing mask
    # seg_ref:  (P, nh)    f32    head-segment summation matrix
    # lstm_out_ref: (BB, T, 2H) f32 ; ctx_ref: (BB, T, E) f32
    BB, T, E = lstm_out_ref.shape
    H = E // 2
    nh = num_heads
    P = nh * T
    cdt = jnp.bfloat16            # MXU operand dtype; accumulation stays f32

    # ---- input-gate precompute: ONE (T*BB, 2I) @ (2I, 8H) matmul, kept in regs ----
    xg = jnp.dot(xp_ref[...], wih_ref[...],
                 preferred_element_type=jnp.float32) + b_ref[...]        # (T*BB, 8H) f32

    whh = whh_ref[...]                                                   # (2H, 8H) bf16

    # ---- fused bidirectional recurrence: one (BB,128)@(128,512) matmul per step ----
    # Fully static unroll: xg slices and output-row offsets are compile-time
    # constants (no scratch round-trip, no dynamic sublane shifts). Register
    # footprint is tiny at small BB; for very large BB the compiler spills xg
    # to VMEM which is equivalent to an explicit scratch.
    h_cat = jnp.zeros((BB, 2 * H), jnp.float32)                          # [h_f | h_b]
    c_cat = jnp.zeros((BB, 2 * H), jnp.float32)
    for s in range(T):
        g = xg[s * BB:(s + 1) * BB, :] + jnp.dot(
            h_cat.astype(cdt), whh, preferred_element_type=jnp.float32)  # (BB, 8H)
        i_c = jax.nn.sigmoid(g[:, 0:2 * H])                              # [i_f | i_b]
        f_c = jax.nn.sigmoid(g[:, 2 * H:4 * H])                          # [f_f | f_b]
        g_c = jnp.tanh(g[:, 4 * H:6 * H])                                # [g_f | g_b]
        o_c = jax.nn.sigmoid(g[:, 6 * H:8 * H])                          # [o_f | o_b]
        c_cat = f_c * c_cat + i_c * g_c
        h_cat = o_c * jnp.tanh(c_cat)
        # forward half -> output row s ; backward half -> output row T-1-s
        # (two 64-lane stores per step; deletes the old hseq scratch + reversal)
        lstm_out_ref[:, pl.ds(s, 1), 0:H] = h_cat[:, None, 0:H]
        lstm_out_ref[:, pl.ds(T - 1 - s, 1), H:2 * H] = h_cat[:, None, H:2 * H]

    # ---- multi-head self-attention: all heads packed into block-diag matmuls ----
    bl = lstm_out_ref[...]                                               # (BB, T, E) f32
    x2d = bl.reshape(BB * T, E).astype(cdt)
    qkv = jnp.dot(x2d, wqkv_ref[...],
                  preferred_element_type=jnp.float32) + bqkv_ref[...]    # (BB*T, 3E) f32
    qkv = qkv.reshape(BB, T, 3 * E)
    q = qkv[:, :, 0:E].astype(cdt)            # already scaled by 1/sqrt(d) via weights
    k = qkv[:, :, E:2 * E].astype(cdt)
    v = qkv[:, :, 2 * E:3 * E].astype(cdt)

    vmask = vmask_ref[...]                                               # (P, E) bf16
    # Packed K and V share the same (P, E) orientation -> no transpose, one mask.
    kblk = jnp.concatenate([k] * nh, axis=1) * vmask[None]               # (BB, P, E)
    vblk = jnp.concatenate([v] * nh, axis=1) * vmask[None]               # (BB, P, E)

    # scores for ALL heads in one batched matmul; RHS contracted on its last
    # dim (MXU-native transposed consumption, no XLU transpose).
    s_all = jax.lax.dot_general(
        q, kblk, dimension_numbers=(((2,), (2,)), ((0,), (0,))),
        preferred_element_type=jnp.float32)                              # (BB, T, P)

    # per-head softmax; the shared row-global max shift is mathematically exact
    s_all = s_all - jnp.max(s_all, axis=-1, keepdims=True)
    p2 = jnp.exp(s_all).reshape(BB * T, P)                               # f32
    seg = seg_ref[...]                                                   # (P, nh) f32
    denom = jnp.dot(p2, seg, preferred_element_type=jnp.float32)         # (BB*T, nh)
    denom_full = jax.lax.dot_general(
        denom, seg, dimension_numbers=(((1,), (1,)), ((), ())),
        preferred_element_type=jnp.float32)                              # (BB*T, P)
    pn = (p2 / denom_full).reshape(BB, T, P).astype(cdt)                 # exact divide

    # context for ALL heads in one batched matmul: (T, P) @ (P, E)
    ctx = jax.lax.dot_general(
        pn, vblk, dimension_numbers=(((2,), (1,)), ((0,), (0,))),
        preferred_element_type=jnp.float32)                              # (BB, T, E)

    out = jnp.dot(ctx.reshape(BB * T, E).astype(cdt), wo_ref[...],
                  preferred_element_type=jnp.float32) + bo_ref[...]      # (BB*T, E)
    ctx_ref[...] = out.reshape(BB, T, E)


# ----------------------------------------------------------------------------
# Host-side parameter packing (from PyTorch-layout weights)
# ----------------------------------------------------------------------------
def pack_params(wih_f, whh_f, b_f, wih_b, whh_b, b_b,
                wq, wk, wv, bq, bk, bv, wo, bo, H, num_heads):
    """wih_*: (4H, I); whh_*: (4H, H); b_* = b_ih + b_hh: (4H,); gate order i,f,g,o."""
    E = 2 * H
    d = E // num_heads
    scale = 1.0 / math.sqrt(d)

    def pack_dir(w_t, is_bwd):
        # w_t: (X, 4H) with column blocks [i|f|g|o] -> (X, 8H) interleaved
        # column layout [i_f i_b | f_f f_b | g_f g_b | o_f o_b]
        X = w_t.shape[0]
        w4 = w_t.reshape(X, 4, H)
        z = jnp.zeros_like(w4)
        parts = (z, w4) if is_bwd else (w4, z)
        return jnp.stack(parts, axis=2).reshape(X, 8 * H)

    w_in_big = jnp.concatenate([pack_dir(wih_f.T, False), pack_dir(wih_b.T, True)], axis=0)
    whh_big = jnp.concatenate([pack_dir(whh_f.T, False), pack_dir(whh_b.T, True)], axis=0)
    b_big = jnp.stack([b_f.reshape(4, H), b_b.reshape(4, H)], axis=1).reshape(1, 8 * H)

    # fold the 1/sqrt(d) attention scale into the Q projection (saves an in-kernel mul)
    wqkv = jnp.concatenate([wq.T * scale, wk.T, wv.T], axis=1)            # (E, 3E)
    bqkv = jnp.concatenate([bq * scale, bk, bv]).reshape(1, 3 * E)

    return dict(
        # matmul operands in bf16 (f32 accumulation in-kernel); biases stay f32
        w_in_big=w_in_big.astype(jnp.bfloat16),
        whh_big=whh_big.astype(jnp.bfloat16),
        b_big=b_big.astype(jnp.float32),
        wqkv=wqkv.astype(jnp.bfloat16),
        bqkv=bqkv.astype(jnp.float32),
        wo_t=wo.T.astype(jnp.bfloat16),
        bo=bo.reshape(1, E).astype(jnp.float32),
        num_heads=num_heads)


def _head_masks(T, E, num_heads):
    """Block-diagonal head-packing masks, built once on the host."""
    nh = num_heads
    d = E // nh
    P = nh * T
    r = jnp.arange(P)[:, None]
    vmask = (r // T == jnp.arange(E)[None, :] // d).astype(jnp.bfloat16)   # (P, E)
    seg = (r // T == jnp.arange(nh)[None, :]).astype(jnp.float32)          # (P, nh)
    return vmask, seg


# ----------------------------------------------------------------------------
# Model forward (single fused pallas_call)
# ----------------------------------------------------------------------------
def model_forward(x, params):
    B, T, I = x.shape
    H = params["whh_big"].shape[0] // 2
    E = 2 * H
    nh = params["num_heads"]
    P = nh * T

    # Single grid block on single-TC chips / small batches (no sequential grid
    # overhead, constants built once). Keep a 2-way "parallel" split only when
    # each block still has >= 8 MXU sublanes (feeds both v7x TensorCores; the
    # extra ~0.35us grid step is negligible at that batch size on v5e/v6e).
    nblk = 2 if (B >= 16 and B % 16 == 0) else 1
    BB = B // nblk

    # Time-major, feature-packed input: row (t*BB + b) of block blk is
    # [x(blk*BB+b, t) | x(blk*BB+b, T-1-t)] -> no in-kernel flips/reshapes.
    x_pair = jnp.concatenate([x, jnp.flip(x, axis=1)], axis=-1)           # (B, T, 2I)
    xp = (x_pair.reshape(nblk, BB, T, 2 * I)
                .transpose(0, 2, 1, 3)
                .reshape(nblk, T * BB, 2 * I)
                .astype(jnp.bfloat16))

    vmask, seg = _head_masks(T, E, nh)

    kernel = functools.partial(fused_kernel, num_heads=nh)
    bilstm_out, context = pl.pallas_call(
        kernel,
        out_shape=(jax.ShapeDtypeStruct((B, T, 2 * H), jnp.float32),
                   jax.ShapeDtypeStruct((B, T, E), jnp.float32)),
        grid_spec=pltpu.PrefetchScalarGridSpec(
            num_scalar_prefetch=0,
            grid=(nblk,),
            in_specs=[
                pl.BlockSpec((None, T * BB, 2 * I), lambda b: (b, 0, 0)),
                pl.BlockSpec((2 * I, 8 * H), lambda b: (0, 0)),
                pl.BlockSpec((2 * H, 8 * H), lambda b: (0, 0)),
                pl.BlockSpec((1, 8 * H), lambda b: (0, 0)),
                pl.BlockSpec((E, 3 * E), lambda b: (0, 0)),
                pl.BlockSpec((1, 3 * E), lambda b: (0, 0)),
                pl.BlockSpec((E, E), lambda b: (0, 0)),
                pl.BlockSpec((1, E), lambda b: (0, 0)),
                pl.BlockSpec((P, E), lambda b: (0, 0)),
                pl.BlockSpec((P, nh), lambda b: (0, 0)),
            ],
            out_specs=[
                pl.BlockSpec((BB, T, 2 * H), lambda b: (b, 0, 0)),
                pl.BlockSpec((BB, T, E), lambda b: (b, 0, 0)),
            ],
        ),
        compiler_params=pltpu.CompilerParams(dimension_semantics=("parallel",)),
    )(xp, params["w_in_big"], params["whh_big"], params["b_big"],
      params["wqkv"], params["bqkv"], params["wo_t"], params["bo"],
      vmask, seg)

    # dropout1 (p=0.9) and attention dropout (p=0.5) are identity at inference.
    # TODO(synk): training-mode dropout is not implemented (eval semantics only).
    return (bilstm_out, context), context


# ----------------------------------------------------------------------------
# Pure-JAX reference (sanity check)
# ----------------------------------------------------------------------------
def _lstm_ref_dir(x, wih_t, whh_t, b, reverse):
    B, T, I = x.shape
    H = whh_t.shape[0]
    hp = jax.lax.Precision.HIGHEST
    xs = jnp.swapaxes(x, 0, 1)
    if reverse:
        xs = xs[::-1]

    def cell(carry, xt):
        h, c = carry
        g = (jnp.dot(xt, wih_t, precision=hp)
             + jnp.dot(h, whh_t, precision=hp) + b)
        i = jax.nn.sigmoid(g[:, 0:H])
        f = jax.nn.sigmoid(g[:, H:2 * H])
        gg = jnp.tanh(g[:, 2 * H:3 * H])
        o = jax.nn.sigmoid(g[:, 3 * H:4 * H])
        c = f * c + i * gg
        h = o * jnp.tanh(c)
        return (h, c), h

    init = (jnp.zeros((B, H), jnp.float32), jnp.zeros((B, H), jnp.float32))
    _, hs = jax.lax.scan(cell, init, xs)
    if reverse:
        hs = hs[::-1]
    return jnp.swapaxes(hs, 0, 1)


def _mha_ref(x, wq_t, wk_t, wv_t, bq, bk, bv, wo_t, bo, num_heads):
    B, T, E = x.shape
    d = E // num_heads
    hp = jax.lax.Precision.HIGHEST
    q = jnp.dot(x, wq_t, precision=hp) + bq
    k = jnp.dot(x, wk_t, precision=hp) + bk
    v = jnp.dot(x, wv_t, precision=hp) + bv
    qh = q.reshape(B, T, num_heads, d).transpose(0, 2, 1, 3)
    kh = k.reshape(B, T, num_heads, d).transpose(0, 2, 1, 3)
    vh = v.reshape(B, T, num_heads, d).transpose(0, 2, 1, 3)
    s = jnp.einsum("bhtd,bhsd->bhts", qh, kh, precision=hp) / math.sqrt(d)
    p = jax.nn.softmax(s, axis=-1)
    ctx = jnp.einsum("bhts,bhsd->bhtd", p, vh, precision=hp)
    ctx = ctx.transpose(0, 2, 1, 3).reshape(B, T, E)
    return jnp.dot(ctx, wo_t, precision=hp) + bo


if __name__ == "__main__":
    B, T = 2, 8
    I = len("ACDEFGHIKLMNPQRSTVWYX")   # input_size = 21
    H = 64                             # hidden_size
    E = 2 * H                          # attention embed_dim = 128
    NUM_HEADS = 8

    key = jax.random.PRNGKey(0)
    ks = jax.random.split(key, 16)
    u = lambda k, shape, bnd: jax.random.uniform(k, shape, jnp.float32, -bnd, bnd)

    # --- BiLSTM parameters (PyTorch shapes: W_ih (4H, I), W_hh (4H, H)) ---
    kb = 1.0 / math.sqrt(H)
    wih_f = u(ks[0], (4 * H, I), kb)
    whh_f = u(ks[1], (4 * H, H), kb)
    b_f = u(ks[2], (4 * H,), kb) + u(ks[3], (4 * H,), kb)
    wih_b = u(ks[4], (4 * H, I), kb)
    whh_b = u(ks[5], (4 * H, H), kb)
    b_b = u(ks[6], (4 * H,), kb) + u(ks[7], (4 * H,), kb)

    # --- MultiheadAttention parameters (in_proj (3E, E), out_proj (E, E)) ---
    kx = math.sqrt(6.0 / (E + E))
    in_proj_w = u(ks[8], (3 * E, E), kx)
    in_proj_b = u(ks[9], (3 * E,), 0.02)
    wo = u(ks[10], (E, E), 1.0 / math.sqrt(E))
    bo = u(ks[11], (E,), 0.02)
    wq, wk, wv = in_proj_w[:E], in_proj_w[E:2 * E], in_proj_w[2 * E:]
    bq, bk, bv = in_proj_b[:E], in_proj_b[E:2 * E], in_proj_b[2 * E:]

    params = pack_params(wih_f, whh_f, b_f, wih_b, whh_b, b_b,
                         wq, wk, wv, bq, bk, bv, wo, bo, H, NUM_HEADS)

    # --- input ---
    x = jax.random.normal(ks[12], (B, T, I), jnp.float32)

    # --- run fused Pallas model ---
    (bilstm_outputs, mutilhead_output), context = model_forward(x, params)
    jax.block_until_ready((bilstm_outputs, mutilhead_output, context))

    # --- sanity check against a pure-JAX f32 reference ---
    ref_fwd = _lstm_ref_dir(x, wih_f.T, whh_f.T, b_f, reverse=False)
    ref_bwd = _lstm_ref_dir(x, wih_b.T, whh_b.T, b_b, reverse=True)
    ref_bilstm = jnp.concatenate([ref_fwd, ref_bwd], axis=-1)
    ref_ctx = _mha_ref(ref_bilstm, wq.T, wk.T, wv.T, bq, bk, bv, wo.T, bo, NUM_HEADS)

    # Tolerance sized for bf16 matmul operands (f32 accumulation) through the
    # 8-step recurrence + attention; typically ~1e-2 max abs error.
    err1 = float(jnp.max(jnp.abs(bilstm_outputs - ref_bilstm)))
    err2 = float(jnp.max(jnp.abs(context - ref_ctx)))
    assert err1 < 5e-2 and err2 < 5e-2, (err1, err2)
    assert mutilhead_output.shape == (B, T, E) and context.shape == (B, T, E)

    print("KERNEL_OK")
</pallas_src>

<mosaic_0001>
module attributes {stable_mosaic.version = 11 : i64} {
  func.func @fused_kernel(%arg0: i32, %arg1: memref<1x16x42xbf16, #tpu.memory_space<vmem>>, %arg2: memref<42x512xbf16, #tpu.memory_space<vmem>>, %arg3: memref<128x512xbf16, #tpu.memory_space<vmem>>, %arg4: memref<1x512xf32, #tpu.memory_space<vmem>>, %arg5: memref<128x384xbf16, #tpu.memory_space<vmem>>, %arg6: memref<1x384xf32, #tpu.memory_space<vmem>>, %arg7: memref<128x128xbf16, #tpu.memory_space<vmem>>, %arg8: memref<1x128xf32, #tpu.memory_space<vmem>>, %arg9: memref<64x128xbf16, #tpu.memory_space<vmem>>, %arg10: memref<64x8xf32, #tpu.memory_space<vmem>>, %arg11: memref<2x8x128xf32, #tpu.memory_space<vmem>>, %arg12: memref<2x8x128xf32, #tpu.memory_space<vmem>>) attributes {dimension_semantics = [#tpu.dimension_semantics<parallel>], iteration_bounds = array<i64: 1>, scalar_prefetch = 0 : i64, scratch_operands = 0 : i64, tpu.core_type = #tpu.core_type<tc>, window_params = [{transform_indices = @transform_0, window_bounds = array<i64: 1, 16, 42>}, {pipeline_mode = #tpu.pipeline_mode<synchronous>, transform_indices = @transform_1, window_bounds = array<i64: 42, 512>}, {pipeline_mode = #tpu.pipeline_mode<synchronous>, transform_indices = @transform_2, window_bounds = array<i64: 128, 512>}, {pipeline_mode = #tpu.pipeline_mode<synchronous>, transform_indices = @transform_3, window_bounds = array<i64: 1, 512>}, {pipeline_mode = #tpu.pipeline_mode<synchronous>, transform_indices = @transform_4, window_bounds = array<i64: 128, 384>}, {pipeline_mode = #tpu.pipeline_mode<synchronous>, transform_indices = @transform_5, window_bounds = array<i64: 1, 384>}, {pipeline_mode = #tpu.pipeline_mode<synchronous>, transform_indices = @transform_6, window_bounds = array<i64: 128, 128>}, {pipeline_mode = #tpu.pipeline_mode<synchronous>, transform_indices = @transform_7, window_bounds = array<i64: 1, 128>}, {pipeline_mode = #tpu.pipeline_mode<synchronous>, transform_indices = @transform_8, window_bounds = array<i64: 64, 128>}, {pipeline_mode = #tpu.pipeline_mode<synchronous>, transform_indices = @transform_9, window_bounds = array<i64: 64, 8>}, {transform_indices = @transform_10, window_bounds = array<i64: 2, 8, 128>}, {transform_indices = @transform_11, window_bounds = array<i64: 2, 8, 128>}]} {
    %c0 = arith.constant 0 : index
    %c0_0 = arith.constant 0 : index
    %c0_1 = arith.constant 0 : index
    %0 = vector.load %arg1[%c0, %c0_0, %c0_1] : memref<1x16x42xbf16, #tpu.memory_space<vmem>>, vector<1x16x42xbf16>
    %1 = vector.shape_cast %0 : vector<1x16x42xbf16> to vector<16x42xbf16>
    %c0_2 = arith.constant 0 : index
    %c0_3 = arith.constant 0 : index
    %2 = vector.load %arg2[%c0_2, %c0_3] : memref<42x512xbf16, #tpu.memory_space<vmem>>, vector<42x512xbf16>
    %cst = arith.constant dense<0.000000e+00> : vector<16x512xf32>
    %3 = tpu.matmul %1, %2, %cst {dimension_numbers = #tpu.dot_dimension_numbers<[1], [0], [0], [1], [0, 0, 1, 1], [], []>} : vector<16x42xbf16>, vector<42x512xbf16>, vector<16x512xf32> -> vector<16x512xf32>
    %c0_4 = arith.constant 0 : index
    %c0_5 = arith.constant 0 : index
    %4 = vector.load %arg4[%c0_4, %c0_5] : memref<1x512xf32, #tpu.memory_space<vmem>>, vector<1x512xf32>
    %5 = vector.broadcast %4 : vector<1x512xf32> to vector<16x512xf32>
    %6 = arith.addf %3, %5 : vector<16x512xf32>
    %c0_6 = arith.constant 0 : index
    %c0_7 = arith.constant 0 : index
    %7 = vector.load %arg3[%c0_6, %c0_7] : memref<128x512xbf16, #tpu.memory_space<vmem>>, vector<128x512xbf16>
    %cst_8 = arith.constant 0.000000e+00 : f32
    %8 = vector.broadcast %cst_8 : f32 to vector<2x128xf32>
    %cst_9 = arith.constant 0.000000e+00 : f32
    %9 = vector.broadcast %cst_9 : f32 to vector<2x128xf32>
    %10 = vector.extract_strided_slice %6 {offsets = [0, 0], sizes = [2, 512], strides = [1, 1]} : vector<16x512xf32> to vector<2x512xf32>
    %11 = arith.truncf %8 : vector<2x128xf32> to vector<2x128xbf16>
    %cst_10 = arith.constant dense<0.000000e+00> : vector<2x512xf32>
    %12 = tpu.matmul %11, %7, %cst_10 {dimension_numbers = #tpu.dot_dimension_numbers<[1], [0], [0], [1], [0, 0, 1, 1], [], []>} : vector<2x128xbf16>, vector<128x512xbf16>, vector<2x512xf32> -> vector<2x512xf32>
    %13 = arith.addf %10, %12 : vector<2x512xf32>
    %14 = vector.extract_strided_slice %13 {offsets = [0, 0], sizes = [2, 128], strides = [1, 1]} : vector<2x512xf32> to vector<2x128xf32>
    %15 = arith.negf %14 : vector<2x128xf32>
    %16 = math.exp %15 : vector<2x128xf32>
    %cst_11 = arith.constant 1.000000e+00 : f32
    %17 = vector.broadcast %cst_11 : f32 to vector<2x128xf32>
    %18 = arith.addf %17, %16 : vector<2x128xf32>
    %19 = arith.divf %17, %18 : vector<2x128xf32>
    %20 = vector.extract_strided_slice %13 {offsets = [0, 128], sizes = [2, 128], strides = [1, 1]} : vector<2x512xf32> to vector<2x128xf32>
    %21 = arith.negf %20 : vector<2x128xf32>
    %22 = math.exp %21 : vector<2x128xf32>
    %cst_12 = arith.constant 1.000000e+00 : f32
    %23 = vector.broadcast %cst_12 : f32 to vector<2x128xf32>
    %24 = arith.addf %23, %22 : vector<2x128xf32>
    %25 = arith.divf %23, %24 : vector<2x128xf32>
    %26 = vector.extract_strided_slice %13 {offsets = [0, 256], sizes = [2, 128], strides = [1, 1]} : vector<2x512xf32> to vector<2x128xf32>
    %27 = math.tanh %26 : vector<2x128xf32>
    %28 = vector.extract_strided_slice %13 {offsets = [0, 384], sizes = [2, 128], strides = [1, 1]} : vector<2x512xf32> to vector<2x128xf32>
    %29 = arith.negf %28 : vector<2x128xf32>
    %30 = math.exp %29 : vector<2x128xf32>
    %cst_13 = arith.constant 1.000000e+00 : f32
    %31 = vector.broadcast %cst_13 : f32 to vector<2x128xf32>
    %32 = arith.addf %31, %30 : vector<2x128xf32>
    %33 = arith.divf %31, %32 : vector<2x128xf32>
    %34 = arith.mulf %25, %9 : vector<2x128xf32>
    %35 = arith.mulf %19, %27 : vector<2x128xf32>
    %36 = arith.addf %34, %35 : vector<2x128xf32>
    %37 = math.tanh %36 : vector<2x128xf32>
    %38 = arith.mulf %33, %37 : vector<2x128xf32>
    %39 = vector.extract_strided_slice %38 {offsets = [0, 0], sizes = [2, 64], strides = [1, 1]} : vector<2x128xf32> to vector<2x64xf32>
    %40 = vector.shape_cast %39 : vector<2x64xf32> to vector<2x1x64xf32>
    %c0_14 = arith.constant 0 : index
    %c0_15 = arith.constant 0 : index
    %c0_16 = arith.constant 0 : index
    %41 = vector.load %arg11[%c0_14, %c0_15, %c0_16] : memref<2x8x128xf32, #tpu.memory_space<vmem>>, vector<2x1x64xf32>
    tpu.vector_store %arg11[%c0_14, %c0_15, %c0_16], %40 {strides = array<i32>} : memref<2x8x128xf32, #tpu.memory_space<vmem>>, vector<2x1x64xf32>,
    %42 = vector.extract_strided_slice %38 {offsets = [0, 64], sizes = [2, 64], strides = [1, 1]} : vector<2x128xf32> to vector<2x64xf32>
    %43 = vector.shape_cast %42 : vector<2x64xf32> to vector<2x1x64xf32>
    %c0_17 = arith.constant 0 : index
    %c7 = arith.constant 7 : index
    %c64 = arith.constant 64 : index
    %44 = vector.load %arg11[%c0_17, %c7, %c64] : memref<2x8x128xf32, #tpu.memory_space<vmem>>, vector<2x1x64xf32>
    tpu.vector_store %arg11[%c0_17, %c7, %c64], %43 {strides = array<i32>} : memref<2x8x128xf32, #tpu.memory_space<vmem>>, vector<2x1x64xf32>,
    %45 = vector.extract_strided_slice %6 {offsets = [2, 0], sizes = [2, 512], strides = [1, 1]} : vector<16x512xf32> to vector<2x512xf32>
    %46 = arith.truncf %38 : vector<2x128xf32> to vector<2x128xbf16>
    %cst_18 = arith.constant dense<0.000000e+00> : vector<2x512xf32>
    %47 = tpu.matmul %46, %7, %cst_18 {dimension_numbers = #tpu.dot_dimension_numbers<[1], [0], [0], [1], [0, 0, 1, 1], [], []>} : vector<2x128xbf16>, vector<128x512xbf16>, vector<2x512xf32> -> vector<2x512xf32>
    %48 = arith.addf %45, %47 : vector<2x512xf32>
    %49 = vector.extract_strided_slice %48 {offsets = [0, 0], sizes = [2, 128], strides = [1, 1]} : vector<2x512xf32> to vector<2x128xf32>
    %50 = arith.negf %49 : vector<2x128xf32>
    %51 = math.exp %50 : vector<2x128xf32>
    %cst_19 = arith.constant 1.000000e+00 : f32
    %52 = vector.broadcast %cst_19 : f32 to vector<2x128xf32>
    %53 = arith.addf %52, %51 : vector<2x128xf32>
    %54 = arith.divf %52, %53 : vector<2x128xf32>
    %55 = vector.extract_strided_slice %48 {offsets = [0, 128], sizes = [2, 128], strides = [1, 1]} : vector<2x512xf32> to vector<2x128xf32>
    %56 = arith.negf %55 : vector<2x128xf32>
    %57 = math.exp %56 : vector<2x128xf32>
    %cst_20 = arith.constant 1.000000e+00 : f32
    %58 = vector.broadcast %cst_20 : f32 to vector<2x128xf32>
    %59 = arith.addf %58, %57 : vector<2x128xf32>
    %60 = arith.divf %58, %59 : vector<2x128xf32>
    %61 = vector.extract_strided_slice %48 {offsets = [0, 256], sizes = [2, 128], strides = [1, 1]} : vector<2x512xf32> to vector<2x128xf32>
    %62 = math.tanh %61 : vector<2x128xf32>
    %63 = vector.extract_strided_slice %48 {offsets = [0, 384], sizes = [2, 128], strides = [1, 1]} : vector<2x512xf32> to vector<2x128xf32>
    %64 = arith.negf %63 : vector<2x128xf32>
    %65 = math.exp %64 : vector<2x128xf32>
    %cst_21 = arith.constant 1.000000e+00 : f32
    %66 = vector.broadcast %cst_21 : f32 to vector<2x128xf32>
    %67 = arith.addf %66, %65 : vector<2x128xf32>
    %68 = arith.divf %66, %67 : vector<2x128xf32>
    %69 = arith.mulf %60, %36 : vector<2x128xf32>
    %70 = arith.mulf %54, %62 : vector<2x128xf32>
    %71 = arith.addf %69, %70 : vector<2x128xf32>
    %72 = math.tanh %71 : vector<2x128xf32>
    %73 = arith.mulf %68, %72 : vector<2x128xf32>
    %74 = vector.extract_strided_slice %73 {offsets = [0, 0], sizes = [2, 64], strides = [1, 1]} : vector<2x128xf32> to vector<2x64xf32>
    %75 = vector.shape_cast %74 : vector<2x64xf32> to vector<2x1x64xf32>
    %c0_22 = arith.constant 0 : index
    %c1 = arith.constant 1 : index
    %c0_23 = arith.constant 0 : index
    %76 = vector.load %arg11[%c0_22, %c1, %c0_23] : memref<2x8x128xf32, #tpu.memory_space<vmem>>, vector<2x1x64xf32>
    tpu.vector_store %arg11[%c0_22, %c1, %c0_23], %75 {strides = array<i32>} : memref<2x8x128xf32, #tpu.memory_space<vmem>>, vector<2x1x64xf32>,
    %77 = vector.extract_strided_slice %73 {offsets = [0, 64], sizes = [2, 64], strides = [1, 1]} : vector<2x128xf32> to vector<2x64xf32>
    %78 = vector.shape_cast %77 : vector<2x64xf32> to vector<2x1x64xf32>
    %c0_24 = arith.constant 0 : index
    %c6 = arith.constant 6 : index
    %c64_25 = arith.constant 64 : index
    %79 = vector.load %arg11[%c0_24, %c6, %c64_25] : memref<2x8x128xf32, #tpu.memory_space<vmem>>, vector<2x1x64xf32>
    tpu.vector_store %arg11[%c0_24, %c6, %c64_25], %78 {strides = array<i32>} : memref<2x8x128xf32, #tpu.memory_space<vmem>>, vector<2x1x64xf32>,
    %80 = vector.extract_strided_slice %6 {offsets = [4, 0], sizes = [2, 512], strides = [1, 1]} : vector<16x512xf32> to vector<2x512xf32>
    %81 = arith.truncf %73 : vector<2x128xf32> to vector<2x128xbf16>
    %cst_26 = arith.constant dense<0.000000e+00> : vector<2x512xf32>
    %82 = tpu.matmul %81, %7, %cst_26 {dimension_numbers = #tpu.dot_dimension_numbers<[1], [0], [0], [1], [0, 0, 1, 1], [], []>} : vector<2x128xbf16>, vector<128x512xbf16>, vector<2x512xf32> -> vector<2x512xf32>
    %83 = arith.addf %80, %82 : vector<2x512xf32>
    %84 = vector.extract_strided_slice %83 {offsets = [0, 0], sizes = [2, 128], strides = [1, 1]} : vector<2x512xf32> to vector<2x128xf32>
    %85 = arith.negf %84 : vector<2x128xf32>
    %86 = math.exp %85 : vector<2x128xf32>
    %cst_27 = arith.constant 1.000000e+00 : f32
    %87 = vector.broadcast %cst_27 : f32 to vector<2x128xf32>
    %88 = arith.addf %87, %86 : vector<2x128xf32>
    %89 = arith.divf %87, %88 : vector<2x128xf32>
    %90 = vector.extract_strided_slice %83 {offsets = [0, 128], sizes = [2, 128], strides = [1, 1]} : vector<2x512xf32> to vector<2x128xf32>
    %91 = arith.negf %90 : vector<2x128xf32>
    %92 = math.exp %91 : vector<2x128xf32>
    %cst_28 = arith.constant 1.000000e+00 : f32
    %93 = vector.broadcast %cst_28 : f32 to vector<2x128xf32>
    %94 = arith.addf %93, %92 : vector<2x128xf32>
    %95 = arith.divf %93, %94 : vector<2x128xf32>
    %96 = vector.extract_strided_slice %83 {offsets = [0, 256], sizes = [2, 128], strides = [1, 1]} : vector<2x512xf32> to vector<2x128xf32>
    %97 = math.tanh %96 : vector<2x128xf32>
    %98 = vector.extract_strided_slice %83 {offsets = [0, 384], sizes = [2, 128], strides = [1, 1]} : vector<2x512xf32> to vector<2x128xf32>
    %99 = arith.negf %98 : vector<2x128xf32>
    %100 = math.exp %99 : vector<2x128xf32>
    %cst_29 = arith.constant 1.000000e+00 : f32
    %101 = vector.broadcast %cst_29 : f32 to vector<2x128xf32>
    %102 = arith.addf %101, %100 : vector<2x128xf32>
    %103 = arith.divf %101, %102 : vector<2x128xf32>
    %104 = arith.mulf %95, %71 : vector<2x128xf32>
    %105 = arith.mulf %89, %97 : vector<2x128xf32>
    %106 = arith.addf %104, %105 : vector<2x128xf32>
    %107 = math.tanh %106 : vector<2x128xf32>
    %108 = arith.mulf %103, %107 : vector<2x128xf32>
    %109 = vector.extract_strided_slice %108 {offsets = [0, 0], sizes = [2, 64], strides = [1, 1]} : vector<2x128xf32> to vector<2x64xf32>
    %110 = vector.shape_cast %109 : vector<2x64xf32> to vector<2x1x64xf32>
    %c0_30 = arith.constant 0 : index
    %c2 = arith.constant 2 : index
    %c0_31 = arith.constant 0 : index
    %111 = vector.load %arg11[%c0_30, %c2, %c0_31] : memref<2x8x128xf32, #tpu.memory_space<vmem>>, vector<2x1x64xf32>
    tpu.vector_store %arg11[%c0_30, %c2, %c0_31], %110 {strides = array<i32>} : memref<2x8x128xf32, #tpu.memory_space<vmem>>, vector<2x1x64xf32>,
    %112 = vector.extract_strided_slice %108 {offsets = [0, 64], sizes = [2, 64], strides = [1, 1]} : vector<2x128xf32> to vector<2x64xf32>
    %113 = vector.shape_cast %112 : vector<2x64xf32> to vector<2x1x64xf32>
    %c0_32 = arith.constant 0 : index
    %c5 = arith.constant 5 : index
    %c64_33 = arith.constant 64 : index
    %114 = vector.load %arg11[%c0_32, %c5, %c64_33] : memref<2x8x128xf32, #tpu.memory_space<vmem>>, vector<2x1x64xf32>
    tpu.vector_store %arg11[%c0_32, %c5, %c64_33], %113 {strides = array<i32>} : memref<2x8x128xf32, #tpu.memory_space<vmem>>, vector<2x1x64xf32>,
    %115 = vector.extract_strided_slice %6 {offsets = [6, 0], sizes = [2, 512], strides = [1, 1]} : vector<16x512xf32> to vector<2x512xf32>
    %116 = arith.truncf %108 : vector<2x128xf32> to vector<2x128xbf16>
    %cst_34 = arith.constant dense<0.000000e+00> : vector<2x512xf32>
    %117 = tpu.matmul %116, %7, %cst_34 {dimension_numbers = #tpu.dot_dimension_numbers<[1], [0], [0], [1], [0, 0, 1, 1], [], []>} : vector<2x128xbf16>, vector<128x512xbf16>, vector<2x512xf32> -> vector<2x512xf32>
    %118 = arith.addf %115, %117 : vector<2x512xf32>
    %119 = vector.extract_strided_slice %118 {offsets = [0, 0], sizes = [2, 128], strides = [1, 1]} : vector<2x512xf32> to vector<2x128xf32>
    %120 = arith.negf %119 : vector<2x128xf32>
    %121 = math.exp %120 : vector<2x128xf32>
    %cst_35 = arith.constant 1.000000e+00 : f32
    %122 = vector.broadcast %cst_35 : f32 to vector<2x128xf32>
    %123 = arith.addf %122, %121 : vector<2x128xf32>
    %124 = arith.divf %122, %123 : vector<2x128xf32>
    %125 = vector.extract_strided_slice %118 {offsets = [0, 128], sizes = [2, 128], strides = [1, 1]} : vector<2x512xf32> to vector<2x128xf32>
    %126 = arith.negf %125 : vector<2x128xf32>
    %127 = math.exp %126 : vector<2x128xf32>
    %cst_36 = arith.constant 1.000000e+00 : f32
    %128 = vector.broadcast %cst_36 : f32 to vector<2x128xf32>
    %129 = arith.addf %128, %127 : vector<2x128xf32>
    %130 = arith.divf %128, %129 : vector<2x128xf32>
    %131 = vector.extract_strided_slice %118 {offsets = [0, 256], sizes = [2, 128], strides = [1, 1]} : vector<2x512xf32> to vector<2x128xf32>
    %132 = math.tanh %131 : vector<2x128xf32>
    %133 = vector.extract_strided_slice %118 {offsets = [0, 384], sizes = [2, 128], strides = [1, 1]} : vector<2x512xf32> to vector<2x128xf32>
    %134 = arith.negf %133 : vector<2x128xf32>
    %135 = math.exp %134 : vector<2x128xf32>
    %cst_37 = arith.constant 1.000000e+00 : f32
    %136 = vector.broadcast %cst_37 : f32 to vector<2x128xf32>
    %137 = arith.addf %136, %135 : vector<2x128xf32>
    %138 = arith.divf %136, %137 : vector<2x128xf32>
    %139 = arith.mulf %130, %106 : vector<2x128xf32>
    %140 = arith.mulf %124, %132 : vector<2x128xf32>
    %141 = arith.addf %139, %140 : vector<2x128xf32>
    %142 = math.tanh %141 : vector<2x128xf32>
    %143 = arith.mulf %138, %142 : vector<2x128xf32>
    %144 = vector.extract_strided_slice %143 {offsets = [0, 0], sizes = [2, 64], strides = [1, 1]} : vector<2x128xf32> to vector<2x64xf32>
    %145 = vector.shape_cast %144 : vector<2x64xf32> to vector<2x1x64xf32>
    %c0_38 = arith.constant 0 : index
    %c3 = arith.constant 3 : index
    %c0_39 = arith.constant 0 : index
    %146 = vector.load %arg11[%c0_38, %c3, %c0_39] : memref<2x8x128xf32, #tpu.memory_space<vmem>>, vector<2x1x64xf32>
    tpu.vector_store %arg11[%c0_38, %c3, %c0_39], %145 {strides = array<i32>} : memref<2x8x128xf32, #tpu.memory_space<vmem>>, vector<2x1x64xf32>,
    %147 = vector.extract_strided_slice %143 {offsets = [0, 64], sizes = [2, 64], strides = [1, 1]} : vector<2x128xf32> to vector<2x64xf32>
    %148 = vector.shape_cast %147 : vector<2x64xf32> to vector<2x1x64xf32>
    %c0_40 = arith.constant 0 : index
    %c4 = arith.constant 4 : index
    %c64_41 = arith.constant 64 : index
    %149 = vector.load %arg11[%c0_40, %c4, %c64_41] : memref<2x8x128xf32, #tpu.memory_space<vmem>>, vector<2x1x64xf32>
    tpu.vector_store %arg11[%c0_40, %c4, %c64_41], %148 {strides = array<i32>} : memref<2x8x128xf32, #tpu.memory_space<vmem>>, vector<2x1x64xf32>,
    %150 = vector.extract_strided_slice %6 {offsets = [8, 0], sizes = [2, 512], strides = [1, 1]} : vector<16x512xf32> to vector<2x512xf32>
    %151 = arith.truncf %143 : vector<2x128xf32> to vector<2x128xbf16>
    %cst_42 = arith.constant dense<0.000000e+00> : vector<2x512xf32>
    %152 = tpu.matmul %151, %7, %cst_42 {dimension_numbers = #tpu.dot_dimension_numbers<[1], [0], [0], [1], [0, 0, 1, 1], [], []>} : vector<2x128xbf16>, vector<128x512xbf16>, vector<2x512xf32> -> vector<2x512xf32>
    %153 = arith.addf %150, %152 : vector<2x512xf32>
    %154 = vector.extract_strided_slice %153 {offsets = [0, 0], sizes = [2, 128], strides = [1, 1]} : vector<2x512xf32> to vector<2x128xf32>
    %155 = arith.negf %154 : vector<2x128xf32>
    %156 = math.exp %155 : vector<2x128xf32>
    %cst_43 = arith.constant 1.000000e+00 : f32
    %157 = vector.broadcast %cst_43 : f32 to vector<2x128xf32>
    %158 = arith.addf %157, %156 : vector<2x128xf32>
    %159 = arith.divf %157, %158 : vector<2x128xf32>
    %160 = vector.extract_strided_slice %153 {offsets = [0, 128], sizes = [2, 128], strides = [1, 1]} : vector<2x512xf32> to vector<2x128xf32>
    %161 = arith.negf %160 : vector<2x128xf32>
    %162 = math.exp %161 : vector<2x128xf32>
    %cst_44 = arith.constant 1.000000e+00 : f32
    %163 = vector.broadcast %cst_44 : f32 to vector<2x128xf32>
    %164 = arith.addf %163, %162 : vector<2x128xf32>
    %165 = arith.divf %163, %164 : vector<2x128xf32>
    %166 = vector.extract_strided_slice %153 {offsets = [0, 256], sizes = [2, 128], strides = [1, 1]} : vector<2x512xf32> to vector<2x128xf32>
    %167 = math.tanh %166 : vector<2x128xf32>
    %168 = vector.extract_strided_slice %153 {offsets = [0, 384], sizes = [2, 128], strides = [1, 1]} : vector<2x512xf32> to vector<2x128xf32>
    %169 = arith.negf %168 : vector<2x128xf32>
    %170 = math.exp %169 : vector<2x128xf32>
    %cst_45 = arith.constant 1.000000e+00 : f32
    %171 = vector.broadcast %cst_45 : f32 to vector<2x128xf32>
    %172 = arith.addf %171, %170 : vector<2x128xf32>
    %173 = arith.divf %171, %172 : vector<2x128xf32>
    %174 = arith.mulf %165, %141 : vector<2x128xf32>
    %175 = arith.mulf %159, %167 : vector<2x128xf32>
    %176 = arith.addf %174, %175 : vector<2x128xf32>
    %177 = math.tanh %176 : vector<2x128xf32>
    %178 = arith.mulf %173, %177 : vector<2x128xf32>
    %179 = vector.extract_strided_slice %178 {offsets = [0, 0], sizes = [2, 64], strides = [1, 1]} : vector<2x128xf32> to vector<2x64xf32>
    %180 = vector.shape_cast %179 : vector<2x64xf32> to vector<2x1x64xf32>
    %c0_46 = arith.constant 0 : index
    %c4_47 = arith.constant 4 : index
    %c0_48 = arith.constant 0 : index
    %181 = vector.load %arg11[%c0_46, %c4_47, %c0_48] : memref<2x8x128xf32, #tpu.memory_space<vmem>>, vector<2x1x64xf32>
    tpu.vector_store %arg11[%c0_46, %c4_47, %c0_48], %180 {strides = array<i32>} : memref<2x8x128xf32, #tpu.memory_space<vmem>>, vector<2x1x64xf32>,
    %182 = vector.extract_strided_slice %178 {offsets = [0, 64], sizes = [2, 64], strides = [1, 1]} : vector<2x128xf32> to vector<2x64xf32>
    %183 = vector.shape_cast %182 : vector<2x64xf32> to vector<2x1x64xf32>
    %c0_49 = arith.constant 0 : index
    %c3_50 = arith.constant 3 : index
    %c64_51 = arith.constant 64 : index
    %184 = vector.load %arg11[%c0_49, %c3_50, %c64_51] : memref<2x8x128xf32, #tpu.memory_space<vmem>>, vector<2x1x64xf32>
    tpu.vector_store %arg11[%c0_49, %c3_50, %c64_51], %183 {strides = array<i32>} : memref<2x8x128xf32, #tpu.memory_space<vmem>>, vector<2x1x64xf32>,
    %185 = vector.extract_strided_slice %6 {offsets = [10, 0], sizes = [2, 512], strides = [1, 1]} : vector<16x512xf32> to vector<2x512xf32>
    %186 = arith.truncf %178 : vector<2x128xf32> to vector<2x128xbf16>
    %cst_52 = arith.constant dense<0.000000e+00> : vector<2x512xf32>
    %187 = tpu.matmul %186, %7, %cst_52 {dimension_numbers = #tpu.dot_dimension_numbers<[1], [0], [0], [1], [0, 0, 1, 1], [], []>} : vector<2x128xbf16>, vector<128x512xbf16>, vector<2x512xf32> -> vector<2x512xf32>
    %188 = arith.addf %185, %187 : vector<2x512xf32>
    %189 = vector.extract_strided_slice %188 {offsets = [0, 0], sizes = [2, 128], strides = [1, 1]} : vector<2x512xf32> to vector<2x128xf32>
    %190 = arith.negf %189 : vector<2x128xf32>
    %191 = math.exp %190 : vector<2x128xf32>
    %cst_53 = arith.constant 1.000000e+00 : f32
    %192 = vector.broadcast %cst_53 : f32 to vector<2x128xf32>
    %193 = arith.addf %192, %191 : vector<2x128xf32>
    %194 = arith.divf %192, %193 : vector<2x128xf32>
    %195 = vector.extract_strided_slice %188 {offsets = [0, 128], sizes = [2, 128], strides = [1, 1]} : vector<2x512xf32> to vector<2x128xf32>
    %196 = arith.negf %195 : vector<2x128xf32>
    %197 = math.exp %196 : vector<2x128xf32>
    %cst_54 = arith.constant 1.000000e+00 : f32
    %198 = vector.broadcast %cst_54 : f32 to vector<2x128xf32>
    %199 = arith.addf %198, %197 : vector<2x128xf32>
    %200 = arith.divf %198, %199 : vector<2x128xf32>
    %201 = vector.extract_strided_slice %188 {offsets = [0, 256], sizes = [2, 128], strides = [1, 1]} : vector<2x512xf32> to vector<2x128xf32>
    %202 = math.tanh %201 : vector<2x128xf32>
    %203 = vector.extract_strided_slice %188 {offsets = [0, 384], sizes = [2, 128], strides = [1, 1]} : vector<2x512xf32> to vector<2x128xf32>
    %204 = arith.negf %203 : vector<2x128xf32>
    %205 = math.exp %204 : vector<2x128xf32>
    %cst_55 = arith.constant 1.000000e+00 : f32
    %206 = vector.broadcast %cst_55 : f32 to vector<2x128xf32>
    %207 = arith.addf %206, %205 : vector<2x128xf32>
    %208 = arith.divf %206, %207 : vector<2x128xf32>
    %209 = arith.mulf %200, %176 : vector<2x128xf32>
    %210 = arith.mulf %194, %202 : vector<2x128xf32>
    %211 = arith.addf %209, %210 : vector<2x128xf32>
    %212 = math.tanh %211 : vector<2x128xf32>
    %213 = arith.mulf %208, %212 : vector<2x128xf32>
    %214 = vector.extract_strided_slice %213 {offsets = [0, 0], sizes = [2, 64], strides = [1, 1]} : vector<2x128xf32> to vector<2x64xf32>
    %215 = vector.shape_cast %214 : vector<2x64xf32> to vector<2x1x64xf32>
    %c0_56 = arith.constant 0 : index
    %c5_57 = arith.constant 5 : index
    %c0_58 = arith.constant 0 : index
    %216 = vector.load %arg11[%c0_56, %c5_57, %c0_58] : memref<2x8x128xf32, #tpu.memory_space<vmem>>, vector<2x1x64xf32>
    tpu.vector_store %arg11[%c0_56, %c5_57, %c0_58], %215 {strides = array<i32>} : memref<2x8x128xf32, #tpu.memory_space<vmem>>, vector<2x1x64xf32>,
    %217 = vector.extract_strided_slice %213 {offsets = [0, 64], sizes = [2, 64], strides = [1, 1]} : vector<2x128xf32> to vector<2x64xf32>
    %218 = vector.shape_cast %217 : vector<2x64xf32> to vector<2x1x64xf32>
    %c0_59 = arith.constant 0 : index
    %c2_60 = arith.constant 2 : index
    %c64_61 = arith.constant 64 : index
    %219 = vector.load %arg11[%c0_59, %c2_60, %c64_61] : memref<2x8x128xf32, #tpu.memory_space<vmem>>, vector<2x1x64xf32>
    tpu.vector_store %arg11[%c0_59, %c2_60, %c64_61], %218 {strides = array<i32>} : memref<2x8x128xf32, #tpu.memory_space<vmem>>, vector<2x1x64xf32>,
    %220 = vector.extract_strided_slice %6 {offsets = [12, 0], sizes = [2, 512], strides = [1, 1]} : vector<16x512xf32> to vector<2x512xf32>
    %221 = arith.truncf %213 : vector<2x128xf32> to vector<2x128xbf16>
    %cst_62 = arith.constant dense<0.000000e+00> : vector<2x512xf32>
    %222 = tpu.matmul %221, %7, %cst_62 {dimension_numbers = #tpu.dot_dimension_numbers<[1], [0], [0], [1], [0, 0, 1, 1], [], []>} : vector<2x128xbf16>, vector<128x512xbf16>, vector<2x512xf32> -> vector<2x512xf32>
    %223 = arith.addf %220, %222 : vector<2x512xf32>
    %224 = vector.extract_strided_slice %223 {offsets = [0, 0], sizes = [2, 128], strides = [1, 1]} : vector<2x512xf32> to vector<2x128xf32>
    %225 = arith.negf %224 : vector<2x128xf32>
    %226 = math.exp %225 : vector<2x128xf32>
    %cst_63 = arith.constant 1.000000e+00 : f32
    %227 = vector.broadcast %cst_63 : f32 to vector<2x128xf32>
    %228 = arith.addf %227, %226 : vector<2x128xf32>
    %229 = arith.divf %227, %228 : vector<2x128xf32>
    %230 = vector.extract_strided_slice %223 {offsets = [0, 128], sizes = [2, 128], strides = [1, 1]} : vector<2x512xf32> to vector<2x128xf32>
    %231 = arith.negf %230 : vector<2x128xf32>
    %232 = math.exp %231 : vector<2x128xf32>
    %cst_64 = arith.constant 1.000000e+00 : f32
    %233 = vector.broadcast %cst_64 : f32 to vector<2x128xf32>
    %234 = arith.addf %233, %232 : vector<2x128xf32>
    %235 = arith.divf %233, %234 : vector<2x128xf32>
    %236 = vector.extract_strided_slice %223 {offsets = [0, 256], sizes = [2, 128], strides = [1, 1]} : vector<2x512xf32> to vector<2x128xf32>
    %237 = math.tanh %236 : vector<2x128xf32>
    %238 = vector.extract_strided_slice %223 {offsets = [0, 384], sizes = [2, 128], strides = [1, 1]} : vector<2x512xf32> to vector<2x128xf32>
    %239 = arith.negf %238 : vector<2x128xf32>
    %240 = math.exp %239 : vector<2x128xf32>
    %cst_65 = arith.constant 1.000000e+00 : f32
    %241 = vector.broadcast %cst_65 : f32 to vector<2x128xf32>
    %242 = arith.addf %241, %240 : vector<2x128xf32>
    %243 = arith.divf %241, %242 : vector<2x128xf32>
    %244 = arith.mulf %235, %211 : vector<2x128xf32>
    %245 = arith.mulf %229, %237 : vector<2x128xf32>
    %246 = arith.addf %244, %245 : vector<2x128xf32>
    %247 = math.tanh %246 : vector<2x128xf32>
    %248 = arith.mulf %243, %247 : vector<2x128xf32>
    %249 = vector.extract_strided_slice %248 {offsets = [0, 0], sizes = [2, 64], strides = [1, 1]} : vector<2x128xf32> to vector<2x64xf32>
    %250 = vector.shape_cast %249 : vector<2x64xf32> to vector<2x1x64xf32>
    %c0_66 = arith.constant 0 : index
    %c6_67 = arith.constant 6 : index
    %c0_68 = arith.constant 0 : index
    %251 = vector.load %arg11[%c0_66, %c6_67, %c0_68] : memref<2x8x128xf32, #tpu.memory_space<vmem>>, vector<2x1x64xf32>
    tpu.vector_store %arg11[%c0_66, %c6_67, %c0_68], %250 {strides = array<i32>} : memref<2x8x128xf32, #tpu.memory_space<vmem>>, vector<2x1x64xf32>,
    %252 = vector.extract_strided_slice %248 {offsets = [0, 64], sizes = [2, 64], strides = [1, 1]} : vector<2x128xf32> to vector<2x64xf32>
    %253 = vector.shape_cast %252 : vector<2x64xf32> to vector<2x1x64xf32>
    %c0_69 = arith.constant 0 : index
    %c1_70 = arith.constant 1 : index
    %c64_71 = arith.constant 64 : index
    %254 = vector.load %arg11[%c0_69, %c1_70, %c64_71] : memref<2x8x128xf32, #tpu.memory_space<vmem>>, vector<2x1x64xf32>
    tpu.vector_store %arg11[%c0_69, %c1_70, %c64_71], %253 {strides = array<i32>} : memref<2x8x128xf32, #tpu.memory_space<vmem>>, vector<2x1x64xf32>,
    %255 = vector.extract_strided_slice %6 {offsets = [14, 0], sizes = [2, 512], strides = [1, 1]} : vector<16x512xf32> to vector<2x512xf32>
    %256 = arith.truncf %248 : vector<2x128xf32> to vector<2x128xbf16>
    %cst_72 = arith.constant dense<0.000000e+00> : vector<2x512xf32>
    %257 = tpu.matmul %256, %7, %cst_72 {dimension_numbers = #tpu.dot_dimension_numbers<[1], [0], [0], [1], [0, 0, 1, 1], [], []>} : vector<2x128xbf16>, vector<128x512xbf16>, vector<2x512xf32> -> vector<2x512xf32>
    %258 = arith.addf %255, %257 : vector<2x512xf32>
    %259 = vector.extract_strided_slice %258 {offsets = [0, 0], sizes = [2, 128], strides = [1, 1]} : vector<2x512xf32> to vector<2x128xf32>
    %260 = arith.negf %259 : vector<2x128xf32>
    %261 = math.exp %260 : vector<2x128xf32>
    %cst_73 = arith.constant 1.000000e+00 : f32
    %262 = vector.broadcast %cst_73 : f32 to vector<2x128xf32>
    %263 = arith.addf %262, %261 : vector<2x128xf32>
    %264 = arith.divf %262, %263 : vector<2x128xf32>
    %265 = vector.extract_strided_slice %258 {offsets = [0, 128], sizes = [2, 128], strides = [1, 1]} : vector<2x512xf32> to vector<2x128xf32>
    %266 = arith.negf %265 : vector<2x128xf32>
    %267 = math.exp %266 : vector<2x128xf32>
    %cst_74 = arith.constant 1.000000e+00 : f32
    %268 = vector.broadcast %cst_74 : f32 to vector<2x128xf32>
    %269 = arith.addf %268, %267 : vector<2x128xf32>
    %270 = arith.divf %268, %269 : vector<2x128xf32>
    %271 = vector.extract_strided_slice %258 {offsets = [0, 256], sizes = [2, 128], strides = [1, 1]} : vector<2x512xf32> to vector<2x128xf32>
    %272 = math.tanh %271 : vector<2x128xf32>
    %273 = vector.extract_strided_slice %258 {offsets = [0, 384], sizes = [2, 128], strides = [1, 1]} : vector<2x512xf32> to vector<2x128xf32>
    %274 = arith.negf %273 : vector<2x128xf32>
    %275 = math.exp %274 : vector<2x128xf32>
    %cst_75 = arith.constant 1.000000e+00 : f32
    %276 = vector.broadcast %cst_75 : f32 to vector<2x128xf32>
    %277 = arith.addf %276, %275 : vector<2x128xf32>
    %278 = arith.divf %276, %277 : vector<2x128xf32>
    %279 = arith.mulf %270, %246 : vector<2x128xf32>
    %280 = arith.mulf %264, %272 : vector<2x128xf32>
    %281 = arith.addf %279, %280 : vector<2x128xf32>
    %282 = math.tanh %281 : vector<2x128xf32>
    %283 = arith.mulf %278, %282 : vector<2x128xf32>
    %284 = vector.extract_strided_slice %283 {offsets = [0, 0], sizes = [2, 64], strides = [1, 1]} : vector<2x128xf32> to vector<2x64xf32>
    %285 = vector.shape_cast %284 : vector<2x64xf32> to vector<2x1x64xf32>
    %c0_76 = arith.constant 0 : index
    %c7_77 = arith.constant 7 : index
    %c0_78 = arith.constant 0 : index
    %286 = vector.load %arg11[%c0_76, %c7_77, %c0_78] : memref<2x8x128xf32, #tpu.memory_space<vmem>>, vector<2x1x64xf32>
    tpu.vector_store %arg11[%c0_76, %c7_77, %c0_78], %285 {strides = array<i32>} : memref<2x8x128xf32, #tpu.memory_space<vmem>>, vector<2x1x64xf32>,
    %287 = vector.extract_strided_slice %283 {offsets = [0, 64], sizes = [2, 64], strides = [1, 1]} : vector<2x128xf32> to vector<2x64xf32>
    %288 = vector.shape_cast %287 : vector<2x64xf32> to vector<2x1x64xf32>
    %c0_79 = arith.constant 0 : index
    %c0_80 = arith.constant 0 : index
    %c64_81 = arith.constant 64 : index
    %289 = vector.load %arg11[%c0_79, %c0_80, %c64_81] : memref<2x8x128xf32, #tpu.memory_space<vmem>>, vector<2x1x64xf32>
    tpu.vector_store %arg11[%c0_79, %c0_80, %c64_81], %288 {strides = array<i32>} : memref<2x8x128xf32, #tpu.memory_space<vmem>>, vector<2x1x64xf32>,
    %c0_82 = arith.constant 0 : index
    %c0_83 = arith.constant 0 : index
    %c0_84 = arith.constant 0 : index
    %290 = vector.load %arg11[%c0_82, %c0_83, %c0_84] : memref<2x8x128xf32, #tpu.memory_space<vmem>>, vector<2x8x128xf32>
    %291 = vector.shape_cast %290 : vector<2x8x128xf32> to vector<16x128xf32>
    %292 = arith.truncf %291 : vector<16x128xf32> to vector<16x128xbf16>
    %c0_85 = arith.constant 0 : index
    %c0_86 = arith.constant 0 : index
    %293 = vector.load %arg5[%c0_85, %c0_86] : memref<128x384xbf16, #tpu.memory_space<vmem>>, vector<128x384xbf16>
    %cst_87 = arith.constant dense<0.000000e+00> : vector<16x384xf32>
    %294 = tpu.matmul %292, %293, %cst_87 {dimension_numbers = #tpu.dot_dimension_numbers<[1], [0], [0], [1], [0, 0, 1, 1], [], []>} : vector<16x128xbf16>, vector<128x384xbf16>, vector<16x384xf32> -> vector<16x384xf32>
    %c0_88 = arith.constant 0 : index
    %c0_89 = arith.constant 0 : index
    %295 = vector.load %arg6[%c0_88, %c0_89] : memref<1x384xf32, #tpu.memory_space<vmem>>, vector<1x384xf32>
    %296 = vector.broadcast %295 : vector<1x384xf32> to vector<16x384xf32>
    %297 = arith.addf %294, %296 : vector<16x384xf32>
    %298 = vector.shape_cast %297 : vector<16x384xf32> to vector<2x8x384xf32>
    %299 = vector.extract_strided_slice %298 {offsets = [0, 0, 0], sizes = [2, 8, 128], strides = [1, 1, 1]} : vector<2x8x384xf32> to vector<2x8x128xf32>
    %300 = arith.truncf %299 : vector<2x8x128xf32> to vector<2x8x128xbf16>
    %301 = vector.extract_strided_slice %298 {offsets = [0, 0, 128], sizes = [2, 8, 128], strides = [1, 1, 1]} : vector<2x8x384xf32> to vector<2x8x128xf32>
    %302 = arith.truncf %301 : vector<2x8x128xf32> to vector<2x8x128xbf16>
    %303 = vector.extract_strided_slice %298 {offsets = [0, 0, 256], sizes = [2, 8, 128], strides = [1, 1, 1]} : vector<2x8x384xf32> to vector<2x8x128xf32>
    %304 = arith.truncf %303 : vector<2x8x128xf32> to vector<2x8x128xbf16>
    %c0_90 = arith.constant 0 : index
    %c0_91 = arith.constant 0 : index
    %305 = vector.load %arg9[%c0_90, %c0_91] : memref<64x128xbf16, #tpu.memory_space<vmem>>, vector<64x128xbf16>
    %306 = tpu.concatenate %302, %302, %302, %302, %302, %302, %302, %302 in 1 : vector<2x8x128xbf16>, vector<2x8x128xbf16>, vector<2x8x128xbf16>, vector<2x8x128xbf16>, vector<2x8x128xbf16>, vector<2x8x128xbf16>, vector<2x8x128xbf16>, vector<2x8x128xbf16> -> vector<2x64x128xbf16>
    %307 = vector.shape_cast %305 : vector<64x128xbf16> to vector<1x64x128xbf16>
    %308 = vector.broadcast %307 : vector<1x64x128xbf16> to vector<2x64x128xbf16>
    %309 = arith.mulf %306, %308 : vector<2x64x128xbf16>
    %310 = tpu.concatenate %304, %304, %304, %304, %304, %304, %304, %304 in 1 : vector<2x8x128xbf16>, vector<2x8x128xbf16>, vector<2x8x128xbf16>, vector<2x8x128xbf16>, vector<2x8x128xbf16>, vector<2x8x128xbf16>, vector<2x8x128xbf16>, vector<2x8x128xbf16> -> vector<2x64x128xbf16>
    %311 = vector.shape_cast %305 : vector<64x128xbf16> to vector<1x64x128xbf16>
    %312 = vector.broadcast %311 : vector<1x64x128xbf16> to vector<2x64x128xbf16>
    %313 = arith.mulf %310, %312 : vector<2x64x128xbf16>
    %cst_92 = arith.constant dense<0.000000e+00> : vector<2x8x64xf32>
    %314 = tpu.matmul %300, %309, %cst_92 {dimension_numbers = #tpu.dot_dimension_numbers<[2], [2], [1], [1], [0, 0, 0, 1, 1, 1], [0], [0]>} : vector<2x8x128xbf16>, vector<2x64x128xbf16>, vector<2x8x64xf32> -> vector<2x8x64xf32>
    %cst_93 = arith.constant dense<0xFF800000> : vector<2x8xf32>
    %315 = vector.multi_reduction <maximumf>, %314, %cst_93 [2] : vector<2x8x64xf32> to vector<2x8xf32>
    %316 = vector.shape_cast %315 : vector<2x8xf32> to vector<2x8x1xf32>
    %317 = vector.broadcast %316 : vector<2x8x1xf32> to vector<2x8x64xf32>
    %318 = arith.subf %314, %317 : vector<2x8x64xf32>
    %319 = math.exp %318 : vector<2x8x64xf32>
    %320 = vector.shape_cast %319 : vector<2x8x64xf32> to vector<16x64xf32>
    %c0_94 = arith.constant 0 : index
    %c0_95 = arith.constant 0 : index
    %321 = vector.load %arg10[%c0_94, %c0_95] : memref<64x8xf32, #tpu.memory_space<vmem>>, vector<64x8xf32>
    %cst_96 = arith.constant dense<0.000000e+00> : vector<16x8xf32>
    %322 = tpu.matmul %320, %321, %cst_96 {dimension_numbers = #tpu.dot_dimension_numbers<[1], [0], [0], [1], [0, 0, 1, 1], [], []>} : vector<16x64xf32>, vector<64x8xf32>, vector<16x8xf32> -> vector<16x8xf32>
    %cst_97 = arith.constant dense<0.000000e+00> : vector<16x64xf32>
    %323 = tpu.matmul %322, %321, %cst_97 {dimension_numbers = #tpu.dot_dimension_numbers<[1], [1], [0], [0], [0, 0, 1, 0], [], []>} : vector<16x8xf32>, vector<64x8xf32>, vector<16x64xf32> -> vector<16x64xf32>
    %324 = arith.divf %320, %323 : vector<16x64xf32>
    %325 = vector.shape_cast %324 : vector<16x64xf32> to vector<2x8x64xf32>
    %326 = arith.truncf %325 : vector<2x8x64xf32> to vector<2x8x64xbf16>
    %cst_98 = arith.constant dense<0.000000e+00> : vector<2x8x128xf32>
    %327 = tpu.matmul %326, %313, %cst_98 {dimension_numbers = #tpu.dot_dimension_numbers<[2], [1], [1], [2], [0, 0, 0, 1, 1, 2], [0], [0]>} : vector<2x8x64xbf16>, vector<2x64x128xbf16>, vector<2x8x128xf32> -> vector<2x8x128xf32>
    %328 = vector.shape_cast %327 : vector<2x8x128xf32> to vector<16x128xf32>
    %329 = arith.truncf %328 : vector<16x128xf32> to vector<16x128xbf16>
    %c0_99 = arith.constant 0 : index
    %c0_100 = arith.constant 0 : index
    %330 = vector.load %arg7[%c0_99, %c0_100] : memref<128x128xbf16, #tpu.memory_space<vmem>>, vector<128x128xbf16>
    %cst_101 = arith.constant dense<0.000000e+00> : vector<16x128xf32>
    %331 = tpu.matmul %329, %330, %cst_101 {dimension_numbers = #tpu.dot_dimension_numbers<[1], [0], [0], [1], [0, 0, 1, 1], [], []>} : vector<16x128xbf16>, vector<128x128xbf16>, vector<16x128xf32> -> vector<16x128xf32>
    %c0_102 = arith.constant 0 : index
    %c0_103 = arith.constant 0 : index
    %332 = vector.load %arg8[%c0_102, %c0_103] : memref<1x128xf32, #tpu.memory_space<vmem>>, vector<1x128xf32>
    %333 = vector.broadcast %332 : vector<1x128xf32> to vector<16x128xf32>
    %334 = arith.addf %331, %333 : vector<16x128xf32>
    %335 = vector.shape_cast %334 : vector<16x128xf32> to vector<2x8x128xf32>
    %c0_104 = arith.constant 0 : index
    %c0_105 = arith.constant 0 : index
    %c0_106 = arith.constant 0 : index
    %336 = vector.load %arg12[%c0_104, %c0_105, %c0_106] : memref<2x8x128xf32, #tpu.memory_space<vmem>>, vector<2x8x128xf32>
    tpu.vector_store %arg12[%c0_104, %c0_105, %c0_106], %335 {strides = array<i32>} : memref<2x8x128xf32, #tpu.memory_space<vmem>>, vector<2x8x128xf32>,
    return
  }
  func.func @transform_0(%arg0: i32) -> (i32, i32, i32) {
    %c0_i32 = arith.constant 0 : i32
    %c0_i32_0 = arith.constant 0 : i32
    %c0_i32_1 = arith.constant 0 : i32
    return %arg0, %c0_i32, %c0_i32_0 : i32, i32, i32
  }
  func.func @transform_1(%arg0: i32) -> (i32, i32) {
    %c0_i32 = arith.constant 0 : i32
    %c0_i32_0 = arith.constant 0 : i32
    %c0_i32_1 = arith.constant 0 : i32
    return %c0_i32, %c0_i32_0 : i32, i32
  }
  func.func @transform_2(%arg0: i32) -> (i32, i32) {
    %c0_i32 = arith.constant 0 : i32
    %c0_i32_0 = arith.constant 0 : i32
    %c0_i32_1 = arith.constant 0 : i32
    return %c0_i32, %c0_i32_0 : i32, i32
  }
  func.func @transform_3(%arg0: i32) -> (i32, i32) {
    %c0_i32 = arith.constant 0 : i32
    %c0_i32_0 = arith.constant 0 : i32
    %c0_i32_1 = arith.constant 0 : i32
    return %c0_i32, %c0_i32_0 : i32, i32
  }
  func.func @transform_4(%arg0: i32) -> (i32, i32) {
    %c0_i32 = arith.constant 0 : i32
    %c0_i32_0 = arith.constant 0 : i32
    %c0_i32_1 = arith.constant 0 : i32
    return %c0_i32, %c0_i32_0 : i32, i32
  }
  func.func @transform_5(%arg0: i32) -> (i32, i32) {
    %c0_i32 = arith.constant 0 : i32
    %c0_i32_0 = arith.constant 0 : i32
    %c0_i32_1 = arith.constant 0 : i32
    return %c0_i32, %c0_i32_0 : i32, i32
  }
  func.func @transform_6(%arg0: i32) -> (i32, i32) {
    %c0_i32 = arith.constant 0 : i32
    %c0_i32_0 = arith.constant 0 : i32
    %c0_i32_1 = arith.constant 0 : i32
    return %c0_i32, %c0_i32_0 : i32, i32
  }
  func.func @transform_7(%arg0: i32) -> (i32, i32) {
    %c0_i32 = arith.constant 0 : i32
    %c0_i32_0 = arith.constant 0 : i32
    %c0_i32_1 = arith.constant 0 : i32
    return %c0_i32, %c0_i32_0 : i32, i32
  }
  func.func @transform_8(%arg0: i32) -> (i32, i32) {
    %c0_i32 = arith.constant 0 : i32
    %c0_i32_0 = arith.constant 0 : i32
    %c0_i32_1 = arith.constant 0 : i32
    return %c0_i32, %c0_i32_0 : i32, i32
  }
  func.func @transform_9(%arg0: i32) -> (i32, i32) {
    %c0_i32 = arith.constant 0 : i32
    %c0_i32_0 = arith.constant 0 : i32
    %c0_i32_1 = arith.constant 0 : i32
    return %c0_i32, %c0_i32_0 : i32, i32
  }
  func.func @transform_10(%arg0: i32) -> (i32, i32, i32) {
    %c0_i32 = arith.constant 0 : i32
    %c0_i32_0 = arith.constant 0 : i32
    %c0_i32_1 = arith.constant 0 : i32
    return %arg0, %c0_i32, %c0_i32_0 : i32, i32, i32
  }
  func.func @transform_11(%arg0: i32) -> (i32, i32, i32) {
    %c0_i32 = arith.constant 0 : i32
    %c0_i32_0 = arith.constant 0 : i32
    %c0_i32_1 = arith.constant 0 : i32
    return %arg0, %c0_i32, %c0_i32_0 : i32, i32, i32
  }
}

</mosaic_0001>

<llo_original>
// kernel: tpu_custom_call.1
$region0: #{tpu_custom_call.1}
  #allocation0 [shape = 'u32[]', space=smem, size = 0x4, offset = 0x4, fixed_abs, tag = 'smem constant byte address 0x4 - core index']
  #allocation1 [shape = 'u32[144,128]{1,0:T(1,128)}', space=vmem, size = 0x12000, scoped, tag = 'internal scratch']
  %s0 = inlined_call_operand.hbm [shape: bf16[1,16,42], index: 0, kind: input, shape index: {}]
  %s1 = inlined_call_operand.hbm [shape: bf16[42,512], index: 1, kind: input, shape index: {}]
  %s2 = inlined_call_operand.hbm [shape: bf16[128,512], index: 2, kind: input, shape index: {}]
  %s3 = inlined_call_operand.hbm [shape: f32[1,512], index: 3, kind: input, shape index: {}]
  %s4 = inlined_call_operand.hbm [shape: bf16[128,384], index: 4, kind: input, shape index: {}]
  %s5 = inlined_call_operand.hbm [shape: f32[1,384], index: 5, kind: input, shape index: {}]
  %s6 = inlined_call_operand.vmem [shape: bf16[128,128], index: 6, kind: input, shape index: {}]
  %s7 = inlined_call_operand.vmem [shape: f32[1,128], index: 7, kind: input, shape index: {}]
  %s8 = inlined_call_operand.vmem [shape: bf16[64,128], index: 8, kind: input, shape index: {}]
  %s9 = inlined_call_operand.vmem [shape: f32[64,8], index: 9, kind: input, shape index: {}]
  %s10 = inlined_call_operand.hbm [shape: f32[2,8,128], index: 10, kind: output, shape index: {0}]
  %s11 = inlined_call_operand.hbm [shape: f32[2,8,128], index: 11, kind: output, shape index: {1}]
  %12 = xla_tuple %s10, %s11
  %s13 = sld [smem:[#allocation0]]
  $region82: #{tpu_custom_call.1} parent=0
    _
  %s15 = ssub.s32 1, %s13
  %s16 = scalar_select 0, %s15, %s13
  $region1: #{tpu_custom_call.1} parent=0
    #allocation2 [shape = 'u8[4096]{0}', space=vmem, size = 0x1000, scoped, tag = 'input window, operand 0, single buffered']
    #allocation3 [shape = 's32[1]{0}', space=sflag, size = 0x4, scoped, tag = 'scoped memory for tpu_custom_call.1']
    #allocation4 [shape = 's32[1]{0}', space=sflag, size = 0x4, scoped, tag = 'scoped memory for tpu_custom_call.1']
    #allocation5 [shape = 'u8[49152]{0}', space=vmem, size = 0xc000, scoped, tag = 'input window, operand 1, single buffered']
    #allocation6 [shape = 's32[1]{0}', space=sflag, size = 0x4, scoped, tag = 'scoped memory for tpu_custom_call.1']
    #allocation7 [shape = 'u8[131072]{0}', space=vmem, size = 0x20000, scoped, tag = 'input window, operand 2, single buffered']
    #allocation8 [shape = 'u8[2048]{0}', space=vmem, size = 0x800, scoped, tag = 'input window, operand 3, single buffered']
    #allocation9 [shape = 's32[1]{0}', space=sflag, size = 0x4, scoped, tag = 'scoped memory for tpu_custom_call.1']
    #allocation10 [shape = 'u8[98304]{0}', space=vmem, size = 0x18000, scoped, tag = 'input window, operand 4, single buffered']
    #allocation11 [shape = 'u8[1536]{0}', space=vmem, size = 0x800, scoped, tag = 'input window, operand 5, single buffered']
    #allocation12 [shape = 's32[1]{0}', space=sflag, size = 0x4, scoped, tag = 'scoped memory for tpu_custom_call.1']
    #allocation13 [shape = 'u8[8192]{0}', space=vmem, size = 0x2000, scoped, tag = 'output window, operand 0, single buffered']
    #allocation14 [shape = 'u8[8192]{0}', space=vmem, size = 0x2000, scoped, tag = 'output window, operand 1, single buffered']
    #allocation15 [shape = 's32[1]{0}', space=sflag, size = 0x4, scoped, tag = 'scoped memory for tpu_custom_call.1']
    %17 = vsyncpa [#allocation3], 0
    %18 = vsyncpa [#allocation6], 0
    %19 = vsyncpa [#allocation9], 0
    %20 = vsyncpa [#allocation12], 0
    %21 = vsyncpa [#allocation4], 0
    %22 = vsyncpa [#allocation15], 0
    // Predicated region
    $region2: #{tpu_custom_call.1} parent=1 // pred_check
      _
    $region3: #{tpu_custom_call.1} parent=1 // pred_check_branch
      %24 = sbr.rel (0) target = $region5
    $region4: #{tpu_custom_call.1} parent=1 // pred_region
      %s26 = ssub.s32 128, 128
      %27 = vsyncadd [#allocation3], %s26
      %s28 = sshll.u32 [#allocation2], 4
      %s29 = int_to_ptr.vmem [resolvable:$true] %s28
      %34 = dma.hbm_to_vmem [thread:$0]  %s0, 128, %s29, [#allocation3], 64, 64, 4
    $region5: #{tpu_custom_call.1} parent=1 // pred_fallthru
      _
    // Predicated region
    $region6: #{tpu_custom_call.1} parent=1 // pred_check
      _
    $region7: #{tpu_custom_call.1} parent=1 // pred_check_branch
      %36 = sbr.rel (0) target = $region9
    $region8: #{tpu_custom_call.1} parent=1 // pred_region
      %s38 = ssub.s32 1536, 1536
      %39 = vsyncadd [#allocation6], %s38
      %s40 = sshll.u32 [#allocation5], 4
      %s41 = int_to_ptr.vmem [resolvable:$true] %s40
      %46 = dma.hbm_to_vmem [thread:$0]  %s1, 1536, %s41, [#allocation6], 256, 256, 16
    $region9: #{tpu_custom_call.1} parent=1 // pred_fallthru
      _
    // Predicated region
    $region10: #{tpu_custom_call.1} parent=1 // pred_check
      _
    $region11: #{tpu_custom_call.1} parent=1 // pred_check_branch
      %48 = sbr.rel (0) target = $region13
    $region12: #{tpu_custom_call.1} parent=1 // pred_region
      %s50 = ssub.s32 4096, 4096
      %51 = vsyncadd [#allocation6], %s50
      %s52 = sshll.u32 [#allocation7], 4
      %s53 = int_to_ptr.vmem [resolvable:$true] %s52
      %58 = dma.hbm_to_vmem [thread:$0]  %s2, 4096, %s53, [#allocation6], 256, 256, 16
    $region13: #{tpu_custom_call.1} parent=1 // pred_fallthru
      _
    // Predicated region
    $region14: #{tpu_custom_call.1} parent=1 // pred_check
      _
    $region15: #{tpu_custom_call.1} parent=1 // pred_check_branch
      %60 = sbr.rel (0) target = $region17
    $region16: #{tpu_custom_call.1} parent=1 // pred_region
      %s62 = ssub.s32 64, 64
      %63 = vsyncadd [#allocation9], %s62
      %s65 = sshll.u32 [#allocation8], 4
      %s66 = int_to_ptr.vmem [resolvable:$true] %s65
      %68 = dma.hbm_to_vmem [thread:$0]  %s3, 64, %s66, [#allocation9]
    $region17: #{tpu_custom_call.1} parent=1 // pred_fallthru
      _
    // Predicated region
    $region18: #{tpu_custom_call.1} parent=1 // pred_check
      _
    $region19: #{tpu_custom_call.1} parent=1 // pred_check_branch
      %70 = sbr.rel (0) target = $region21
    $region20: #{tpu_custom_call.1} parent=1 // pred_region
      %s72 = ssub.s32 3072, 3072
      %73 = vsyncadd [#allocation9], %s72
      %s74 = sshll.u32 [#allocation10], 4
      %s75 = int_to_ptr.vmem [resolvable:$true] %s74
      %80 = dma.hbm_to_vmem [thread:$0]  %s4, 3072, %s75, [#allocation9], 192, 192, 12
    $region21: #{tpu_custom_call.1} parent=1 // pred_fallthru
      _
    // Predicated region
    $region22: #{tpu_custom_call.1} parent=1 // pred_check
      _
    $region23: #{tpu_custom_call.1} parent=1 // pred_check_branch
      %82 = sbr.rel (0) target = $region25
    $region24: #{tpu_custom_call.1} parent=1 // pred_region
      %s84 = ssub.s32 48, 48
      %85 = vsyncadd [#allocation12], %s84
      %s87 = sshll.u32 [#allocation11], 4
      %s88 = int_to_ptr.vmem [resolvable:$true] %s87
      %90 = dma.hbm_to_vmem [thread:$0]  %s5, 48, %s88, [#allocation12]
    $region25: #{tpu_custom_call.1} parent=1 // pred_fallthru
      _
    // Predicated region
    $region26: #{tpu_custom_call.1} parent=1 // pred_check
      _
    $region27: #{tpu_custom_call.1} parent=1 // pred_check_branch
      %92 = sbr.rel (0) target = $region29
    $region28: #{tpu_custom_call.1} parent=1 // pred_region
      _
    $region29: #{tpu_custom_call.1} parent=1 // pred_fallthru
      _
    // Predicated region
    $region30: #{tpu_custom_call.1} parent=1 // pred_check
      _
    $region31: #{tpu_custom_call.1} parent=1 // pred_check_branch
      %94 = sbr.rel (0) target = $region33
    $region32: #{tpu_custom_call.1} parent=1 // pred_region
      _
    $region33: #{tpu_custom_call.1} parent=1 // pred_fallthru
      _
    // Predicated region
    $region34: #{tpu_custom_call.1} parent=1 // pred_check
      _
    $region35: #{tpu_custom_call.1} parent=1 // pred_check_branch
      %96 = sbr.rel (0) target = $region37
    $region36: #{tpu_custom_call.1} parent=1 // pred_region
      _
    $region37: #{tpu_custom_call.1} parent=1 // pred_fallthru
      _
    // Predicated region
    $region38: #{tpu_custom_call.1} parent=1 // pred_check
      _
    $region39: #{tpu_custom_call.1} parent=1 // pred_check_branch
      %98 = sbr.rel (0) target = $region41
    $region40: #{tpu_custom_call.1} parent=1 // pred_region
      _
    $region41: #{tpu_custom_call.1} parent=1 // pred_fallthru
      _
    // Predicated region
    $region42: #{tpu_custom_call.1} parent=1 // pred_check
      _
    $region43: #{tpu_custom_call.1} parent=1 // pred_check_branch
      %100 = sbr.rel (0) target = $region45
    $region44: #{tpu_custom_call.1} parent=1 // pred_region
      %101 = dma.done [#allocation3], 128
    $region45: #{tpu_custom_call.1} parent=1 // pred_fallthru
      _
    // Predicated region
    $region46: #{tpu_custom_call.1} parent=1 // pred_check
      _
    $region47: #{tpu_custom_call.1} parent=1 // pred_check_branch
      %103 = sbr.rel (0) target = $region49
    $region48: #{tpu_custom_call.1} parent=1 // pred_region
      %104 = dma.done [#allocation6], 1536
    $region49: #{tpu_custom_call.1} parent=1 // pred_fallthru
      _
    // Predicated region
    $region50: #{tpu_custom_call.1} parent=1 // pred_check
      _
    $region51: #{tpu_custom_call.1} parent=1 // pred_check_branch
      %106 = sbr.rel (0) target = $region53
    $region52: #{tpu_custom_call.1} parent=1 // pred_region
      %107 = dma.done [#allocation6], 4096
    $region53: #{tpu_custom_call.1} parent=1 // pred_fallthru
      _
    // Predicated region
    $region54: #{tpu_custom_call.1} parent=1 // pred_check
      _
    $region55: #{tpu_custom_call.1} parent=1 // pred_check_branch
      %109 = sbr.rel (0) target = $region57
    $region56: #{tpu_custom_call.1} parent=1 // pred_region
      %110 = dma.done [#allocation9], 64
    $region57: #{tpu_custom_call.1} parent=1 // pred_fallthru
      _
    // Predicated region
    $region58: #{tpu_custom_call.1} parent=1 // pred_check
      _
    $region59: #{tpu_custom_call.1} parent=1 // pred_check_branch
      %112 = sbr.rel (0) target = $region61
    $region60: #{tpu_custom_call.1} parent=1 // pred_region
      %113 = dma.done [#allocation9], 3072
    $region61: #{tpu_custom_call.1} parent=1 // pred_fallthru
      _
    // Predicated region
    $region62: #{tpu_custom_call.1} parent=1 // pred_check
      _
    $region63: #{tpu_custom_call.1} parent=1 // pred_check_branch
      %115 = sbr.rel (0) target = $region65
    $region64: #{tpu_custom_call.1} parent=1 // pred_region
      %116 = dma.done [#allocation12], 48
    $region65: #{tpu_custom_call.1} parent=1 // pred_fallthru
      _
    %v118 = vld [vmem:[#allocation2] sm:$0xf]
    %v119 = vld [vmem:[#allocation2 + $0x4] sm:$0xf]
    %v120 = vld [vmem:[#allocation5] sm:$0xff]
    %v121 = vld [vmem:[#allocation5 + $0x8] sm:$0xff]
    %v122 = vld [vmem:[#allocation5 + $0x10] sm:$0xff]
    %v123 = vld [vmem:[#allocation5 + $0x18] sm:$0xff]
    %v124 = vld [vmem:[#allocation5 + $0x20] sm:$0xff]
    %v125 = vld [vmem:[#allocation5 + $0x28] sm:$0xff]
    %v126 = vld [vmem:[#allocation5 + $0x30] sm:$0xff]
    %v127 = vld [vmem:[#allocation5 + $0x38] sm:$0xff]
    %v128 = vld [vmem:[#allocation5 + $0x40] sm:$0xff]
    %v129 = vld [vmem:[#allocation5 + $0x48] sm:$0xff]
    %v130 = vld [vmem:[#allocation5 + $0x50] sm:$0x11]
    %v131 = vld [vmem:[#allocation5 + $0x58] sm:$0x11]
    %v132 = vld [vmem:[#allocation8] sm:$0xf]
    %v134 = vlaneseq
    %v135 = vshrl.u32 %v134, 7
    %v136 = vsub.s32 0, %v135
    %v137 = vrot.slane %v132, %v136
    %v138 = vlaneseq
    %v139 = vshrl.u32 %v138, 7
    %v140 = vsub.s32 1, %v139
    %v141 = vrot.slane %v132, %v140
    %v142 = vlaneseq
    %v143 = vshrl.u32 %v142, 7
    %v144 = vsub.s32 2, %v143
    %v145 = vrot.slane %v132, %v144
    %v146 = vlaneseq
    %v147 = vshrl.u32 %v146, 7
    %v148 = vsub.s32 3, %v147
    %v149 = vrot.slane %v132, %v148
    %v156 = vunpack.c.l.b16 %v118
    %v157 = vunpack.c.l.b16 %v119
    %v158 = vpack.c.b16 %v157, %v156
    %v171 = vunpack.c.l.b16 %v120
    %v172 = vunpack.c.h.b16 %v120
    %v173 = vunpack.c.l.b16 %v121
    %v174 = vunpack.c.h.b16 %v121
    %v175 = vunpack.c.l.b16 %v122
    %v176 = vunpack.c.h.b16 %v122
    %v177 = vunpack.c.l.b16 %v123
    %v178 = vunpack.c.h.b16 %v123
    %v179 = vunpack.c.l.b16 %v124
    %v180 = vunpack.c.h.b16 %v124
    %v181 = vunpack.c.l.b16 %v125
    %v182 = vunpack.c.h.b16 %v125
    %v183 = vunpack.c.l.b16 %v126
    %v184 = vunpack.c.h.b16 %v126
    %v185 = vunpack.c.l.b16 %v127
    %v186 = vunpack.c.h.b16 %v127
    %v187 = vunpack.c.l.b16 %v128
    %v188 = vunpack.c.h.b16 %v128
    %v189 = vunpack.c.l.b16 %v129
    %v190 = vunpack.c.h.b16 %v129
    %v191 = vunpack.c.l.b16 %v130
    %v192 = vunpack.c.h.b16 %v130
    %v193 = vunpack.c.l.b16 %v131
    %v194 = vunpack.c.h.b16 %v131
    %v195 = vpack.c.b16 %v175, %v171
    %v196 = vpack.c.b16 %v176, %v172
    %v197 = vpack.c.b16 %v177, %v173
    %v198 = vpack.c.b16 %v178, %v174
    %v199 = vpack.c.b16 %v183, %v179
    %v200 = vpack.c.b16 %v184, %v180
    %v201 = vpack.c.b16 %v185, %v181
    %v202 = vpack.c.b16 %v186, %v182
    %v203 = vpack.c.b16 %v191, %v187
    %v204 = vpack.c.b16 %v192, %v188
    %v205 = vpack.c.b16 %v193, %v189
    %v206 = vpack.c.b16 %v194, %v190
    %vm215 = vcmask 343040
    %v217 = vsel %vm215, %v158, 0
    %vm219 = vcmask 1044480
    %v221 = vsel %vm219, %v203, 0
    %v224 = vsel %vm219, %v204, 0
    %v227 = vsel %vm219, %v205, 0
    %v230 = vsel %vm219, %v206, 0
    %232 = vmatprep.subr.bf16.mxu0 %v196
    %233 = vmatpush1.bf16.msra.mxu0 %v195
    %234 = vmatprep.subr.bf16.mxu0 %v200
    %235 = vmatpush1.bf16.msra.mxu0 %v199
    %236 = vmatprep.subr.bf16.mxu0 %v224
    %237 = vmatpush1.bf16.msra.mxu0 %v221
    %238 = vmatprep.subr.bf16.mxu0 0
    %239 = vmatpush1.bf16.msra.mxu0 0
    %240 = vmatprep.subr.bf16.mxu0 0
    %241 = vmatpush1.bf16.msra.mxu0 0
    %242 = vmatprep.subr.bf16.mxu0 0
    %243 = vmatpush1.bf16.msra.mxu0 0
    %244 = vmatprep.subr.bf16.mxu0 0
    %245 = vmatpush1.bf16.msra.mxu0 0
    %246 = vmatprep.subr.bf16.mxu0 0
    %247 = vmatpush1.bf16.msra.mxu0 0
    %248 = vmatprep.subr.bf16.mxu0 0
    %249 = vmatpush1.bf16.msra.mxu0 0
    %250 = vmatprep.subr.bf16.mxu0 0
    %251 = vmatpush1.bf16.msra.mxu0 0
    %252 = vmatprep.subr.bf16.mxu0 0
    %253 = vmatpush1.bf16.msra.mxu0 0
    %254 = vmatprep.subr.bf16.mxu0 0
    %255 = vmatpush1.bf16.msra.mxu0 0
    %256 = vmatprep.subr.bf16.mxu0 0
    %257 = vmatpush1.bf16.msra.mxu0 0
    %258 = vmatprep.subr.bf16.mxu0 0
    %259 = vmatpush1.bf16.msra.mxu0 0
    %260 = vmatprep.subr.bf16.mxu0 0
    %261 = vmatpush1.bf16.msra.mxu0 0
    %262 = vmatprep.subr.bf16.mxu0 0
    %263 = vmatpush1.bf16.msra.mxu0 0
    %264 = vmatprep.mubr.bf16.mxu0 0
    %265 = vmatmul.mubr.bf16.gmra.mrb[0].mxu0 %v217
    %v266 = vpop.f32.mrb[0].mxu0
    %v267 = vadd.f32 %v137, %v266
    %v268 = vpop.f32.mrb[0].mxu0
    %v269 = vadd.f32 %v141, %v268
    %v270 = vpop.f32.mrb[0].mxu0
    %v271 = vadd.f32 %v137, %v270
    %v272 = vpop.f32.mrb[0].mxu0
    %v273 = vadd.f32 %v141, %v272
    %274 = vdwg.mxu0
    %275 = vmatprep.subr.bf16.mxu0 %v198
    %276 = vmatpush1.bf16.msra.mxu0 %v197
    %277 = vmatprep.subr.bf16.mxu0 %v202
    %278 = vmatpush1.bf16.msra.mxu0 %v201
    %279 = vmatprep.subr.bf16.mxu0 %v230
    %280 = vmatpush1.bf16.msra.mxu0 %v227
    %281 = vmatprep.subr.bf16.mxu0 0
    %282 = vmatpush1.bf16.msra.mxu0 0
    %283 = vmatprep.subr.bf16.mxu0 0
    %284 = vmatpush1.bf16.msra.mxu0 0
    %285 = vmatprep.subr.bf16.mxu0 0
    %286 = vmatpush1.bf16.msra.mxu0 0
    %287 = vmatprep.subr.bf16.mxu0 0
    %288 = vmatpush1.bf16.msra.mxu0 0
    %289 = vmatprep.subr.bf16.mxu0 0
    %290 = vmatpush1.bf16.msra.mxu0 0
    %291 = vmatprep.subr.bf16.mxu0 0
    %292 = vmatpush1.bf16.msra.mxu0 0
    %293 = vmatprep.subr.bf16.mxu0 0
    %294 = vmatpush1.bf16.msra.mxu0 0
    %295 = vmatprep.subr.bf16.mxu0 0
    %296 = vmatpush1.bf16.msra.mxu0 0
    %297 = vmatprep.subr.bf16.mxu0 0
    %298 = vmatpush1.bf16.msra.mxu0 0
    %299 = vmatprep.subr.bf16.mxu0 0
    %300 = vmatpush1.bf16.msra.mxu0 0
    %301 = vmatprep.subr.bf16.mxu0 0
    %302 = vmatpush1.bf16.msra.mxu0 0
    %303 = vmatprep.subr.bf16.mxu0 0
    %304 = vmatpush1.bf16.msra.mxu0 0
    %305 = vmatprep.subr.bf16.mxu0 0
    %306 = vmatpush1.bf16.msra.mxu0 0
    %307 = vmatprep.mubr.bf16.mxu0 0
    %308 = vmatmul.mubr.bf16.gmra.mrb[0].mxu0 %v217
    %v309 = vpop.f32.mrb[0].mxu0
    %v310 = vadd.f32 %v145, %v309
    %v311 = vpop.f32.mrb[0].mxu0
    %v312 = vadd.f32 %v149, %v311
    %v313 = vpop.f32.mrb[0].mxu0
    %v314 = vadd.f32 %v145, %v313
    %v315 = vpop.f32.mrb[0].mxu0
    %v316 = vadd.f32 %v149, %v315
    %317 = vdwg.mxu0
    %v318 = vld [vmem:[#allocation7] sm:$0xff]
    %v319 = vld [vmem:[#allocation7 + $0x8] sm:$0xff]
    %v320 = vld [vmem:[#allocation7 + $0x10] sm:$0xff]
    %v321 = vld [vmem:[#allocation7 + $0x18] sm:$0xff]
    %v322 = vld [vmem:[#allocation7 + $0x20] sm:$0xff]
    %v323 = vld [vmem:[#allocation7 + $0x28] sm:$0xff]
    %v324 = vld [vmem:[#allocation7 + $0x30] sm:$0xff]
    %v325 = vld [vmem:[#allocation7 + $0x38] sm:$0xff]
    %v326 = vld [vmem:[#allocation7 + $0x40] sm:$0xff]
    %v327 = vld [vmem:[#allocation7 + $0x48] sm:$0xff]
    %v328 = vld [vmem:[#allocation7 + $0x50] sm:$0xff]
    %v329 = vld [vmem:[#allocation7 + $0x58] sm:$0xff]
    %v330 = vld [vmem:[#allocation7 + $0x60] sm:$0xff]
    %v331 = vld [vmem:[#allocation7 + $0x68] sm:$0xff]
    %v332 = vld [vmem:[#allocation7 + $0x70] sm:$0xff]
    %v333 = vld [vmem:[#allocation7 + $0x78] sm:$0xff]
    %v334 = vld [vmem:[#allocation7 + $0x80] sm:$0xff]
    %v335 = vld [vmem:[#allocation7 + $0x88] sm:$0xff]
    %v336 = vld [vmem:[#allocation7 + $0x90] sm:$0xff]
    %v337 = vld [vmem:[#allocation7 + $0x98] sm:$0xff]
    %v338 = vld [vmem:[#allocation7 + $0xa0] sm:$0xff]
    %v339 = vld [vmem:[#allocation7 + $0xa8] sm:$0xff]
    %v340 = vld [vmem:[#allocation7 + $0xb0] sm:$0xff]
    %v341 = vld [vmem:[#allocation7 + $0xb8] sm:$0xff]
    %v342 = vld [vmem:[#allocation7 + $0xc0] sm:$0xff]
    %v343 = vld [vmem:[#allocation7 + $0xc8] sm:$0xff]
    %v344 = vld [vmem:[#allocation7 + $0xd0] sm:$0xff]
    %v345 = vld [vmem:[#allocation7 + $0xd8] sm:$0xff]
    %v346 = vld [vmem:[#allocation7 + $0xe0] sm:$0xff]
    %v347 = vld [vmem:[#allocation7 + $0xe8] sm:$0xff]
    %v348 = vld [vmem:[#allocation7 + $0xf0] sm:$0xff]
    %v349 = vld [vmem:[#allocation7 + $0xf8] sm:$0xff]
    %v382 = vunpack.c.l.b16 %v318
    %v383 = vunpack.c.h.b16 %v318
    %v384 = vunpack.c.l.b16 %v319
    %v385 = vunpack.c.h.b16 %v319
    %v386 = vunpack.c.l.b16 %v320
    %v387 = vunpack.c.h.b16 %v320
    %v388 = vunpack.c.l.b16 %v321
    %v389 = vunpack.c.h.b16 %v321
    %v390 = vunpack.c.l.b16 %v322
    %v391 = vunpack.c.h.b16 %v322
    %v392 = vunpack.c.l.b16 %v323
    %v393 = vunpack.c.h.b16 %v323
    %v394 = vunpack.c.l.b16 %v324
    %v395 = vunpack.c.h.b16 %v324
    %v396 = vunpack.c.l.b16 %v325
    %v397 = vunpack.c.h.b16 %v325
    %v398 = vunpack.c.l.b16 %v326
    %v399 = vunpack.c.h.b16 %v326
    %v400 = vunpack.c.l.b16 %v327
    %v401 = vunpack.c.h.b16 %v327
    %v402 = vunpack.c.l.b16 %v328
    %v403 = vunpack.c.h.b16 %v328
    %v404 = vunpack.c.l.b16 %v329
    %v405 = vunpack.c.h.b16 %v329
    %v406 = vunpack.c.l.b16 %v330
    %v407 = vunpack.c.h.b16 %v330
    %v408 = vunpack.c.l.b16 %v331
    %v409 = vunpack.c.h.b16 %v331
    %v410 = vunpack.c.l.b16 %v332
    %v411 = vunpack.c.h.b16 %v332
    %v412 = vunpack.c.l.b16 %v333
    %v413 = vunpack.c.h.b16 %v333
    %v414 = vunpack.c.l.b16 %v334
    %v415 = vunpack.c.h.b16 %v334
    %v416 = vunpack.c.l.b16 %v335
    %v417 = vunpack.c.h.b16 %v335
    %v418 = vunpack.c.l.b16 %v336
    %v419 = vunpack.c.h.b16 %v336
    %v420 = vunpack.c.l.b16 %v337
    %v421 = vunpack.c.h.b16 %v337
    %v422 = vunpack.c.l.b16 %v338
    %v423 = vunpack.c.h.b16 %v338
    %v424 = vunpack.c.l.b16 %v339
    %v425 = vunpack.c.h.b16 %v339
    %v426 = vunpack.c.l.b16 %v340
    %v427 = vunpack.c.h.b16 %v340
    %v428 = vunpack.c.l.b16 %v341
    %v429 = vunpack.c.h.b16 %v341
    %v430 = vunpack.c.l.b16 %v342
    %v431 = vunpack.c.h.b16 %v342
    %v432 = vunpack.c.l.b16 %v343
    %v433 = vunpack.c.h.b16 %v343
    %v434 = vunpack.c.l.b16 %v344
    %v435 = vunpack.c.h.b16 %v344
    %v436 = vunpack.c.l.b16 %v345
    %v437 = vunpack.c.h.b16 %v345
    %v438 = vunpack.c.l.b16 %v346
    %v439 = vunpack.c.h.b16 %v346
    %v440 = vunpack.c.l.b16 %v347
    %v441 = vunpack.c.h.b16 %v347
    %v442 = vunpack.c.l.b16 %v348
    %v443 = vunpack.c.h.b16 %v348
    %v444 = vunpack.c.l.b16 %v349
    %v445 = vunpack.c.h.b16 %v349
    %v446 = vpack.c.b16 %v386, %v382
    %v447 = vpack.c.b16 %v387, %v383
    %v448 = vpack.c.b16 %v388, %v384
    %v449 = vpack.c.b16 %v389, %v385
    %v450 = vpack.c.b16 %v394, %v390
    %v451 = vpack.c.b16 %v395, %v391
    %v452 = vpack.c.b16 %v396, %v392
    %v453 = vpack.c.b16 %v397, %v393
    %v454 = vpack.c.b16 %v402, %v398
    %v455 = vpack.c.b16 %v403, %v399
    %v456 = vpack.c.b16 %v404, %v400
    %v457 = vpack.c.b16 %v405, %v401
    %v458 = vpack.c.b16 %v410, %v406
    %v459 = vpack.c.b16 %v411, %v407
    %v460 = vpack.c.b16 %v412, %v408
    %v461 = vpack.c.b16 %v413, %v409
    %v462 = vpack.c.b16 %v418, %v414
    %v463 = vpack.c.b16 %v419, %v415
    %v464 = vpack.c.b16 %v420, %v416
    %v465 = vpack.c.b16 %v421, %v417
    %v466 = vpack.c.b16 %v426, %v422
    %v467 = vpack.c.b16 %v427, %v423
    %v468 = vpack.c.b16 %v428, %v424
    %v469 = vpack.c.b16 %v429, %v425
    %v470 = vpack.c.b16 %v434, %v430
    %v471 = vpack.c.b16 %v435, %v431
    %v472 = vpack.c.b16 %v436, %v432
    %v473 = vpack.c.b16 %v437, %v433
    %v474 = vpack.c.b16 %v442, %v438
    %v475 = vpack.c.b16 %v443, %v439
    %v476 = vpack.c.b16 %v444, %v440
    %v477 = vpack.c.b16 %v445, %v441
    %510 = vmatprep.subr.bf16.mxu0 %v447
    %511 = vmatpush1.bf16.msra.mxu0 %v446
    %512 = vmatprep.subr.bf16.mxu0 %v451
    %513 = vmatpush1.bf16.msra.mxu0 %v450
    %514 = vmatprep.subr.bf16.mxu0 %v455
    %515 = vmatpush1.bf16.msra.mxu0 %v454
    %516 = vmatprep.subr.bf16.mxu0 %v459
    %517 = vmatpush1.bf16.msra.mxu0 %v458
    %518 = vmatprep.subr.bf16.mxu0 %v463
    %519 = vmatpush1.bf16.msra.mxu0 %v462
    %520 = vmatprep.subr.bf16.mxu0 %v467
    %521 = vmatpush1.bf16.msra.mxu0 %v466
    %522 = vmatprep.subr.bf16.mxu0 %v471
    %523 = vmatpush1.bf16.msra.mxu0 %v470
    %524 = vmatprep.subr.bf16.mxu0 %v475
    %525 = vmatpush1.bf16.msra.mxu0 %v474
    %526 = vmatprep.subr.bf16.mxu0 0
    %527 = vmatpush1.bf16.msra.mxu0 0
    %528 = vmatprep.subr.bf16.mxu0 0
    %529 = vmatpush1.bf16.msra.mxu0 0
    %530 = vmatprep.subr.bf16.mxu0 0
    %531 = vmatpush1.bf16.msra.mxu0 0
    %532 = vmatprep.subr.bf16.mxu0 0
    %533 = vmatpush1.bf16.msra.mxu0 0
    %534 = vmatprep.subr.bf16.mxu0 0
    %535 = vmatpush1.bf16.msra.mxu0 0
    %536 = vmatprep.subr.bf16.mxu0 0
    %537 = vmatpush1.bf16.msra.mxu0 0
    %538 = vmatprep.subr.bf16.mxu0 0
    %539 = vmatpush1.bf16.msra.mxu0 0
    %540 = vmatprep.subr.bf16.mxu0 0
    %541 = vmatpush1.bf16.msra.mxu0 0
    %542 = vmatprep.mubr.bf16.mxu0 0
    %543 = vmatmul.mubr.bf16.gmra.mrb[0].mxu0 0
    %v544 = vpop.f32.mrb[0].mxu0
    %v545 = vadd.f32 0.0, %v544
    %v546 = vpop.f32.mrb[0].mxu0
    %v547 = vadd.f32 0.0, %v546
    %v548 = vpop.f32.mrb[0].mxu0
    %v549 = vpop.f32.mrb[0].mxu0
    %550 = vdwg.mxu0
    %551 = vmatprep.subr.bf16.mxu0 %v449
    %552 = vmatpush1.bf16.msra.mxu0 %v448
    %553 = vmatprep.subr.bf16.mxu0 %v453
    %554 = vmatpush1.bf16.msra.mxu0 %v452
    %555 = vmatprep.subr.bf16.mxu0 %v457
    %556 = vmatpush1.bf16.msra.mxu0 %v456
    %557 = vmatprep.subr.bf16.mxu0 %v461
    %558 = vmatpush1.bf16.msra.mxu0 %v460
    %559 = vmatprep.subr.bf16.mxu0 %v465
    %560 = vmatpush1.bf16.msra.mxu0 %v464
    %561 = vmatprep.subr.bf16.mxu0 %v469
    %562 = vmatpush1.bf16.msra.mxu0 %v468
    %563 = vmatprep.subr.bf16.mxu0 %v473
    %564 = vmatpush1.bf16.msra.mxu0 %v472
    %565 = vmatprep.subr.bf16.mxu0 %v477
    %566 = vmatpush1.bf16.msra.mxu0 %v476
    %567 = vmatprep.subr.bf16.mxu0 0
    %568 = vmatpush1.bf16.msra.mxu0 0
    %569 = vmatprep.subr.bf16.mxu0 0
    %570 = vmatpush1.bf16.msra.mxu0 0
    %571 = vmatprep.subr.bf16.mxu0 0
    %572 = vmatpush1.bf16.msra.mxu0 0
    %573 = vmatprep.subr.bf16.mxu0 0
    %574 = vmatpush1.bf16.msra.mxu0 0
    %575 = vmatprep.subr.bf16.mxu0 0
    %576 = vmatpush1.bf16.msra.mxu0 0
    %577 = vmatprep.subr.bf16.mxu0 0
    %578 = vmatpush1.bf16.msra.mxu0 0
    %579 = vmatprep.subr.bf16.mxu0 0
    %580 = vmatpush1.bf16.msra.mxu0 0
    %581 = vmatprep.subr.bf16.mxu0 0
    %582 = vmatpush1.bf16.msra.mxu0 0
    %583 = vmatprep.mubr.bf16.mxu0 0
    %584 = vmatmul.mubr.bf16.gmra.mrb[0].mxu0 0
    %v585 = vpop.f32.mrb[0].mxu0
    %v586 = vadd.f32 0.0, %v585
    %v587 = vpop.f32.mrb[0].mxu0
    %v588 = vadd.f32 0.0, %v587
    %v589 = vpop.f32.mrb[0].mxu0
    %v590 = vpop.f32.mrb[0].mxu0
    %591 = vdwg.mxu0
    %v592 = vadd.f32 %v267, %v545
    %v593 = vadd.f32 %v269, %v547
    %v594 = vadd.f32 %v310, %v586
    %v595 = vadd.f32 %v312, %v588
    %v596 = vxor.u32 %v592, 2147483648
    %v597 = vmul.f32 %v596, 1.442695
    %v598 = vpow.pop %v597
    %v599 = vadd.f32 %v598, 1.0
    %v600 = vrcp.pop %v599
    %v601 = vmul.f32 1.0, %v600
    %v602 = vxor.u32 %v593, 2147483648
    %v603 = vmul.f32 %v602, 1.442695
    %v604 = vpow.pop %v603
    %v605 = vadd.f32 %v604, 1.0
    %v606 = vrcp.pop %v605
    %v607 = vmul.f32 1.0, %v606
    %v608 = vtanh.pop %v594
    %v609 = vxor.u32 %v595, 2147483648
    %v610 = vmul.f32 %v609, 1.442695
    %v611 = vpow.pop %v610
    %v612 = vadd.f32 %v611, 1.0
    %v613 = vrcp.pop %v612
    %v614 = vmul.f32 1.0, %v613
    %v615 = vmul.f32 %v607, 0.0
    %v616 = vmul.f32 %v601, %v608
    %v617 = vadd.f32 %v615, %v616
    %v618 = vtanh.pop %v617
    %v619 = vmul.f32 %v614, %v618
    %v622 = vunpack.c.l.s4 1966171168
    %v623 = vunpack.c.0.s8 %v622
    %v624 = vlaneseq
    %v625 = vshrl.u32 %v624, 7
    %v626 = vsub.s32 %v623, %v625
    %v627 = vrot.slane %v619, %v626
    %v628 = vcombine.high %v627, %v627
    %v630 = vunpack.c.l.s4 1966171168
    %v631 = vunpack.c.0.s8 %v630
    %v632 = vlaneseq
    %v633 = vshrl.u32 %v632, 7
    %v634 = vsub.s32 %v631, %v633
    %v635 = vrot.slane %v627, %v634
    %v637 = vunpack.c.l.s4 1966171168
    %v638 = vunpack.c.0.s8 %v637
    %v639 = vlaneseq
    %v640 = vshrl.u32 %v639, 7
    %v641 = vsub.s32 %v638, %v640
    %v642 = vrot.slane %v628, %v641
    %vm645 = vcmask 516096
    %646 = vst.msk [vmem:[#allocation13] sm:$0x1] %vm645, %v635
    %647 = vst.msk [vmem:[#allocation13 + $0x8] sm:$0x1] %vm645, %v642
    %vm648 = vcmask 1040896
    %649 = vst.msk [vmem:[#allocation13 + $0x7] sm:$0x1] %vm648, %v635
    %650 = vst.msk [vmem:[#allocation13 + $0xf] sm:$0x1] %vm648, %v642
    %v651 = vpack.c.bf16 %v619, %v619
    %652 = vmatprep.subr.bf16.mxu0 %v447
    %653 = vmatpush1.bf16.msra.mxu0 %v446
    %654 = vmatprep.subr.bf16.mxu0 %v451
    %655 = vmatpush1.bf16.msra.mxu0 %v450
    %656 = vmatprep.subr.bf16.mxu0 %v455
    %657 = vmatpush1.bf16.msra.mxu0 %v454
    %658 = vmatprep.subr.bf16.mxu0 %v459
    %659 = vmatpush1.bf16.msra.mxu0 %v458
    %660 = vmatprep.subr.bf16.mxu0 %v463
    %661 = vmatpush1.bf16.msra.mxu0 %v462
    %662 = vmatprep.subr.bf16.mxu0 %v467
    %663 = vmatpush1.bf16.msra.mxu0 %v466
    %664 = vmatprep.subr.bf16.mxu0 %v471
    %665 = vmatpush1.bf16.msra.mxu0 %v470
    %666 = vmatprep.subr.bf16.mxu0 %v475
    %667 = vmatpush1.bf16.msra.mxu0 %v474
    %668 = vmatprep.subr.bf16.mxu0 0
    %669 = vmatpush1.bf16.msra.mxu0 0
    %670 = vmatprep.subr.bf16.mxu0 0
    %671 = vmatpush1.bf16.msra.mxu0 0
    %672 = vmatprep.subr.bf16.mxu0 0
    %673 = vmatpush1.bf16.msra.mxu0 0
    %674 = vmatprep.subr.bf16.mxu0 0
    %675 = vmatpush1.bf16.msra.mxu0 0
    %676 = vmatprep.subr.bf16.mxu0 0
    %677 = vmatpush1.bf16.msra.mxu0 0
    %678 = vmatprep.subr.bf16.mxu0 0
    %679 = vmatpush1.bf16.msra.mxu0 0
    %680 = vmatprep.subr.bf16.mxu0 0
    %681 = vmatpush1.bf16.msra.mxu0 0
    %682 = vmatprep.subr.bf16.mxu0 0
    %683 = vmatpush1.bf16.msra.mxu0 0
    %684 = vmatprep.mubr.bf16.mxu0 0
    %685 = vmatmul.mubr.bf16.gmra.mrb[0].mxu0 %v651
    %v686 = vpop.f32.mrb[0].mxu0
    %v687 = vadd.f32 0.0, %v686
    %v688 = vpop.f32.mrb[0].mxu0
    %v689 = vadd.f32 0.0, %v688
    %v690 = vpop.f32.mrb[0].mxu0
    %v691 = vpop.f32.mrb[0].mxu0
    %692 = vdwg.mxu0
    %693 = vmatprep.subr.bf16.mxu0 %v449
    %694 = vmatpush1.bf16.msra.mxu0 %v448
    %695 = vmatprep.subr.bf16.mxu0 %v453
    %696 = vmatpush1.bf16.msra.mxu0 %v452
    %697 = vmatprep.subr.bf16.mxu0 %v457
    %698 = vmatpush1.bf16.msra.mxu0 %v456
    %699 = vmatprep.subr.bf16.mxu0 %v461
    %700 = vmatpush1.bf16.msra.mxu0 %v460
    %701 = vmatprep.subr.bf16.mxu0 %v465
    %702 = vmatpush1.bf16.msra.mxu0 %v464
    %703 = vmatprep.subr.bf16.mxu0 %v469
    %704 = vmatpush1.bf16.msra.mxu0 %v468
    %705 = vmatprep.subr.bf16.mxu0 %v473
    %706 = vmatpush1.bf16.msra.mxu0 %v472
    %707 = vmatprep.subr.bf16.mxu0 %v477
    %708 = vmatpush1.bf16.msra.mxu0 %v476
    %709 = vmatprep.subr.bf16.mxu0 0
    %710 = vmatpush1.bf16.msra.mxu0 0
    %711 = vmatprep.subr.bf16.mxu0 0
    %712 = vmatpush1.bf16.msra.mxu0 0
    %713 = vmatprep.subr.bf16.mxu0 0
    %714 = vmatpush1.bf16.msra.mxu0 0
    %715 = vmatprep.subr.bf16.mxu0 0
    %716 = vmatpush1.bf16.msra.mxu0 0
    %717 = vmatprep.subr.bf16.mxu0 0
    %718 = vmatpush1.bf16.msra.mxu0 0
    %719 = vmatprep.subr.bf16.mxu0 0
    %720 = vmatpush1.bf16.msra.mxu0 0
    %721 = vmatprep.subr.bf16.mxu0 0
    %722 = vmatpush1.bf16.msra.mxu0 0
    %723 = vmatprep.subr.bf16.mxu0 0
    %724 = vmatpush1.bf16.msra.mxu0 0
    %725 = vmatprep.mubr.bf16.mxu0 0
    %726 = vmatmul.mubr.bf16.gmra.mrb[0].mxu0 %v651
    %v727 = vpop.f32.mrb[0].mxu0
    %v728 = vadd.f32 0.0, %v727
    %v729 = vpop.f32.mrb[0].mxu0
    %v730 = vadd.f32 0.0, %v729
    %v731 = vpop.f32.mrb[0].mxu0
    %v732 = vpop.f32.mrb[0].mxu0
    %733 = vdwg.mxu0
    %v738 = vrot.slane %v687, 6
    %v739 = vrot.slane %v689, 6
    %v740 = vrot.slane %v728, 6
    %v741 = vrot.slane %v730, 6
    %v746 = vadd.f32 %v267, %v738
    %v747 = vadd.f32 %v269, %v739
    %v748 = vadd.f32 %v310, %v740
    %v749 = vadd.f32 %v312, %v741
    %v750 = vxor.u32 %v746, 2147483648
    %v751 = vmul.f32 %v750, 1.442695
    %v752 = vpow.pop %v751
    %v753 = vadd.f32 %v752, 1.0
    %v754 = vrcp.pop %v753
    %v755 = vmul.f32 1.0, %v754
    %v756 = vxor.u32 %v747, 2147483648
    %v757 = vmul.f32 %v756, 1.442695
    %v758 = vpow.pop %v757
    %v759 = vadd.f32 %v758, 1.0
    %v760 = vrcp.pop %v759
    %v761 = vmul.f32 1.0, %v760
    %v762 = vtanh.pop %v748
    %v763 = vxor.u32 %v749, 2147483648
    %v764 = vmul.f32 %v763, 1.442695
    %v765 = vpow.pop %v764
    %v766 = vadd.f32 %v765, 1.0
    %v767 = vrcp.pop %v766
    %v768 = vmul.f32 1.0, %v767
    %v770 = vrot.slane %v617, 6
    %v772 = vmul.f32 %v761, %v770
    %v773 = vmul.f32 %v755, %v762
    %v774 = vadd.f32 %v772, %v773
    %v775 = vtanh.pop %v774
    %v776 = vmul.f32 %v768, %v775
    %v779 = vunpack.c.l.s4 1966171168
    %v780 = vunpack.c.0.s8 %v779
    %v781 = vlaneseq
    %v782 = vshrl.u32 %v781, 7
    %v783 = vsub.s32 %v780, %v782
    %v784 = vrot.slane %v776, %v783
    %v785 = vcombine.high %v784, %v784
    %v787 = vunpack.c.l.s4 1966171168
    %v788 = vunpack.c.0.s8 %v787
    %v789 = vlaneseq
    %v790 = vshrl.u32 %v789, 7
    %v791 = vsub.s32 %v788, %v790
    %v792 = vrot.slane %v784, %v791
    %v794 = vunpack.c.l.s4 1966171168
    %v795 = vunpack.c.0.s8 %v794
    %v796 = vlaneseq
    %v797 = vshrl.u32 %v796, 7
    %v798 = vsub.s32 %v795, %v797
    %v799 = vrot.slane %v785, %v798
    %v800 = vcombine.high %v792, %v792
    %v801 = vcombine.high %v799, %v799
    %804 = vst.msk [vmem:[#allocation13 + $0x1] sm:$0x1] %vm645, %v800
    %805 = vst.msk [vmem:[#allocation13 + $0x9] sm:$0x1] %vm645, %v801
    %806 = vst.msk [vmem:[#allocation13 + $0x6] sm:$0x1] %vm648, %v800
    %807 = vst.msk [vmem:[#allocation13 + $0xe] sm:$0x1] %vm648, %v801
    %v808 = vpack.c.bf16 %v776, %v776
    %v810 = vrot.slane %v808, 1
    %812 = vmatprep.subr.bf16.mxu0 %v447
    %813 = vmatpush1.bf16.msra.mxu0 %v446
    %814 = vmatprep.subr.bf16.mxu0 %v451
    %815 = vmatpush1.bf16.msra.mxu0 %v450
    %816 = vmatprep.subr.bf16.mxu0 %v455
    %817 = vmatpush1.bf16.msra.mxu0 %v454
    %818 = vmatprep.subr.bf16.mxu0 %v459
    %819 = vmatpush1.bf16.msra.mxu0 %v458
    %820 = vmatprep.subr.bf16.mxu0 %v463
    %821 = vmatpush1.bf16.msra.mxu0 %v462
    %822 = vmatprep.subr.bf16.mxu0 %v467
    %823 = vmatpush1.bf16.msra.mxu0 %v466
    %824 = vmatprep.subr.bf16.mxu0 %v471
    %825 = vmatpush1.bf16.msra.mxu0 %v470
    %826 = vmatprep.subr.bf16.mxu0 %v475
    %827 = vmatpush1.bf16.msra.mxu0 %v474
    %828 = vmatprep.subr.bf16.mxu0 0
    %829 = vmatpush1.bf16.msra.mxu0 0
    %830 = vmatprep.subr.bf16.mxu0 0
    %831 = vmatpush1.bf16.msra.mxu0 0
    %832 = vmatprep.subr.bf16.mxu0 0
    %833 = vmatpush1.bf16.msra.mxu0 0
    %834 = vmatprep.subr.bf16.mxu0 0
    %835 = vmatpush1.bf16.msra.mxu0 0
    %836 = vmatprep.subr.bf16.mxu0 0
    %837 = vmatpush1.bf16.msra.mxu0 0
    %838 = vmatprep.subr.bf16.mxu0 0
    %839 = vmatpush1.bf16.msra.mxu0 0
    %840 = vmatprep.subr.bf16.mxu0 0
    %841 = vmatpush1.bf16.msra.mxu0 0
    %842 = vmatprep.subr.bf16.mxu0 0
    %843 = vmatpush1.bf16.msra.mxu0 0
    %844 = vmatprep.mubr.bf16.mxu0 0
    %845 = vmatmul.mubr.bf16.gmra.mrb[0].mxu0 %v810
    %v846 = vpop.f32.mrb[0].mxu0
    %v847 = vadd.f32 0.0, %v846
    %v848 = vpop.f32.mrb[0].mxu0
    %v849 = vadd.f32 0.0, %v848
    %v850 = vpop.f32.mrb[0].mxu0
    %v851 = vpop.f32.mrb[0].mxu0
    %852 = vdwg.mxu0
    %853 = vmatprep.subr.bf16.mxu0 %v449
    %854 = vmatpush1.bf16.msra.mxu0 %v448
    %855 = vmatprep.subr.bf16.mxu0 %v453
    %856 = vmatpush1.bf16.msra.mxu0 %v452
    %857 = vmatprep.subr.bf16.mxu0 %v457
    %858 = vmatpush1.bf16.msra.mxu0 %v456
    %859 = vmatprep.subr.bf16.mxu0 %v461
    %860 = vmatpush1.bf16.msra.mxu0 %v460
    %861 = vmatprep.subr.bf16.mxu0 %v465
    %862 = vmatpush1.bf16.msra.mxu0 %v464
    %863 = vmatprep.subr.bf16.mxu0 %v469
    %864 = vmatpush1.bf16.msra.mxu0 %v468
    %865 = vmatprep.subr.bf16.mxu0 %v473
    %866 = vmatpush1.bf16.msra.mxu0 %v472
    %867 = vmatprep.subr.bf16.mxu0 %v477
    %868 = vmatpush1.bf16.msra.mxu0 %v476
    %869 = vmatprep.subr.bf16.mxu0 0
    %870 = vmatpush1.bf16.msra.mxu0 0
    %871 = vmatprep.subr.bf16.mxu0 0
    %872 = vmatpush1.bf16.msra.mxu0 0
    %873 = vmatprep.subr.bf16.mxu0 0
    %874 = vmatpush1.bf16.msra.mxu0 0
    %875 = vmatprep.subr.bf16.mxu0 0
    %876 = vmatpush1.bf16.msra.mxu0 0
    %877 = vmatprep.subr.bf16.mxu0 0
    %878 = vmatpush1.bf16.msra.mxu0 0
    %879 = vmatprep.subr.bf16.mxu0 0
    %880 = vmatpush1.bf16.msra.mxu0 0
    %881 = vmatprep.subr.bf16.mxu0 0
    %882 = vmatpush1.bf16.msra.mxu0 0
    %883 = vmatprep.subr.bf16.mxu0 0
    %884 = vmatpush1.bf16.msra.mxu0 0
    %885 = vmatprep.mubr.bf16.mxu0 0
    %886 = vmatmul.mubr.bf16.gmra.mrb[0].mxu0 %v810
    %v887 = vpop.f32.mrb[0].mxu0
    %v888 = vadd.f32 0.0, %v887
    %v889 = vpop.f32.mrb[0].mxu0
    %v890 = vadd.f32 0.0, %v889
    %v891 = vpop.f32.mrb[0].mxu0
    %v892 = vpop.f32.mrb[0].mxu0
    %893 = vdwg.mxu0
    %v898 = vrot.slane %v847, 4
    %v899 = vrot.slane %v849, 4
    %v900 = vrot.slane %v888, 4
    %v901 = vrot.slane %v890, 4
    %v906 = vadd.f32 %v267, %v898
    %v907 = vadd.f32 %v269, %v899
    %v908 = vadd.f32 %v310, %v900
    %v909 = vadd.f32 %v312, %v901
    %v910 = vxor.u32 %v906, 2147483648
    %v911 = vmul.f32 %v910, 1.442695
    %v912 = vpow.pop %v911
    %v913 = vadd.f32 %v912, 1.0
    %v914 = vrcp.pop %v913
    %v915 = vmul.f32 1.0, %v914
    %v916 = vxor.u32 %v907, 2147483648
    %v917 = vmul.f32 %v916, 1.442695
    %v918 = vpow.pop %v917
    %v919 = vadd.f32 %v918, 1.0
    %v920 = vrcp.pop %v919
    %v921 = vmul.f32 1.0, %v920
    %v922 = vtanh.pop %v908
    %v923 = vxor.u32 %v909, 2147483648
    %v924 = vmul.f32 %v923, 1.442695
    %v925 = vpow.pop %v924
    %v926 = vadd.f32 %v925, 1.0
    %v927 = vrcp.pop %v926
    %v928 = vmul.f32 1.0, %v927
    %v930 = vrot.slane %v774, 6
    %v932 = vmul.f32 %v921, %v930
    %v933 = vmul.f32 %v915, %v922
    %v934 = vadd.f32 %v932, %v933
    %v935 = vtanh.pop %v934
    %v936 = vmul.f32 %v928, %v935
    %v938 = vcombine.high %v936, %v936
    %v940 = vunpack.c.l.s4 1966171168
    %v941 = vunpack.c.0.s8 %v940
    %v942 = vlaneseq
    %v943 = vshrl.u32 %v942, 7
    %v944 = vsub.s32 %v941, %v943
    %v945 = vrot.slane %v938, %v944
    %v946 = vcombine.high %v945, %v945
    %v948 = vunpack.c.l.s4 1966171168
    %v949 = vunpack.c.0.s8 %v948
    %v950 = vlaneseq
    %v951 = vshrl.u32 %v950, 7
    %v952 = vsub.s32 %v949, %v951
    %v953 = vrot.slane %v945, %v952
    %v955 = vunpack.c.l.s4 1966171168
    %v956 = vunpack.c.0.s8 %v955
    %v957 = vlaneseq
    %v958 = vshrl.u32 %v957, 7
    %v959 = vsub.s32 %v956, %v958
    %v960 = vrot.slane %v946, %v959
    %963 = vst.msk [vmem:[#allocation13 + $0x2] sm:$0x1] %vm645, %v953
    %964 = vst.msk [vmem:[#allocation13 + $0xa] sm:$0x1] %vm645, %v960
    %965 = vst.msk [vmem:[#allocation13 + $0x5] sm:$0x1] %vm648, %v953
    %966 = vst.msk [vmem:[#allocation13 + $0xd] sm:$0x1] %vm648, %v960
    %v967 = vpack.c.bf16 %v936, %v936
    %v969 = vrot.slane %v967, 2
    %971 = vmatprep.subr.bf16.mxu0 %v447
    %972 = vmatpush1.bf16.msra.mxu0 %v446
    %973 = vmatprep.subr.bf16.mxu0 %v451
    %974 = vmatpush1.bf16.msra.mxu0 %v450
    %975 = vmatprep.subr.bf16.mxu0 %v455
    %976 = vmatpush1.bf16.msra.mxu0 %v454
    %977 = vmatprep.subr.bf16.mxu0 %v459
    %978 = vmatpush1.bf16.msra.mxu0 %v458
    %979 = vmatprep.subr.bf16.mxu0 %v463
    %980 = vmatpush1.bf16.msra.mxu0 %v462
    %981 = vmatprep.subr.bf16.mxu0 %v467
    %982 = vmatpush1.bf16.msra.mxu0 %v466
    %983 = vmatprep.subr.bf16.mxu0 %v471
    %984 = vmatpush1.bf16.msra.mxu0 %v470
    %985 = vmatprep.subr.bf16.mxu0 %v475
    %986 = vmatpush1.bf16.msra.mxu0 %v474
    %987 = vmatprep.subr.bf16.mxu0 0
    %988 = vmatpush1.bf16.msra.mxu0 0
    %989 = vmatprep.subr.bf16.mxu0 0
    %990 = vmatpush1.bf16.msra.mxu0 0
    %991 = vmatprep.subr.bf16.mxu0 0
    %992 = vmatpush1.bf16.msra.mxu0 0
    %993 = vmatprep.subr.bf16.mxu0 0
    %994 = vmatpush1.bf16.msra.mxu0 0
    %995 = vmatprep.subr.bf16.mxu0 0
    %996 = vmatpush1.bf16.msra.mxu0 0
    %997 = vmatprep.subr.bf16.mxu0 0
    %998 = vmatpush1.bf16.msra.mxu0 0
    %999 = vmatprep.subr.bf16.mxu0 0
    %1000 = vmatpush1.bf16.msra.mxu0 0
    %1001 = vmatprep.subr.bf16.mxu0 0
    %1002 = vmatpush1.bf16.msra.mxu0 0
    %1003 = vmatprep.mubr.bf16.mxu0 0
    %1004 = vmatmul.mubr.bf16.gmra.mrb[0].mxu0 %v969
    %v1005 = vpop.f32.mrb[0].mxu0
    %v1006 = vadd.f32 0.0, %v1005
    %v1007 = vpop.f32.mrb[0].mxu0
    %v1008 = vadd.f32 0.0, %v1007
    %v1009 = vpop.f32.mrb[0].mxu0
    %v1010 = vpop.f32.mrb[0].mxu0
    %1011 = vdwg.mxu0
    %1012 = vmatprep.subr.bf16.mxu0 %v449
    %1013 = vmatpush1.bf16.msra.mxu0 %v448
    %1014 = vmatprep.subr.bf16.mxu0 %v453
    %1015 = vmatpush1.bf16.msra.mxu0 %v452
    %1016 = vmatprep.subr.bf16.mxu0 %v457
    %1017 = vmatpush1.bf16.msra.mxu0 %v456
    %1018 = vmatprep.subr.bf16.mxu0 %v461
    %1019 = vmatpush1.bf16.msra.mxu0 %v460
    %1020 = vmatprep.subr.bf16.mxu0 %v465
    %1021 = vmatpush1.bf16.msra.mxu0 %v464
    %1022 = vmatprep.subr.bf16.mxu0 %v469
    %1023 = vmatpush1.bf16.msra.mxu0 %v468
    %1024 = vmatprep.subr.bf16.mxu0 %v473
    %1025 = vmatpush1.bf16.msra.mxu0 %v472
    %1026 = vmatprep.subr.bf16.mxu0 %v477
    %1027 = vmatpush1.bf16.msra.mxu0 %v476
    %1028 = vmatprep.subr.bf16.mxu0 0
    %1029 = vmatpush1.bf16.msra.mxu0 0
    %1030 = vmatprep.subr.bf16.mxu0 0
    %1031 = vmatpush1.bf16.msra.mxu0 0
    %1032 = vmatprep.subr.bf16.mxu0 0
    %1033 = vmatpush1.bf16.msra.mxu0 0
    %1034 = vmatprep.subr.bf16.mxu0 0
    %1035 = vmatpush1.bf16.msra.mxu0 0
    %1036 = vmatprep.subr.bf16.mxu0 0
    %1037 = vmatpush1.bf16.msra.mxu0 0
    %1038 = vmatprep.subr.bf16.mxu0 0
    %1039 = vmatpush1.bf16.msra.mxu0 0
    %1040 = vmatprep.subr.bf16.mxu0 0
    %1041 = vmatpush1.bf16.msra.mxu0 0
    %1042 = vmatprep.subr.bf16.mxu0 0
    %1043 = vmatpush1.bf16.msra.mxu0 0
    %1044 = vmatprep.mubr.bf16.mxu0 0
    %1045 = vmatmul.mubr.bf16.gmra.mrb[0].mxu0 %v969
    %v1046 = vpop.f32.mrb[0].mxu0
    %v1047 = vadd.f32 0.0, %v1046
    %v1048 = vpop.f32.mrb[0].mxu0
    %v1049 = vadd.f32 0.0, %v1048
    %v1050 = vpop.f32.mrb[0].mxu0
    %v1051 = vpop.f32.mrb[0].mxu0
    %1052 = vdwg.mxu0
    %v1057 = vrot.slane %v1006, 2
    %v1058 = vrot.slane %v1008, 2
    %v1059 = vrot.slane %v1047, 2
    %v1060 = vrot.slane %v1049, 2
    %v1065 = vadd.f32 %v267, %v1057
    %v1066 = vadd.f32 %v269, %v1058
    %v1067 = vadd.f32 %v310, %v1059
    %v1068 = vadd.f32 %v312, %v1060
    %v1069 = vxor.u32 %v1065, 2147483648
    %v1070 = vmul.f32 %v1069, 1.442695
    %v1071 = vpow.pop %v1070
    %v1072 = vadd.f32 %v1071, 1.0
    %v1073 = vrcp.pop %v1072
    %v1074 = vmul.f32 1.0, %v1073
    %v1075 = vxor.u32 %v1066, 2147483648
    %v1076 = vmul.f32 %v1075, 1.442695
    %v1077 = vpow.pop %v1076
    %v1078 = vadd.f32 %v1077, 1.0
    %v1079 = vrcp.pop %v1078
    %v1080 = vmul.f32 1.0, %v1079
    %v1081 = vtanh.pop %v1067
    %v1082 = vxor.u32 %v1068, 2147483648
    %v1083 = vmul.f32 %v1082, 1.442695
    %v1084 = vpow.pop %v1083
    %v1085 = vadd.f32 %v1084, 1.0
    %v1086 = vrcp.pop %v1085
    %v1087 = vmul.f32 1.0, %v1086
    %v1089 = vrot.slane %v934, 6
    %v1091 = vmul.f32 %v1080, %v1089
    %v1092 = vmul.f32 %v1074, %v1081
    %v1093 = vadd.f32 %v1091, %v1092
    %v1094 = vtanh.pop %v1093
    %v1095 = vmul.f32 %v1087, %v1094
    %v1097 = vcombine.high %v1095, %v1095
    %v1099 = vunpack.c.l.s4 1966171168
    %v1100 = vunpack.c.0.s8 %v1099
    %v1101 = vlaneseq
    %v1102 = vshrl.u32 %v1101, 7
    %v1103 = vsub.s32 %v1100, %v1102
    %v1104 = vrot.slane %v1097, %v1103
    %v1105 = vcombine.high %v1104, %v1104
    %v1107 = vunpack.c.l.s4 1966171168
    %v1108 = vunpack.c.0.s8 %v1107
    %v1109 = vlaneseq
    %v1110 = vshrl.u32 %v1109, 7
    %v1111 = vsub.s32 %v1108, %v1110
    %v1112 = vrot.slane %v1104, %v1111
    %v1114 = vunpack.c.l.s4 1966171168
    %v1115 = vunpack.c.0.s8 %v1114
    %v1116 = vlaneseq
    %v1117 = vshrl.u32 %v1116, 7
    %v1118 = vsub.s32 %v1115, %v1117
    %v1119 = vrot.slane %v1105, %v1118
    %v1120 = vcombine.high %v1112, %v1112
    %v1121 = vcombine.high %v1119, %v1119
    %1124 = vst.msk [vmem:[#allocation13 + $0x3] sm:$0x1] %vm645, %v1120
    %1125 = vst.msk [vmem:[#allocation13 + $0xb] sm:$0x1] %vm645, %v1121
    %1126 = vst.msk [vmem:[#allocation13 + $0x4] sm:$0x1] %vm648, %v1120
    %1127 = vst.msk [vmem:[#allocation13 + $0xc] sm:$0x1] %vm648, %v1121
    %v1128 = vpack.c.bf16 %v1095, %v1095
    %v1130 = vrot.slane %v1128, 3
    %1132 = vmatprep.subr.bf16.mxu0 %v447
    %1133 = vmatpush1.bf16.msra.mxu0 %v446
    %1134 = vmatprep.subr.bf16.mxu0 %v451
    %1135 = vmatpush1.bf16.msra.mxu0 %v450
    %1136 = vmatprep.subr.bf16.mxu0 %v455
    %1137 = vmatpush1.bf16.msra.mxu0 %v454
    %1138 = vmatprep.subr.bf16.mxu0 %v459
    %1139 = vmatpush1.bf16.msra.mxu0 %v458
    %1140 = vmatprep.subr.bf16.mxu0 %v463
    %1141 = vmatpush1.bf16.msra.mxu0 %v462
    %1142 = vmatprep.subr.bf16.mxu0 %v467
    %1143 = vmatpush1.bf16.msra.mxu0 %v466
    %1144 = vmatprep.subr.bf16.mxu0 %v471
    %1145 = vmatpush1.bf16.msra.mxu0 %v470
    %1146 = vmatprep.subr.bf16.mxu0 %v475
    %1147 = vmatpush1.bf16.msra.mxu0 %v474
    %1148 = vmatprep.subr.bf16.mxu0 0
    %1149 = vmatpush1.bf16.msra.mxu0 0
    %1150 = vmatprep.subr.bf16.mxu0 0
    %1151 = vmatpush1.bf16.msra.mxu0 0
    %1152 = vmatprep.subr.bf16.mxu0 0
    %1153 = vmatpush1.bf16.msra.mxu0 0
    %1154 = vmatprep.subr.bf16.mxu0 0
    %1155 = vmatpush1.bf16.msra.mxu0 0
    %1156 = vmatprep.subr.bf16.mxu0 0
    %1157 = vmatpush1.bf16.msra.mxu0 0
    %1158 = vmatprep.subr.bf16.mxu0 0
    %1159 = vmatpush1.bf16.msra.mxu0 0
    %1160 = vmatprep.subr.bf16.mxu0 0
    %1161 = vmatpush1.bf16.msra.mxu0 0
    %1162 = vmatprep.subr.bf16.mxu0 0
    %1163 = vmatpush1.bf16.msra.mxu0 0
    %1164 = vmatprep.mubr.bf16.mxu0 0
    %1165 = vmatmul.mubr.bf16.gmra.mrb[0].mxu0 %v1130
    %v1166 = vpop.f32.mrb[0].mxu0
    %v1167 = vadd.f32 0.0, %v1166
    %v1168 = vpop.f32.mrb[0].mxu0
    %v1169 = vadd.f32 0.0, %v1168
    %v1170 = vpop.f32.mrb[0].mxu0
    %v1171 = vpop.f32.mrb[0].mxu0
    %1172 = vdwg.mxu0
    %1173 = vmatprep.subr.bf16.mxu0 %v449
    %1174 = vmatpush1.bf16.msra.mxu0 %v448
    %1175 = vmatprep.subr.bf16.mxu0 %v453
    %1176 = vmatpush1.bf16.msra.mxu0 %v452
    %1177 = vmatprep.subr.bf16.mxu0 %v457
    %1178 = vmatpush1.bf16.msra.mxu0 %v456
    %1179 = vmatprep.subr.bf16.mxu0 %v461
    %1180 = vmatpush1.bf16.msra.mxu0 %v460
    %1181 = vmatprep.subr.bf16.mxu0 %v465
    %1182 = vmatpush1.bf16.msra.mxu0 %v464
    %1183 = vmatprep.subr.bf16.mxu0 %v469
    %1184 = vmatpush1.bf16.msra.mxu0 %v468
    %1185 = vmatprep.subr.bf16.mxu0 %v473
    %1186 = vmatpush1.bf16.msra.mxu0 %v472
    %1187 = vmatprep.subr.bf16.mxu0 %v477
    %1188 = vmatpush1.bf16.msra.mxu0 %v476
    %1189 = vmatprep.subr.bf16.mxu0 0
    %1190 = vmatpush1.bf16.msra.mxu0 0
    %1191 = vmatprep.subr.bf16.mxu0 0
    %1192 = vmatpush1.bf16.msra.mxu0 0
    %1193 = vmatprep.subr.bf16.mxu0 0
    %1194 = vmatpush1.bf16.msra.mxu0 0
    %1195 = vmatprep.subr.bf16.mxu0 0
    %1196 = vmatpush1.bf16.msra.mxu0 0
    %1197 = vmatprep.subr.bf16.mxu0 0
    %1198 = vmatpush1.bf16.msra.mxu0 0
    %1199 = vmatprep.subr.bf16.mxu0 0
    %1200 = vmatpush1.bf16.msra.mxu0 0
    %1201 = vmatprep.subr.bf16.mxu0 0
    %1202 = vmatpush1.bf16.msra.mxu0 0
    %1203 = vmatprep.subr.bf16.mxu0 0
    %1204 = vmatpush1.bf16.msra.mxu0 0
    %1205 = vmatprep.mubr.bf16.mxu0 0
    %1206 = vmatmul.mubr.bf16.gmra.mrb[0].mxu0 %v1130
    %v1207 = vpop.f32.mrb[0].mxu0
    %v1208 = vadd.f32 0.0, %v1207
    %v1209 = vpop.f32.mrb[0].mxu0
    %v1210 = vadd.f32 0.0, %v1209
    %v1211 = vpop.f32.mrb[0].mxu0
    %v1212 = vpop.f32.mrb[0].mxu0
    %1213 = vdwg.mxu0
    %v1214 = vadd.f32 %v271, %v1167
    %v1215 = vadd.f32 %v273, %v1169
    %v1216 = vadd.f32 %v314, %v1208
    %v1217 = vadd.f32 %v316, %v1210
    %v1218 = vxor.u32 %v1214, 2147483648
    %v1219 = vmul.f32 %v1218, 1.442695
    %v1220 = vpow.pop %v1219
    %v1221 = vadd.f32 %v1220, 1.0
    %v1222 = vrcp.pop %v1221
    %v1223 = vmul.f32 1.0, %v1222
    %v1224 = vxor.u32 %v1215, 2147483648
    %v1225 = vmul.f32 %v1224, 1.442695
    %v1226 = vpow.pop %v1225
    %v1227 = vadd.f32 %v1226, 1.0
    %v1228 = vrcp.pop %v1227
    %v1229 = vmul.f32 1.0, %v1228
    %v1230 = vtanh.pop %v1216
    %v1231 = vxor.u32 %v1217, 2147483648
    %v1232 = vmul.f32 %v1231, 1.442695
    %v1233 = vpow.pop %v1232
    %v1234 = vadd.f32 %v1233, 1.0
    %v1235 = vrcp.pop %v1234
    %v1236 = vmul.f32 1.0, %v1235
    %v1238 = vrot.slane %v1093, 6
    %v1240 = vmul.f32 %v1229, %v1238
    %v1241 = vmul.f32 %v1223, %v1230
    %v1242 = vadd.f32 %v1240, %v1241
    %v1243 = vtanh.pop %v1242
    %v1244 = vmul.f32 %v1236, %v1243
    %v1247 = vunpack.c.l.s4 1966171168
    %v1248 = vunpack.c.0.s8 %v1247
    %v1249 = vlaneseq
    %v1250 = vshrl.u32 %v1249, 7
    %v1251 = vsub.s32 %v1248, %v1250
    %v1252 = vrot.slane %v1244, %v1251
    %v1253 = vcombine.high %v1252, %v1252
    %v1255 = vunpack.c.l.s4 1966171168
    %v1256 = vunpack.c.0.s8 %v1255
    %v1257 = vlaneseq
    %v1258 = vshrl.u32 %v1257, 7
    %v1259 = vsub.s32 %v1256, %v1258
    %v1260 = vrot.slane %v1252, %v1259
    %v1262 = vunpack.c.l.s4 1966171168
    %v1263 = vunpack.c.0.s8 %v1262
    %v1264 = vlaneseq
    %v1265 = vshrl.u32 %v1264, 7
    %v1266 = vsub.s32 %v1263, %v1265
    %v1267 = vrot.slane %v1253, %v1266
    %1270 = vst.msk [vmem:[#allocation13 + $0x4] sm:$0x1] %vm645, %v1260
    %1271 = vst.msk [vmem:[#allocation13 + $0xc] sm:$0x1] %vm645, %v1267
    %1272 = vst.msk [vmem:[#allocation13 + $0x3] sm:$0x1] %vm648, %v1260
    %1273 = vst.msk [vmem:[#allocation13 + $0xb] sm:$0x1] %vm648, %v1267
    %v1274 = vpack.c.bf16 %v1244, %v1244
    %1275 = vmatprep.subr.bf16.mxu0 %v447
    %1276 = vmatpush1.bf16.msra.mxu0 %v446
    %1277 = vmatprep.subr.bf16.mxu0 %v451
    %1278 = vmatpush1.bf16.msra.mxu0 %v450
    %1279 = vmatprep.subr.bf16.mxu0 %v455
    %1280 = vmatpush1.bf16.msra.mxu0 %v454
    %1281 = vmatprep.subr.bf16.mxu0 %v459
    %1282 = vmatpush1.bf16.msra.mxu0 %v458
    %1283 = vmatprep.subr.bf16.mxu0 %v463
    %1284 = vmatpush1.bf16.msra.mxu0 %v462
    %1285 = vmatprep.subr.bf16.mxu0 %v467
    %1286 = vmatpush1.bf16.msra.mxu0 %v466
    %1287 = vmatprep.subr.bf16.mxu0 %v471
    %1288 = vmatpush1.bf16.msra.mxu0 %v470
    %1289 = vmatprep.subr.bf16.mxu0 %v475
    %1290 = vmatpush1.bf16.msra.mxu0 %v474
    %1291 = vmatprep.subr.bf16.mxu0 0
    %1292 = vmatpush1.bf16.msra.mxu0 0
    %1293 = vmatprep.subr.bf16.mxu0 0
    %1294 = vmatpush1.bf16.msra.mxu0 0
    %1295 = vmatprep.subr.bf16.mxu0 0
    %1296 = vmatpush1.bf16.msra.mxu0 0
    %1297 = vmatprep.subr.bf16.mxu0 0
    %1298 = vmatpush1.bf16.msra.mxu0 0
    %1299 = vmatprep.subr.bf16.mxu0 0
    %1300 = vmatpush1.bf16.msra.mxu0 0
    %1301 = vmatprep.subr.bf16.mxu0 0
    %1302 = vmatpush1.bf16.msra.mxu0 0
    %1303 = vmatprep.subr.bf16.mxu0 0
    %1304 = vmatpush1.bf16.msra.mxu0 0
    %1305 = vmatprep.subr.bf16.mxu0 0
    %1306 = vmatpush1.bf16.msra.mxu0 0
    %1307 = vmatprep.mubr.bf16.mxu0 0
    %1308 = vmatmul.mubr.bf16.gmra.mrb[0].mxu0 %v1274
    %v1309 = vpop.f32.mrb[0].mxu0
    %v1310 = vadd.f32 0.0, %v1309
    %v1311 = vpop.f32.mrb[0].mxu0
    %v1312 = vadd.f32 0.0, %v1311
    %v1313 = vpop.f32.mrb[0].mxu0
    %v1314 = vpop.f32.mrb[0].mxu0
    %1315 = vdwg.mxu0
    %1316 = vmatprep.subr.bf16.mxu0 %v449
    %1317 = vmatpush1.bf16.msra.mxu0 %v448
    %1318 = vmatprep.subr.bf16.mxu0 %v453
    %1319 = vmatpush1.bf16.msra.mxu0 %v452
    %1320 = vmatprep.subr.bf16.mxu0 %v457
    %1321 = vmatpush1.bf16.msra.mxu0 %v456
    %1322 = vmatprep.subr.bf16.mxu0 %v461
    %1323 = vmatpush1.bf16.msra.mxu0 %v460
    %1324 = vmatprep.subr.bf16.mxu0 %v465
    %1325 = vmatpush1.bf16.msra.mxu0 %v464
    %1326 = vmatprep.subr.bf16.mxu0 %v469
    %1327 = vmatpush1.bf16.msra.mxu0 %v468
    %1328 = vmatprep.subr.bf16.mxu0 %v473
    %1329 = vmatpush1.bf16.msra.mxu0 %v472
    %1330 = vmatprep.subr.bf16.mxu0 %v477
    %1331 = vmatpush1.bf16.msra.mxu0 %v476
    %1332 = vmatprep.subr.bf16.mxu0 0
    %1333 = vmatpush1.bf16.msra.mxu0 0
    %1334 = vmatprep.subr.bf16.mxu0 0
    %1335 = vmatpush1.bf16.msra.mxu0 0
    %1336 = vmatprep.subr.bf16.mxu0 0
    %1337 = vmatpush1.bf16.msra.mxu0 0
    %1338 = vmatprep.subr.bf16.mxu0 0
    %1339 = vmatpush1.bf16.msra.mxu0 0
    %1340 = vmatprep.subr.bf16.mxu0 0
    %1341 = vmatpush1.bf16.msra.mxu0 0
    %1342 = vmatprep.subr.bf16.mxu0 0
    %1343 = vmatpush1.bf16.msra.mxu0 0
    %1344 = vmatprep.subr.bf16.mxu0 0
    %1345 = vmatpush1.bf16.msra.mxu0 0
    %1346 = vmatprep.subr.bf16.mxu0 0
    %1347 = vmatpush1.bf16.msra.mxu0 0
    %1348 = vmatprep.mubr.bf16.mxu0 0
    %1349 = vmatmul.mubr.bf16.gmra.mrb[0].mxu0 %v1274
    %v1350 = vpop.f32.mrb[0].mxu0
    %v1351 = vadd.f32 0.0, %v1350
    %v1352 = vpop.f32.mrb[0].mxu0
    %v1353 = vadd.f32 0.0, %v1352
    %v1354 = vpop.f32.mrb[0].mxu0
    %v1355 = vpop.f32.mrb[0].mxu0
    %1356 = vdwg.mxu0
    %v1361 = vrot.slane %v1310, 6
    %v1362 = vrot.slane %v1312, 6
    %v1363 = vrot.slane %v1351, 6
    %v1364 = vrot.slane %v1353, 6
    %v1369 = vadd.f32 %v271, %v1361
    %v1370 = vadd.f32 %v273, %v1362
    %v1371 = vadd.f32 %v314, %v1363
    %v1372 = vadd.f32 %v316, %v1364
    %v1373 = vxor.u32 %v1369, 2147483648
    %v1374 = vmul.f32 %v1373, 1.442695
    %v1375 = vpow.pop %v1374
    %v1376 = vadd.f32 %v1375, 1.0
    %v1377 = vrcp.pop %v1376
    %v1378 = vmul.f32 1.0, %v1377
    %v1379 = vxor.u32 %v1370, 2147483648
    %v1380 = vmul.f32 %v1379, 1.442695
    %v1381 = vpow.pop %v1380
    %v1382 = vadd.f32 %v1381, 1.0
    %v1383 = vrcp.pop %v1382
    %v1384 = vmul.f32 1.0, %v1383
    %v1385 = vtanh.pop %v1371
    %v1386 = vxor.u32 %v1372, 2147483648
    %v1387 = vmul.f32 %v1386, 1.442695
    %v1388 = vpow.pop %v1387
    %v1389 = vadd.f32 %v1388, 1.0
    %v1390 = vrcp.pop %v1389
    %v1391 = vmul.f32 1.0, %v1390
    %v1393 = vrot.slane %v1242, 6
    %v1395 = vmul.f32 %v1384, %v1393
    %v1396 = vmul.f32 %v1378, %v1385
    %v1397 = vadd.f32 %v1395, %v1396
    %v1398 = vtanh.pop %v1397
    %v1399 = vmul.f32 %v1391, %v1398
    %v1402 = vunpack.c.l.s4 1966171168
    %v1403 = vunpack.c.0.s8 %v1402
    %v1404 = vlaneseq
    %v1405 = vshrl.u32 %v1404, 7
    %v1406 = vsub.s32 %v1403, %v1405
    %v1407 = vrot.slane %v1399, %v1406
    %v1408 = vcombine.high %v1407, %v1407
    %v1410 = vunpack.c.l.s4 1966171168
    %v1411 = vunpack.c.0.s8 %v1410
    %v1412 = vlaneseq
    %v1413 = vshrl.u32 %v1412, 7
    %v1414 = vsub.s32 %v1411, %v1413
    %v1415 = vrot.slane %v1407, %v1414
    %v1417 = vunpack.c.l.s4 1966171168
    %v1418 = vunpack.c.0.s8 %v1417
    %v1419 = vlaneseq
    %v1420 = vshrl.u32 %v1419, 7
    %v1421 = vsub.s32 %v1418, %v1420
    %v1422 = vrot.slane %v1408, %v1421
    %v1423 = vcombine.high %v1415, %v1415
    %v1424 = vcombine.high %v1422, %v1422
    %1427 = vst.msk [vmem:[#allocation13 + $0x5] sm:$0x1] %vm645, %v1423
    %1428 = vst.msk [vmem:[#allocation13 + $0xd] sm:$0x1] %vm645, %v1424
    %1429 = vst.msk [vmem:[#allocation13 + $0x2] sm:$0x1] %vm648, %v1423
    %1430 = vst.msk [vmem:[#allocation13 + $0xa] sm:$0x1] %vm648, %v1424
    %v1431 = vpack.c.bf16 %v1399, %v1399
    %v1433 = vrot.slane %v1431, 1
    %1435 = vmatprep.subr.bf16.mxu0 %v447
    %1436 = vmatpush1.bf16.msra.mxu0 %v446
    %1437 = vmatprep.subr.bf16.mxu0 %v451
    %1438 = vmatpush1.bf16.msra.mxu0 %v450
    %1439 = vmatprep.subr.bf16.mxu0 %v455
    %1440 = vmatpush1.bf16.msra.mxu0 %v454
    %1441 = vmatprep.subr.bf16.mxu0 %v459
    %1442 = vmatpush1.bf16.msra.mxu0 %v458
    %1443 = vmatprep.subr.bf16.mxu0 %v463
    %1444 = vmatpush1.bf16.msra.mxu0 %v462
    %1445 = vmatprep.subr.bf16.mxu0 %v467
    %1446 = vmatpush1.bf16.msra.mxu0 %v466
    %1447 = vmatprep.subr.bf16.mxu0 %v471
    %1448 = vmatpush1.bf16.msra.mxu0 %v470
    %1449 = vmatprep.subr.bf16.mxu0 %v475
    %1450 = vmatpush1.bf16.msra.mxu0 %v474
    %1451 = vmatprep.subr.bf16.mxu0 0
    %1452 = vmatpush1.bf16.msra.mxu0 0
    %1453 = vmatprep.subr.bf16.mxu0 0
    %1454 = vmatpush1.bf16.msra.mxu0 0
    %1455 = vmatprep.subr.bf16.mxu0 0
    %1456 = vmatpush1.bf16.msra.mxu0 0
    %1457 = vmatprep.subr.bf16.mxu0 0
    %1458 = vmatpush1.bf16.msra.mxu0 0
    %1459 = vmatprep.subr.bf16.mxu0 0
    %1460 = vmatpush1.bf16.msra.mxu0 0
    %1461 = vmatprep.subr.bf16.mxu0 0
    %1462 = vmatpush1.bf16.msra.mxu0 0
    %1463 = vmatprep.subr.bf16.mxu0 0
    %1464 = vmatpush1.bf16.msra.mxu0 0
    %1465 = vmatprep.subr.bf16.mxu0 0
    %1466 = vmatpush1.bf16.msra.mxu0 0
    %1467 = vmatprep.mubr.bf16.mxu0 0
    %1468 = vmatmul.mubr.bf16.gmra.mrb[0].mxu0 %v1433
    %v1469 = vpop.f32.mrb[0].mxu0
    %v1470 = vadd.f32 0.0, %v1469
    %v1471 = vpop.f32.mrb[0].mxu0
    %v1472 = vadd.f32 0.0, %v1471
    %v1473 = vpop.f32.mrb[0].mxu0
    %v1474 = vpop.f32.mrb[0].mxu0
    %1475 = vdwg.mxu0
    %1476 = vmatprep.subr.bf16.mxu0 %v449
    %1477 = vmatpush1.bf16.msra.mxu0 %v448
    %1478 = vmatprep.subr.bf16.mxu0 %v453
    %1479 = vmatpush1.bf16.msra.mxu0 %v452
    %1480 = vmatprep.subr.bf16.mxu0 %v457
    %1481 = vmatpush1.bf16.msra.mxu0 %v456
    %1482 = vmatprep.subr.bf16.mxu0 %v461
    %1483 = vmatpush1.bf16.msra.mxu0 %v460
    %1484 = vmatprep.subr.bf16.mxu0 %v465
    %1485 = vmatpush1.bf16.msra.mxu0 %v464
    %1486 = vmatprep.subr.bf16.mxu0 %v469
    %1487 = vmatpush1.bf16.msra.mxu0 %v468
    %1488 = vmatprep.subr.bf16.mxu0 %v473
    %1489 = vmatpush1.bf16.msra.mxu0 %v472
    %1490 = vmatprep.subr.bf16.mxu0 %v477
    %1491 = vmatpush1.bf16.msra.mxu0 %v476
    %1492 = vmatprep.subr.bf16.mxu0 0
    %1493 = vmatpush1.bf16.msra.mxu0 0
    %1494 = vmatprep.subr.bf16.mxu0 0
    %1495 = vmatpush1.bf16.msra.mxu0 0
    %1496 = vmatprep.subr.bf16.mxu0 0
    %1497 = vmatpush1.bf16.msra.mxu0 0
    %1498 = vmatprep.subr.bf16.mxu0 0
    %1499 = vmatpush1.bf16.msra.mxu0 0
    %1500 = vmatprep.subr.bf16.mxu0 0
    %1501 = vmatpush1.bf16.msra.mxu0 0
    %1502 = vmatprep.subr.bf16.mxu0 0
    %1503 = vmatpush1.bf16.msra.mxu0 0
    %1504 = vmatprep.subr.bf16.mxu0 0
    %1505 = vmatpush1.bf16.msra.mxu0 0
    %1506 = vmatprep.subr.bf16.mxu0 0
    %1507 = vmatpush1.bf16.msra.mxu0 0
    %1508 = vmatprep.mubr.bf16.mxu0 0
    %1509 = vmatmul.mubr.bf16.gmra.mrb[0].mxu0 %v1433
    %v1510 = vpop.f32.mrb[0].mxu0
    %v1511 = vadd.f32 0.0, %v1510
    %v1512 = vpop.f32.mrb[0].mxu0
    %v1513 = vadd.f32 0.0, %v1512
    %v1514 = vpop.f32.mrb[0].mxu0
    %v1515 = vpop.f32.mrb[0].mxu0
    %1516 = vdwg.mxu0
    %v1521 = vrot.slane %v1470, 4
    %v1522 = vrot.slane %v1472, 4
    %v1523 = vrot.slane %v1511, 4
    %v1524 = vrot.slane %v1513, 4
    %v1529 = vadd.f32 %v271, %v1521
    %v1530 = vadd.f32 %v273, %v1522
    %v1531 = vadd.f32 %v314, %v1523
    %v1532 = vadd.f32 %v316, %v1524
    %v1533 = vxor.u32 %v1529, 2147483648
    %v1534 = vmul.f32 %v1533, 1.442695
    %v1535 = vpow.pop %v1534
    %v1536 = vadd.f32 %v1535, 1.0
    %v1537 = vrcp.pop %v1536
    %v1538 = vmul.f32 1.0, %v1537
    %v1539 = vxor.u32 %v1530, 2147483648
    %v1540 = vmul.f32 %v1539, 1.442695
    %v1541 = vpow.pop %v1540
    %v1542 = vadd.f32 %v1541, 1.0
    %v1543 = vrcp.pop %v1542
    %v1544 = vmul.f32 1.0, %v1543
    %v1545 = vtanh.pop %v1531
    %v1546 = vxor.u32 %v1532, 2147483648
    %v1547 = vmul.f32 %v1546, 1.442695
    %v1548 = vpow.pop %v1547
    %v1549 = vadd.f32 %v1548, 1.0
    %v1550 = vrcp.pop %v1549
    %v1551 = vmul.f32 1.0, %v1550
    %v1553 = vrot.slane %v1397, 6
    %v1555 = vmul.f32 %v1544, %v1553
    %v1556 = vmul.f32 %v1538, %v1545
    %v1557 = vadd.f32 %v1555, %v1556
    %v1558 = vtanh.pop %v1557
    %v1559 = vmul.f32 %v1551, %v1558
    %v1561 = vcombine.high %v1559, %v1559
    %v1563 = vunpack.c.l.s4 1966171168
    %v1564 = vunpack.c.0.s8 %v1563
    %v1565 = vlaneseq
    %v1566 = vshrl.u32 %v1565, 7
    %v1567 = vsub.s32 %v1564, %v1566
    %v1568 = vrot.slane %v1561, %v1567
    %v1569 = vcombine.high %v1568, %v1568
    %v1571 = vunpack.c.l.s4 1966171168
    %v1572 = vunpack.c.0.s8 %v1571
    %v1573 = vlaneseq
    %v1574 = vshrl.u32 %v1573, 7
    %v1575 = vsub.s32 %v1572, %v1574
    %v1576 = vrot.slane %v1568, %v1575
    %v1578 = vunpack.c.l.s4 1966171168
    %v1579 = vunpack.c.0.s8 %v1578
    %v1580 = vlaneseq
    %v1581 = vshrl.u32 %v1580, 7
    %v1582 = vsub.s32 %v1579, %v1581
    %v1583 = vrot.slane %v1569, %v1582
    %1586 = vst.msk [vmem:[#allocation13 + $0x6] sm:$0x1] %vm645, %v1576
    %1587 = vst.msk [vmem:[#allocation13 + $0xe] sm:$0x1] %vm645, %v1583
    %1588 = vst.msk [vmem:[#allocation13 + $0x1] sm:$0x1] %vm648, %v1576
    %1589 = vst.msk [vmem:[#allocation13 + $0x9] sm:$0x1] %vm648, %v1583
    %v1590 = vpack.c.bf16 %v1559, %v1559
    %v1592 = vrot.slane %v1590, 2
    %1594 = vmatprep.subr.bf16.mxu0 %v447
    %1595 = vmatpush1.bf16.msra.mxu0 %v446
    %1596 = vmatprep.subr.bf16.mxu0 %v451
    %1597 = vmatpush1.bf16.msra.mxu0 %v450
    %1598 = vmatprep.subr.bf16.mxu0 %v455
    %1599 = vmatpush1.bf16.msra.mxu0 %v454
    %1600 = vmatprep.subr.bf16.mxu0 %v459
    %1601 = vmatpush1.bf16.msra.mxu0 %v458
    %1602 = vmatprep.subr.bf16.mxu0 %v463
    %1603 = vmatpush1.bf16.msra.mxu0 %v462
    %1604 = vmatprep.subr.bf16.mxu0 %v467
    %1605 = vmatpush1.bf16.msra.mxu0 %v466
    %1606 = vmatprep.subr.bf16.mxu0 %v471
    %1607 = vmatpush1.bf16.msra.mxu0 %v470
    %1608 = vmatprep.subr.bf16.mxu0 %v475
    %1609 = vmatpush1.bf16.msra.mxu0 %v474
    %1610 = vmatprep.subr.bf16.mxu0 0
    %1611 = vmatpush1.bf16.msra.mxu0 0
    %1612 = vmatprep.subr.bf16.mxu0 0
    %1613 = vmatpush1.bf16.msra.mxu0 0
    %1614 = vmatprep.subr.bf16.mxu0 0
    %1615 = vmatpush1.bf16.msra.mxu0 0
    %1616 = vmatprep.subr.bf16.mxu0 0
    %1617 = vmatpush1.bf16.msra.mxu0 0
    %1618 = vmatprep.subr.bf16.mxu0 0
    %1619 = vmatpush1.bf16.msra.mxu0 0
    %1620 = vmatprep.subr.bf16.mxu0 0
    %1621 = vmatpush1.bf16.msra.mxu0 0
    %1622 = vmatprep.subr.bf16.mxu0 0
    %1623 = vmatpush1.bf16.msra.mxu0 0
    %1624 = vmatprep.subr.bf16.mxu0 0
    %1625 = vmatpush1.bf16.msra.mxu0 0
    %1626 = vmatprep.mubr.bf16.mxu0 0
    %1627 = vmatmul.mubr.bf16.gmra.mrb[0].mxu0 %v1592
    %v1628 = vpop.f32.mrb[0].mxu0
    %v1629 = vadd.f32 0.0, %v1628
    %v1630 = vpop.f32.mrb[0].mxu0
    %v1631 = vadd.f32 0.0, %v1630
    %v1632 = vpop.f32.mrb[0].mxu0
    %v1633 = vpop.f32.mrb[0].mxu0
    %1634 = vdwg.mxu0
    %1635 = vmatprep.subr.bf16.mxu0 %v449
    %1636 = vmatpush1.bf16.msra.mxu0 %v448
    %1637 = vmatprep.subr.bf16.mxu0 %v453
    %1638 = vmatpush1.bf16.msra.mxu0 %v452
    %1639 = vmatprep.subr.bf16.mxu0 %v457
    %1640 = vmatpush1.bf16.msra.mxu0 %v456
    %1641 = vmatprep.subr.bf16.mxu0 %v461
    %1642 = vmatpush1.bf16.msra.mxu0 %v460
    %1643 = vmatprep.subr.bf16.mxu0 %v465
    %1644 = vmatpush1.bf16.msra.mxu0 %v464
    %1645 = vmatprep.subr.bf16.mxu0 %v469
    %1646 = vmatpush1.bf16.msra.mxu0 %v468
    %1647 = vmatprep.subr.bf16.mxu0 %v473
    %1648 = vmatpush1.bf16.msra.mxu0 %v472
    %1649 = vmatprep.subr.bf16.mxu0 %v477
    %1650 = vmatpush1.bf16.msra.mxu0 %v476
    %1651 = vmatprep.subr.bf16.mxu0 0
    %1652 = vmatpush1.bf16.msra.mxu0 0
    %1653 = vmatprep.subr.bf16.mxu0 0
    %1654 = vmatpush1.bf16.msra.mxu0 0
    %1655 = vmatprep.subr.bf16.mxu0 0
    %1656 = vmatpush1.bf16.msra.mxu0 0
    %1657 = vmatprep.subr.bf16.mxu0 0
    %1658 = vmatpush1.bf16.msra.mxu0 0
    %1659 = vmatprep.subr.bf16.mxu0 0
    %1660 = vmatpush1.bf16.msra.mxu0 0
    %1661 = vmatprep.subr.bf16.mxu0 0
    %1662 = vmatpush1.bf16.msra.mxu0 0
    %1663 = vmatprep.subr.bf16.mxu0 0
    %1664 = vmatpush1.bf16.msra.mxu0 0
    %1665 = vmatprep.subr.bf16.mxu0 0
    %1666 = vmatpush1.bf16.msra.mxu0 0
    %1667 = vmatprep.mubr.bf16.mxu0 0
    %1668 = vmatmul.mubr.bf16.gmra.mrb[0].mxu0 %v1592
    %v1669 = vpop.f32.mrb[0].mxu0
    %v1670 = vadd.f32 0.0, %v1669
    %v1671 = vpop.f32.mrb[0].mxu0
    %v1672 = vadd.f32 0.0, %v1671
    %v1673 = vpop.f32.mrb[0].mxu0
    %v1674 = vpop.f32.mrb[0].mxu0
    %1675 = vdwg.mxu0
    %v1680 = vrot.slane %v1629, 2
    %v1681 = vrot.slane %v1631, 2
    %v1682 = vrot.slane %v1670, 2
    %v1683 = vrot.slane %v1672, 2
    %v1688 = vadd.f32 %v271, %v1680
    %v1689 = vadd.f32 %v273, %v1681
    %v1690 = vadd.f32 %v314, %v1682
    %v1691 = vadd.f32 %v316, %v1683
    %v1692 = vxor.u32 %v1688, 2147483648
    %v1693 = vmul.f32 %v1692, 1.442695
    %v1694 = vpow.pop %v1693
    %v1695 = vadd.f32 %v1694, 1.0
    %v1696 = vrcp.pop %v1695
    %v1697 = vmul.f32 1.0, %v1696
    %v1698 = vxor.u32 %v1689, 2147483648
    %v1699 = vmul.f32 %v1698, 1.442695
    %v1700 = vpow.pop %v1699
    %v1701 = vadd.f32 %v1700, 1.0
    %v1702 = vrcp.pop %v1701
    %v1703 = vmul.f32 1.0, %v1702
    %v1704 = vtanh.pop %v1690
    %v1705 = vxor.u32 %v1691, 2147483648
    %v1706 = vmul.f32 %v1705, 1.442695
    %v1707 = vpow.pop %v1706
    %v1708 = vadd.f32 %v1707, 1.0
    %v1709 = vrcp.pop %v1708
    %v1710 = vmul.f32 1.0, %v1709
    %v1712 = vrot.slane %v1557, 6
    %v1714 = vmul.f32 %v1703, %v1712
    %v1715 = vmul.f32 %v1697, %v1704
    %v1716 = vadd.f32 %v1714, %v1715
    %v1717 = vtanh.pop %v1716
    %v1718 = vmul.f32 %v1710, %v1717
    %v1720 = vcombine.high %v1718, %v1718
    %v1722 = vunpack.c.l.s4 1966171168
    %v1723 = vunpack.c.0.s8 %v1722
    %v1724 = vlaneseq
    %v1725 = vshrl.u32 %v1724, 7
    %v1726 = vsub.s32 %v1723, %v1725
    %v1727 = vrot.slane %v1720, %v1726
    %v1728 = vcombine.high %v1727, %v1727
    %v1730 = vunpack.c.l.s4 1966171168
    %v1731 = vunpack.c.0.s8 %v1730
    %v1732 = vlaneseq
    %v1733 = vshrl.u32 %v1732, 7
    %v1734 = vsub.s32 %v1731, %v1733
    %v1735 = vrot.slane %v1727, %v1734
    %v1737 = vunpack.c.l.s4 1966171168
    %v1738 = vunpack.c.0.s8 %v1737
    %v1739 = vlaneseq
    %v1740 = vshrl.u32 %v1739, 7
    %v1741 = vsub.s32 %v1738, %v1740
    %v1742 = vrot.slane %v1728, %v1741
    %v1743 = vcombine.high %v1735, %v1735
    %v1744 = vcombine.high %v1742, %v1742
    %1747 = vst.msk [vmem:[#allocation13 + $0x7] sm:$0x1] %vm645, %v1743
    %1748 = vst.msk [vmem:[#allocation13 + $0xf] sm:$0x1] %vm645, %v1744
    %1749 = vst.msk [vmem:[#allocation13] sm:$0x1] %vm648, %v1743
    %1750 = vst.msk [vmem:[#allocation13 + $0x8] sm:$0x1] %vm648, %v1744
    %v1751 = vld [vmem:[#allocation13] sm:$0xff]
    %v1752 = vld [vmem:[#allocation13 + $0x8] sm:$0xff]
    %v1753 = vpack.c.bf16 %v1752, %v1751
    %v1754 = vld [vmem:[#allocation10] sm:$0xff]
    %v1755 = vld [vmem:[#allocation10 + $0x8] sm:$0xf]
    %v1756 = vld [vmem:[#allocation10 + $0xc] sm:$0xff]
    %v1757 = vld [vmem:[#allocation10 + $0x14] sm:$0xf]
    %v1758 = vld [vmem:[#allocation10 + $0x18] sm:$0xff]
    %v1759 = vld [vmem:[#allocation10 + $0x20] sm:$0xf]
    %v1760 = vld [vmem:[#allocation10 + $0x24] sm:$0xff]
    %v1761 = vld [vmem:[#allocation10 + $0x2c] sm:$0xf]
    %v1762 = vld [vmem:[#allocation10 + $0x30] sm:$0xff]
    %v1763 = vld [vmem:[#allocation10 + $0x38] sm:$0xf]
    %v1764 = vld [vmem:[#allocation10 + $0x3c] sm:$0xff]
    %v1765 = vld [vmem:[#allocation10 + $0x44] sm:$0xf]
    %v1766 = vld [vmem:[#allocation10 + $0x48] sm:$0xff]
    %v1767 = vld [vmem:[#allocation10 + $0x50] sm:$0xf]
    %v1768 = vld [vmem:[#allocation10 + $0x54] sm:$0xff]
    %v1769 = vld [vmem:[#allocation10 + $0x5c] sm:$0xf]
    %v1770 = vld [vmem:[#allocation10 + $0x60] sm:$0xff]
    %v1771 = vld [vmem:[#allocation10 + $0x68] sm:$0xf]
    %v1772 = vld [vmem:[#allocation10 + $0x6c] sm:$0xff]
    %v1773 = vld [vmem:[#allocation10 + $0x74] sm:$0xf]
    %v1774 = vld [vmem:[#allocation10 + $0x78] sm:$0xff]
    %v1775 = vld [vmem:[#allocation10 + $0x80] sm:$0xf]
    %v1776 = vld [vmem:[#allocation10 + $0x84] sm:$0xff]
    %v1777 = vld [vmem:[#allocation10 + $0x8c] sm:$0xf]
    %v1778 = vld [vmem:[#allocation10 + $0x90] sm:$0xff]
    %v1779 = vld [vmem:[#allocation10 + $0x98] sm:$0xf]
    %v1780 = vld [vmem:[#allocation10 + $0x9c] sm:$0xff]
    %v1781 = vld [vmem:[#allocation10 + $0xa4] sm:$0xf]
    %v1782 = vld [vmem:[#allocation10 + $0xa8] sm:$0xff]
    %v1783 = vld [vmem:[#allocation10 + $0xb0] sm:$0xf]
    %v1784 = vld [vmem:[#allocation10 + $0xb4] sm:$0xff]
    %v1785 = vld [vmem:[#allocation10 + $0xbc] sm:$0xf]
    %v1786 = vld [vmem:[#allocation11] sm:$0x7]
    %v1788 = vlaneseq
    %v1789 = vshrl.u32 %v1788, 7
    %v1790 = vsub.s32 0, %v1789
    %v1791 = vrot.slane %v1786, %v1790
    %v1792 = vlaneseq
    %v1793 = vshrl.u32 %v1792, 7
    %v1794 = vsub.s32 1, %v1793
    %v1795 = vrot.slane %v1786, %v1794
    %v1796 = vlaneseq
    %v1797 = vshrl.u32 %v1796, 7
    %v1798 = vsub.s32 2, %v1797
    %v1799 = vrot.slane %v1786, %v1798
    %v1835 = vunpack.c.l.b16 %v1754
    %v1836 = vunpack.c.h.b16 %v1754
    %v1837 = vunpack.c.l.b16 %v1755
    %v1838 = vunpack.c.l.b16 %v1756
    %v1839 = vunpack.c.h.b16 %v1756
    %v1840 = vunpack.c.l.b16 %v1757
    %v1841 = vunpack.c.l.b16 %v1758
    %v1842 = vunpack.c.h.b16 %v1758
    %v1843 = vunpack.c.l.b16 %v1759
    %v1844 = vunpack.c.l.b16 %v1760
    %v1845 = vunpack.c.h.b16 %v1760
    %v1846 = vunpack.c.l.b16 %v1761
    %v1847 = vunpack.c.l.b16 %v1762
    %v1848 = vunpack.c.h.b16 %v1762
    %v1849 = vunpack.c.l.b16 %v1763
    %v1850 = vunpack.c.l.b16 %v1764
    %v1851 = vunpack.c.h.b16 %v1764
    %v1852 = vunpack.c.l.b16 %v1765
    %v1853 = vunpack.c.l.b16 %v1766
    %v1854 = vunpack.c.h.b16 %v1766
    %v1855 = vunpack.c.l.b16 %v1767
    %v1856 = vunpack.c.l.b16 %v1768
    %v1857 = vunpack.c.h.b16 %v1768
    %v1858 = vunpack.c.l.b16 %v1769
    %v1859 = vunpack.c.l.b16 %v1770
    %v1860 = vunpack.c.h.b16 %v1770
    %v1861 = vunpack.c.l.b16 %v1771
    %v1862 = vunpack.c.l.b16 %v1772
    %v1863 = vunpack.c.h.b16 %v1772
    %v1864 = vunpack.c.l.b16 %v1773
    %v1865 = vunpack.c.l.b16 %v1774
    %v1866 = vunpack.c.h.b16 %v1774
    %v1867 = vunpack.c.l.b16 %v1775
    %v1868 = vunpack.c.l.b16 %v1776
    %v1869 = vunpack.c.h.b16 %v1776
    %v1870 = vunpack.c.l.b16 %v1777
    %v1871 = vunpack.c.l.b16 %v1778
    %v1872 = vunpack.c.h.b16 %v1778
    %v1873 = vunpack.c.l.b16 %v1779
    %v1874 = vunpack.c.l.b16 %v1780
    %v1875 = vunpack.c.h.b16 %v1780
    %v1876 = vunpack.c.l.b16 %v1781
    %v1877 = vunpack.c.l.b16 %v1782
    %v1878 = vunpack.c.h.b16 %v1782
    %v1879 = vunpack.c.l.b16 %v1783
    %v1880 = vunpack.c.l.b16 %v1784
    %v1881 = vunpack.c.h.b16 %v1784
    %v1882 = vunpack.c.l.b16 %v1785
    %v1883 = vpack.c.b16 %v1838, %v1835
    %v1884 = vpack.c.b16 %v1839, %v1836
    %v1885 = vpack.c.b16 %v1840, %v1837
    %v1886 = vpack.c.b16 %v1844, %v1841
    %v1887 = vpack.c.b16 %v1845, %v1842
    %v1888 = vpack.c.b16 %v1846, %v1843
    %v1889 = vpack.c.b16 %v1850, %v1847
    %v1890 = vpack.c.b16 %v1851, %v1848
    %v1891 = vpack.c.b16 %v1852, %v1849
    %v1892 = vpack.c.b16 %v1856, %v1853
    %v1893 = vpack.c.b16 %v1857, %v1854
    %v1894 = vpack.c.b16 %v1858, %v1855
    %v1895 = vpack.c.b16 %v1862, %v1859
    %v1896 = vpack.c.b16 %v1863, %v1860
    %v1897 = vpack.c.b16 %v1864, %v1861
    %v1898 = vpack.c.b16 %v1868, %v1865
    %v1899 = vpack.c.b16 %v1869, %v1866
    %v1900 = vpack.c.b16 %v1870, %v1867
    %v1901 = vpack.c.b16 %v1874, %v1871
    %v1902 = vpack.c.b16 %v1875, %v1872
    %v1903 = vpack.c.b16 %v1876, %v1873
    %v1904 = vpack.c.b16 %v1880, %v1877
    %v1905 = vpack.c.b16 %v1881, %v1878
    %v1906 = vpack.c.b16 %v1882, %v1879
    %1931 = vmatprep.subr.bf16.mxu0 %v1884
    %1932 = vmatpush1.bf16.msra.mxu0 %v1883
    %1933 = vmatprep.subr.bf16.mxu0 %v1887
    %1934 = vmatpush1.bf16.msra.mxu0 %v1886
    %1935 = vmatprep.subr.bf16.mxu0 %v1890
    %1936 = vmatpush1.bf16.msra.mxu0 %v1889
    %1937 = vmatprep.subr.bf16.mxu0 %v1893
    %1938 = vmatpush1.bf16.msra.mxu0 %v1892
    %1939 = vmatprep.subr.bf16.mxu0 %v1896
    %1940 = vmatpush1.bf16.msra.mxu0 %v1895
    %1941 = vmatprep.subr.bf16.mxu0 %v1899
    %1942 = vmatpush1.bf16.msra.mxu0 %v1898
    %1943 = vmatprep.subr.bf16.mxu0 %v1902
    %1944 = vmatpush1.bf16.msra.mxu0 %v1901
    %1945 = vmatprep.subr.bf16.mxu0 %v1905
    %1946 = vmatpush1.bf16.msra.mxu0 %v1904
    %1947 = vmatprep.subr.bf16.mxu0 0
    %1948 = vmatpush1.bf16.msra.mxu0 0
    %1949 = vmatprep.subr.bf16.mxu0 0
    %1950 = vmatpush1.bf16.msra.mxu0 0
    %1951 = vmatprep.subr.bf16.mxu0 0
    %1952 = vmatpush1.bf16.msra.mxu0 0
    %1953 = vmatprep.subr.bf16.mxu0 0
    %1954 = vmatpush1.bf16.msra.mxu0 0
    %1955 = vmatprep.subr.bf16.mxu0 0
    %1956 = vmatpush1.bf16.msra.mxu0 0
    %1957 = vmatprep.subr.bf16.mxu0 0
    %1958 = vmatpush1.bf16.msra.mxu0 0
    %1959 = vmatprep.subr.bf16.mxu0 0
    %1960 = vmatpush1.bf16.msra.mxu0 0
    %1961 = vmatprep.subr.bf16.mxu0 0
    %1962 = vmatpush1.bf16.msra.mxu0 0
    %1963 = vmatprep.mubr.bf16.mxu0 0
    %1964 = vmatmul.mubr.bf16.gmra.mrb[0].mxu0 %v1753
    %v1965 = vpop.f32.mrb[0].mxu0
    %v1966 = vadd.f32 %v1791, %v1965
    %v1967 = vpop.f32.mrb[0].mxu0
    %v1968 = vadd.f32 %v1795, %v1967
    %v1969 = vpop.f32.mrb[0].mxu0
    %v1970 = vadd.f32 %v1791, %v1969
    %v1971 = vpop.f32.mrb[0].mxu0
    %v1972 = vadd.f32 %v1795, %v1971
    %1973 = vdwg.mxu0
    %1974 = vmatprep.subr.bf16.mxu0 0
    %1975 = vmatpush1.bf16.msra.mxu0 %v1885
    %1976 = vmatprep.subr.bf16.mxu0 0
    %1977 = vmatpush1.bf16.msra.mxu0 %v1888
    %1978 = vmatprep.subr.bf16.mxu0 0
    %1979 = vmatpush1.bf16.msra.mxu0 %v1891
    %1980 = vmatprep.subr.bf16.mxu0 0
    %1981 = vmatpush1.bf16.msra.mxu0 %v1894
    %1982 = vmatprep.subr.bf16.mxu0 0
    %1983 = vmatpush1.bf16.msra.mxu0 %v1897
    %1984 = vmatprep.subr.bf16.mxu0 0
    %1985 = vmatpush1.bf16.msra.mxu0 %v1900
    %1986 = vmatprep.subr.bf16.mxu0 0
    %1987 = vmatpush1.bf16.msra.mxu0 %v1903
    %1988 = vmatprep.subr.bf16.mxu0 0
    %1989 = vmatpush1.bf16.msra.mxu0 %v1906
    %1990 = vmatprep.subr.bf16.mxu0 0
    %1991 = vmatpush1.bf16.msra.mxu0 0
    %1992 = vmatprep.subr.bf16.mxu0 0
    %1993 = vmatpush1.bf16.msra.mxu0 0
    %1994 = vmatprep.subr.bf16.mxu0 0
    %1995 = vmatpush1.bf16.msra.mxu0 0
    %1996 = vmatprep.subr.bf16.mxu0 0
    %1997 = vmatpush1.bf16.msra.mxu0 0
    %1998 = vmatprep.subr.bf16.mxu0 0
    %1999 = vmatpush1.bf16.msra.mxu0 0
    %2000 = vmatprep.subr.bf16.mxu0 0
    %2001 = vmatpush1.bf16.msra.mxu0 0
    %2002 = vmatprep.subr.bf16.mxu0 0
    %2003 = vmatpush1.bf16.msra.mxu0 0
    %2004 = vmatprep.subr.bf16.mxu0 0
    %2005 = vmatpush1.bf16.msra.mxu0 0
    %2006 = vmatprep.mubr.bf16.mxu0 0
    %2007 = vmatmul.mubr.bf16.gmra.mrb[0].mxu0 %v1753
    %v2008 = vpop.f32.mrb[0].mxu0
    %v2009 = vadd.f32 %v1799, %v2008
    %v2010 = vpop.f32.mrb[0].mxu0
    %v2011 = vpop.f32.mrb[0].mxu0
    %v2012 = vadd.f32 %v1799, %v2011
    %v2013 = vpop.f32.mrb[0].mxu0
    %2014 = vdwg.mxu0
    %v2015 = vpack.c.bf16 %v1966, %v1966
    %v2016 = vpack.c.bf16 %v1970, %v1970
    %v2017 = vpack.c.bf16 %v1968, %v1968
    %v2018 = vpack.c.bf16 %v1972, %v1972
    %v2019 = vpack.c.bf16 %v2009, %v2009
    %v2020 = vpack.c.bf16 %v2012, %v2012
    %v2021 = vld [vmem:[%s8] sm:$0xf]
    %v2022 = vld [vmem:[%s8 + $0x4] sm:$0xf]
    %v2023 = vld [vmem:[%s8 + $0x8] sm:$0xf]
    %v2024 = vld [vmem:[%s8 + $0xc] sm:$0xf]
    %v2025 = vld [vmem:[%s8 + $0x10] sm:$0xf]
    %v2026 = vld [vmem:[%s8 + $0x14] sm:$0xf]
    %v2027 = vld [vmem:[%s8 + $0x18] sm:$0xf]
    %v2028 = vld [vmem:[%s8 + $0x1c] sm:$0xf]
    %v2031 = vrot.slane %v2017, 4
    %v2032 = vrot.slane %v2018, 4
    %vm2033 = vcmask 1043456
    %v2036 = vsel %vm2033, %v2017, %v2031
    %v2040 = vsel %vm2033, %v2018, %v2032
    %v2050 = vunpack.c.l.b16 %v2021
    %v2051 = vunpack.c.l.b16 %v2022
    %v2052 = vunpack.c.l.b16 %v2023
    %v2053 = vunpack.c.l.b16 %v2024
    %v2054 = vunpack.c.l.b16 %v2025
    %v2055 = vunpack.c.l.b16 %v2026
    %v2056 = vunpack.c.l.b16 %v2027
    %v2057 = vunpack.c.l.b16 %v2028
    %v2058 = vpack.c.b16 %v2051, %v2050
    %v2059 = vpack.c.b16 %v2053, %v2052
    %v2060 = vpack.c.b16 %v2055, %v2054
    %v2061 = vpack.c.b16 %v2057, %v2056
    %v2066 = vmul.bf16 %v2036, %v2058
    %v2067 = vmul.bf16 %v2036, %v2059
    %v2068 = vmul.bf16 %v2036, %v2060
    %v2069 = vmul.bf16 %v2036, %v2061
    %v2070 = vmul.bf16 %v2040, %v2058
    %v2071 = vmul.bf16 %v2040, %v2059
    %v2072 = vmul.bf16 %v2040, %v2060
    %v2073 = vmul.bf16 %v2040, %v2061
    %v2076 = vrot.slane %v2019, 4
    %v2077 = vrot.slane %v2020, 4
    %v2080 = vsel %vm2033, %v2019, %v2076
    %v2084 = vsel %vm2033, %v2020, %v2077
    %v2086 = vmul.bf16 %v2080, %v2058
    %v2087 = vmul.bf16 %v2080, %v2059
    %v2088 = vmul.bf16 %v2080, %v2060
    %v2089 = vmul.bf16 %v2080, %v2061
    %v2090 = vmul.bf16 %v2084, %v2058
    %v2091 = vmul.bf16 %v2084, %v2059
    %v2092 = vmul.bf16 %v2084, %v2060
    %v2093 = vmul.bf16 %v2084, %v2061
    %2094 = vmatprep.subr.bf16.mxu0 0
    %2095 = vmatpush1.bf16.xpose.msra.mxu0 %v2066
    %2096 = vmatprep.subr.bf16.mxu0 0
    %2097 = vmatpush1.bf16.xpose.msra.mxu0 %v2067
    %2098 = vmatprep.subr.bf16.mxu0 0
    %2099 = vmatpush1.bf16.xpose.msra.mxu0 %v2068
    %2100 = vmatprep.subr.bf16.mxu0 0
    %2101 = vmatpush1.bf16.xpose.msra.mxu0 %v2069
    %2102 = vmatprep.subr.bf16.mxu0 0
    %2103 = vmatpush1.bf16.xpose.msra.mxu0 0
    %2104 = vmatprep.subr.bf16.mxu0 0
    %2105 = vmatpush1.bf16.xpose.msra.mxu0 0
    %2106 = vmatprep.subr.bf16.mxu0 0
    %2107 = vmatpush1.bf16.xpose.msra.mxu0 0
    %2108 = vmatprep.subr.bf16.mxu0 0
    %2109 = vmatpush1.bf16.xpose.msra.mxu0 0
    %2110 = vmatprep.subr.bf16.mxu0 0
    %2111 = vmatpush1.bf16.xpose.msra.mxu0 0
    %2112 = vmatprep.subr.bf16.mxu0 0
    %2113 = vmatpush1.bf16.xpose.msra.mxu0 0
    %2114 = vmatprep.subr.bf16.mxu0 0
    %2115 = vmatpush1.bf16.xpose.msra.mxu0 0
    %2116 = vmatprep.subr.bf16.mxu0 0
    %2117 = vmatpush1.bf16.xpose.msra.mxu0 0
    %2118 = vmatprep.subr.bf16.mxu0 0
    %2119 = vmatpush1.bf16.xpose.msra.mxu0 0
    %2120 = vmatprep.subr.bf16.mxu0 0
    %2121 = vmatpush1.bf16.xpose.msra.mxu0 0
    %2122 = vmatprep.subr.bf16.mxu0 0
    %2123 = vmatpush1.bf16.xpose.msra.mxu0 0
    %2124 = vmatprep.subr.bf16.mxu0 0
    %2125 = vmatpush1.bf16.xpose.msra.mxu0 0
    %2126 = vmatprep.mubr.bf16.mxu0 0
    %2127 = vmatmul.mubr.bf16.gmra.mrb[0].mxu0 %v2015
    %v2128 = vpop.f32.mrb[0].mxu0
    %v2129 = vadd.f32 0.0, %v2128
    %v2130 = vpop.f32.mrb[0].mxu0
    %v2131 = vpop.f32.mrb[0].mxu0
    %v2132 = vpop.f32.mrb[0].mxu0
    %2133 = vdwg.mxu0
    %2134 = vmatprep.subr.bf16.mxu0 0
    %2135 = vmatpush1.bf16.xpose.msra.mxu0 %v2070
    %2136 = vmatprep.subr.bf16.mxu0 0
    %2137 = vmatpush1.bf16.xpose.msra.mxu0 %v2071
    %2138 = vmatprep.subr.bf16.mxu0 0
    %2139 = vmatpush1.bf16.xpose.msra.mxu0 %v2072
    %2140 = vmatprep.subr.bf16.mxu0 0
    %2141 = vmatpush1.bf16.xpose.msra.mxu0 %v2073
    %2142 = vmatprep.subr.bf16.mxu0 0
    %2143 = vmatpush1.bf16.xpose.msra.mxu0 0
    %2144 = vmatprep.subr.bf16.mxu0 0
    %2145 = vmatpush1.bf16.xpose.msra.mxu0 0
    %2146 = vmatprep.subr.bf16.mxu0 0
    %2147 = vmatpush1.bf16.xpose.msra.mxu0 0
    %2148 = vmatprep.subr.bf16.mxu0 0
    %2149 = vmatpush1.bf16.xpose.msra.mxu0 0
    %2150 = vmatprep.subr.bf16.mxu0 0
    %2151 = vmatpush1.bf16.xpose.msra.mxu0 0
    %2152 = vmatprep.subr.bf16.mxu0 0
    %2153 = vmatpush1.bf16.xpose.msra.mxu0 0
    %2154 = vmatprep.subr.bf16.mxu0 0
    %2155 = vmatpush1.bf16.xpose.msra.mxu0 0
    %2156 = vmatprep.subr.bf16.mxu0 0
    %2157 = vmatpush1.bf16.xpose.msra.mxu0 0
    %2158 = vmatprep.subr.bf16.mxu0 0
    %2159 = vmatpush1.bf16.xpose.msra.mxu0 0
    %2160 = vmatprep.subr.bf16.mxu0 0
    %2161 = vmatpush1.bf16.xpose.msra.mxu0 0
    %2162 = vmatprep.subr.bf16.mxu0 0
    %2163 = vmatpush1.bf16.xpose.msra.mxu0 0
    %2164 = vmatprep.subr.bf16.mxu0 0
    %2165 = vmatpush1.bf16.xpose.msra.mxu0 0
    %2166 = vmatprep.mubr.bf16.mxu0 0
    %2167 = vmatmul.mubr.bf16.gmra.mrb[0].mxu0 %v2016
    %v2168 = vpop.f32.mrb[0].mxu0
    %v2169 = vadd.f32 0.0, %v2168
    %v2170 = vpop.f32.mrb[0].mxu0
    %v2171 = vpop.f32.mrb[0].mxu0
    %v2172 = vpop.f32.mrb[0].mxu0
    %2173 = vdwg.mxu0
    %vm2174 = vcmask 523264
    %v2175 = vsel %vm2174, %v2129, -inf
    %2176 = vmax.xlane.f32.xlu0 %v2175
    %v2177 = vpop.xlane.xlu0 %2176
    %v2178 = vsel %vm2174, %v2169, -inf
    %2179 = vmax.xlane.f32.xlu0 %v2178
    %v2180 = vpop.xlane.xlu0 %2179
    %v2181 = vsub.f32 %v2129, %v2177
    %v2182 = vsub.f32 %v2169, %v2180
    %v2183 = vmul.f32 %v2181, 1.442695
    %v2184 = vpow.pop %v2183
    %v2185 = vmul.f32 %v2182, 1.442695
    %v2186 = vpow.pop %v2185
    %v2187 = vld [vmem:[%s9] sm:$0xff]
    %v2188 = vld [vmem:[%s9 + $0x8] sm:$0xff]
    %v2189 = vld [vmem:[%s9 + $0x10] sm:$0xff]
    %v2190 = vld [vmem:[%s9 + $0x18] sm:$0xff]
    %v2191 = vld [vmem:[%s9 + $0x20] sm:$0xff]
    %v2192 = vld [vmem:[%s9 + $0x28] sm:$0xff]
    %v2193 = vld [vmem:[%s9 + $0x30] sm:$0xff]
    %v2194 = vld [vmem:[%s9 + $0x38] sm:$0xff]
    %v2196 = vsel %vm2174, %v2184, 0
    %v2199 = vsel %vm2174, %v2186, 0
    %2201 = vmatprep.subr.mxu0 0.0
    %2202 = vmatpush1.msra.mxu0 %v2187
    %2203 = vmatprep.subr.mxu0 0.0
    %2204 = vmatpush1.msra.mxu0 %v2188
    %2205 = vmatprep.subr.mxu0 0.0
    %2206 = vmatpush1.msra.mxu0 %v2189
    %2207 = vmatprep.subr.mxu0 0.0
    %2208 = vmatpush1.msra.mxu0 %v2190
    %2209 = vmatprep.subr.mxu0 0.0
    %2210 = vmatpush1.msra.mxu0 %v2191
    %2211 = vmatprep.subr.mxu0 0.0
    %2212 = vmatpush1.msra.mxu0 %v2192
    %2213 = vmatprep.subr.mxu0 0.0
    %2214 = vmatpush1.msra.mxu0 %v2193
    %2215 = vmatprep.subr.mxu0 0.0
    %2216 = vmatpush1.msra.mxu0 %v2194
    %2217 = vmatprep.subr.mxu0 0.0
    %2218 = vmatpush1.msra.mxu0 0.0
    %2219 = vmatprep.subr.mxu0 0.0
    %2220 = vmatpush1.msra.mxu0 0.0
    %2221 = vmatprep.subr.mxu0 0.0
    %2222 = vmatpush1.msra.mxu0 0.0
    %2223 = vmatprep.subr.mxu0 0.0
    %2224 = vmatpush1.msra.mxu0 0.0
    %2225 = vmatprep.subr.mxu0 0.0
    %2226 = vmatpush1.msra.mxu0 0.0
    %2227 = vmatprep.subr.mxu0 0.0
    %2228 = vmatpush1.msra.mxu0 0.0
    %2229 = vmatprep.subr.mxu0 0.0
    %2230 = vmatpush1.msra.mxu0 0.0
    %2231 = vmatprep.subr.mxu0 0.0
    %2232 = vmatpush1.msra.mxu0 0.0
    %2233 = vmatprep.subr.mxu0 0.0
    %2234 = vmatpush1.msra.mxu0 0.0
    %2235 = vmatprep.subr.mxu0 0.0
    %2236 = vmatpush1.msra.mxu0 0.0
    %2237 = vmatprep.subr.mxu0 0.0
    %2238 = vmatpush1.msra.mxu0 0.0
    %2239 = vmatprep.subr.mxu0 0.0
    %2240 = vmatpush1.msra.mxu0 0.0
    %2241 = vmatprep.subr.mxu0 0.0
    %2242 = vmatpush1.msra.mxu0 0.0
    %2243 = vmatprep.subr.mxu0 0.0
    %2244 = vmatpush1.msra.mxu0 0.0
    %2245 = vmatprep.subr.mxu0 0.0
    %2246 = vmatpush1.msra.mxu0 0.0
    %2247 = vmatprep.subr.mxu0 0.0
    %2248 = vmatpush1.msra.mxu0 0.0
    %2249 = vmatprep.subr.mxu0 0.0
    %2250 = vmatpush1.msra.mxu0 0.0
    %2251 = vmatprep.subr.mxu0 0.0
    %2252 = vmatpush1.msra.mxu0 0.0
    %2253 = vmatprep.subr.mxu0 0.0
    %2254 = vmatpush1.msra.mxu0 0.0
    %2255 = vmatprep.subr.mxu0 0.0
    %2256 = vmatpush1.msra.mxu0 0.0
    %2257 = vmatprep.subr.mxu0 0.0
    %2258 = vmatpush1.msra.mxu0 0.0
    %2259 = vmatprep.subr.mxu0 0.0
    %2260 = vmatpush1.msra.mxu0 0.0
    %2261 = vmatprep.subr.mxu0 0.0
    %2262 = vmatpush1.msra.mxu0 0.0
    %2263 = vmatprep.subr.mxu0 0.0
    %2264 = vmatpush1.msra.mxu0 0.0
    %2265 = vmatprep.mubr.f32.mxu0 0.0
    %2266 = vmatmul.mubr.f32.gmra.mrb[0].mxu0 %v2196
    %v2267 = vpop.f32.mrb[0].mxu0
    %v2268 = vadd.f32 0.0, %v2267
    %v2269 = vpop.f32.mrb[0].mxu0
    %2270 = vmatprep.mubr.f32.mxu0 0.0
    %2271 = vmatmul.mubr.f32.gmra.mrb[0].mxu0 %v2199
    %v2272 = vpop.f32.mrb[0].mxu0
    %v2273 = vadd.f32 0.0, %v2272
    %v2274 = vpop.f32.mrb[0].mxu0
    %2275 = vdwg.mxu0
    %vm2276 = vcmask 64512
    %v2278 = vsel %vm2276, %v2268, 0
    %v2281 = vsel %vm2276, %v2273, 0
    %v2284 = vsel %vm2276, %v2187, 0
    %v2287 = vsel %vm2276, %v2188, 0
    %v2290 = vsel %vm2276, %v2189, 0
    %v2293 = vsel %vm2276, %v2190, 0
    %v2296 = vsel %vm2276, %v2191, 0
    %v2299 = vsel %vm2276, %v2192, 0
    %v2302 = vsel %vm2276, %v2193, 0
    %v2305 = vsel %vm2276, %v2194, 0
    %2307 = vmatprep.subr.mxu0 0.0
    %2308 = vmatpush1.xpose.msra.mxu0 %v2284
    %2309 = vmatprep.subr.mxu0 0.0
    %2310 = vmatpush1.xpose.msra.mxu0 %v2287
    %2311 = vmatprep.subr.mxu0 0.0
    %2312 = vmatpush1.xpose.msra.mxu0 %v2290
    %2313 = vmatprep.subr.mxu0 0.0
    %2314 = vmatpush1.xpose.msra.mxu0 %v2293
    %2315 = vmatprep.subr.mxu0 0.0
    %2316 = vmatpush1.xpose.msra.mxu0 %v2296
    %2317 = vmatprep.subr.mxu0 0.0
    %2318 = vmatpush1.xpose.msra.mxu0 %v2299
    %2319 = vmatprep.subr.mxu0 0.0
    %2320 = vmatpush1.xpose.msra.mxu0 %v2302
    %2321 = vmatprep.subr.mxu0 0.0
    %2322 = vmatpush1.xpose.msra.mxu0 %v2305
    %2323 = vmatprep.subr.mxu0 0.0
    %2324 = vmatpush1.xpose.msra.mxu0 0.0
    %2325 = vmatprep.subr.mxu0 0.0
    %2326 = vmatpush1.xpose.msra.mxu0 0.0
    %2327 = vmatprep.subr.mxu0 0.0
    %2328 = vmatpush1.xpose.msra.mxu0 0.0
    %2329 = vmatprep.subr.mxu0 0.0
    %2330 = vmatpush1.xpose.msra.mxu0 0.0
    %2331 = vmatprep.subr.mxu0 0.0
    %2332 = vmatpush1.xpose.msra.mxu0 0.0
    %2333 = vmatprep.subr.mxu0 0.0
    %2334 = vmatpush1.xpose.msra.mxu0 0.0
    %2335 = vmatprep.subr.mxu0 0.0
    %2336 = vmatpush1.xpose.msra.mxu0 0.0
    %2337 = vmatprep.subr.mxu0 0.0
    %2338 = vmatpush1.xpose.msra.mxu0 0.0
    %2339 = vmatprep.subr.mxu0 0.0
    %2340 = vmatpush1.xpose.msra.mxu0 0.0
    %2341 = vmatprep.subr.mxu0 0.0
    %2342 = vmatpush1.xpose.msra.mxu0 0.0
    %2343 = vmatprep.subr.mxu0 0.0
    %2344 = vmatpush1.xpose.msra.mxu0 0.0
    %2345 = vmatprep.subr.mxu0 0.0
    %2346 = vmatpush1.xpose.msra.mxu0 0.0
    %2347 = vmatprep.subr.mxu0 0.0
    %2348 = vmatpush1.xpose.msra.mxu0 0.0
    %2349 = vmatprep.subr.mxu0 0.0
    %2350 = vmatpush1.xpose.msra.mxu0 0.0
    %2351 = vmatprep.subr.mxu0 0.0
    %2352 = vmatpush1.xpose.msra.mxu0 0.0
    %2353 = vmatprep.subr.mxu0 0.0
    %2354 = vmatpush1.xpose.msra.mxu0 0.0
    %2355 = vmatprep.subr.mxu0 0.0
    %2356 = vmatpush1.xpose.msra.mxu0 0.0
    %2357 = vmatprep.subr.mxu0 0.0
    %2358 = vmatpush1.xpose.msra.mxu0 0.0
    %2359 = vmatprep.subr.mxu0 0.0
    %2360 = vmatpush1.xpose.msra.mxu0 0.0
    %2361 = vmatprep.subr.mxu0 0.0
    %2362 = vmatpush1.xpose.msra.mxu0 0.0
    %2363 = vmatprep.subr.mxu0 0.0
    %2364 = vmatpush1.xpose.msra.mxu0 0.0
    %2365 = vmatprep.subr.mxu0 0.0
    %2366 = vmatpush1.xpose.msra.mxu0 0.0
    %2367 = vmatprep.subr.mxu0 0.0
    %2368 = vmatpush1.xpose.msra.mxu0 0.0
    %2369 = vmatprep.subr.mxu0 0.0
    %2370 = vmatpush1.xpose.msra.mxu0 0.0
    %2371 = vmatprep.mubr.f32.mxu0 0.0
    %2372 = vmatmul.mubr.f32.gmra.mrb[0].mxu0 %v2278
    %v2373 = vpop.f32.mrb[0].mxu0
    %v2374 = vadd.f32 0.0, %v2373
    %v2375 = vpop.f32.mrb[0].mxu0
    %2376 = vmatprep.mubr.f32.mxu0 0.0
    %2377 = vmatmul.mubr.f32.gmra.mrb[0].mxu0 %v2281
    %v2378 = vpop.f32.mrb[0].mxu0
    %v2379 = vadd.f32 0.0, %v2378
    %v2380 = vpop.f32.mrb[0].mxu0
    %2381 = vdwg.mxu0
    %v2382 = vrcp.pop %v2374
    %v2383 = vmul.f32 %v2184, %v2382
    %v2384 = vrcp.pop %v2379
    %v2385 = vmul.f32 %v2186, %v2384
    %v2386 = vpack.c.bf16 %v2383, %v2383
    %v2387 = vpack.c.bf16 %v2385, %v2385
    %v2389 = vsel %vm2174, %v2386, 0
    %2391 = vmatprep.subr.bf16.mxu0 0
    %2392 = vmatpush1.bf16.msra.mxu0 %v2086
    %2393 = vmatprep.subr.bf16.mxu0 0
    %2394 = vmatpush1.bf16.msra.mxu0 %v2087
    %2395 = vmatprep.subr.bf16.mxu0 0
    %2396 = vmatpush1.bf16.msra.mxu0 %v2088
    %2397 = vmatprep.subr.bf16.mxu0 0
    %2398 = vmatpush1.bf16.msra.mxu0 %v2089
    %2399 = vmatprep.subr.bf16.mxu0 0
    %2400 = vmatpush1.bf16.msra.mxu0 0
    %2401 = vmatprep.subr.bf16.mxu0 0
    %2402 = vmatpush1.bf16.msra.mxu0 0
    %2403 = vmatprep.subr.bf16.mxu0 0
    %2404 = vmatpush1.bf16.msra.mxu0 0
    %2405 = vmatprep.subr.bf16.mxu0 0
    %2406 = vmatpush1.bf16.msra.mxu0 0
    %2407 = vmatprep.subr.bf16.mxu0 0
    %2408 = vmatpush1.bf16.msra.mxu0 0
    %2409 = vmatprep.subr.bf16.mxu0 0
    %2410 = vmatpush1.bf16.msra.mxu0 0
    %2411 = vmatprep.subr.bf16.mxu0 0
    %2412 = vmatpush1.bf16.msra.mxu0 0
    %2413 = vmatprep.subr.bf16.mxu0 0
    %2414 = vmatpush1.bf16.msra.mxu0 0
    %2415 = vmatprep.subr.bf16.mxu0 0
    %2416 = vmatpush1.bf16.msra.mxu0 0
    %2417 = vmatprep.subr.bf16.mxu0 0
    %2418 = vmatpush1.bf16.msra.mxu0 0
    %2419 = vmatprep.subr.bf16.mxu0 0
    %2420 = vmatpush1.bf16.msra.mxu0 0
    %2421 = vmatprep.subr.bf16.mxu0 0
    %2422 = vmatpush1.bf16.msra.mxu0 0
    %2423 = vmatprep.mubr.bf16.mxu0 0
    %2424 = vmatmul.mubr.bf16.gmra.mrb[0].mxu0 %v2389
    %v2425 = vpop.f32.mrb[0].mxu0
    %v2426 = vadd.f32 0.0, %v2425
    %v2427 = vpop.f32.mrb[0].mxu0
    %v2428 = vpop.f32.mrb[0].mxu0
    %v2429 = vpop.f32.mrb[0].mxu0
    %2430 = vdwg.mxu0
    %v2432 = vsel %vm2174, %v2387, 0
    %2434 = vmatprep.subr.bf16.mxu0 0
    %2435 = vmatpush1.bf16.msra.mxu0 %v2090
    %2436 = vmatprep.subr.bf16.mxu0 0
    %2437 = vmatpush1.bf16.msra.mxu0 %v2091
    %2438 = vmatprep.subr.bf16.mxu0 0
    %2439 = vmatpush1.bf16.msra.mxu0 %v2092
    %2440 = vmatprep.subr.bf16.mxu0 0
    %2441 = vmatpush1.bf16.msra.mxu0 %v2093
    %2442 = vmatprep.subr.bf16.mxu0 0
    %2443 = vmatpush1.bf16.msra.mxu0 0
    %2444 = vmatprep.subr.bf16.mxu0 0
    %2445 = vmatpush1.bf16.msra.mxu0 0
    %2446 = vmatprep.subr.bf16.mxu0 0
    %2447 = vmatpush1.bf16.msra.mxu0 0
    %2448 = vmatprep.subr.bf16.mxu0 0
    %2449 = vmatpush1.bf16.msra.mxu0 0
    %2450 = vmatprep.subr.bf16.mxu0 0
    %2451 = vmatpush1.bf16.msra.mxu0 0
    %2452 = vmatprep.subr.bf16.mxu0 0
    %2453 = vmatpush1.bf16.msra.mxu0 0
    %2454 = vmatprep.subr.bf16.mxu0 0
    %2455 = vmatpush1.bf16.msra.mxu0 0
    %2456 = vmatprep.subr.bf16.mxu0 0
    %2457 = vmatpush1.bf16.msra.mxu0 0
    %2458 = vmatprep.subr.bf16.mxu0 0
    %2459 = vmatpush1.bf16.msra.mxu0 0
    %2460 = vmatprep.subr.bf16.mxu0 0
    %2461 = vmatpush1.bf16.msra.mxu0 0
    %2462 = vmatprep.subr.bf16.mxu0 0
    %2463 = vmatpush1.bf16.msra.mxu0 0
    %2464 = vmatprep.subr.bf16.mxu0 0
    %2465 = vmatpush1.bf16.msra.mxu0 0
    %2466 = vmatprep.mubr.bf16.mxu0 0
    %2467 = vmatmul.mubr.bf16.gmra.mrb[0].mxu0 %v2432
    %v2468 = vpop.f32.mrb[0].mxu0
    %v2469 = vadd.f32 0.0, %v2468
    %v2470 = vpop.f32.mrb[0].mxu0
    %v2471 = vpop.f32.mrb[0].mxu0
    %v2472 = vpop.f32.mrb[0].mxu0
    %2473 = vdwg.mxu0
    %v2474 = vpack.c.bf16 %v2469, %v2426
    %v2475 = vld [vmem:[%s6] sm:$0xf]
    %v2476 = vld [vmem:[%s6 + $0x4] sm:$0xf]
    %v2477 = vld [vmem:[%s6 + $0x8] sm:$0xf]
    %v2478 = vld [vmem:[%s6 + $0xc] sm:$0xf]
    %v2479 = vld [vmem:[%s6 + $0x10] sm:$0xf]
    %v2480 = vld [vmem:[%s6 + $0x14] sm:$0xf]
    %v2481 = vld [vmem:[%s6 + $0x18] sm:$0xf]
    %v2482 = vld [vmem:[%s6 + $0x1c] sm:$0xf]
    %v2483 = vld [vmem:[%s6 + $0x20] sm:$0xf]
    %v2484 = vld [vmem:[%s6 + $0x24] sm:$0xf]
    %v2485 = vld [vmem:[%s6 + $0x28] sm:$0xf]
    %v2486 = vld [vmem:[%s6 + $0x2c] sm:$0xf]
    %v2487 = vld [vmem:[%s6 + $0x30] sm:$0xf]
    %v2488 = vld [vmem:[%s6 + $0x34] sm:$0xf]
    %v2489 = vld [vmem:[%s6 + $0x38] sm:$0xf]
    %v2490 = vld [vmem:[%s6 + $0x3c] sm:$0xf]
    %v2491 = vld [vmem:[%s7] sm:$0x1]
    %v2493 = vlaneseq
    %v2494 = vshrl.u32 %v2493, 7
    %v2495 = vsub.s32 0, %v2494
    %v2496 = vrot.slane %v2491, %v2495
    %v2514 = vunpack.c.l.b16 %v2475
    %v2515 = vunpack.c.l.b16 %v2476
    %v2516 = vunpack.c.l.b16 %v2477
    %v2517 = vunpack.c.l.b16 %v2478
    %v2518 = vunpack.c.l.b16 %v2479
    %v2519 = vunpack.c.l.b16 %v2480
    %v2520 = vunpack.c.l.b16 %v2481
    %v2521 = vunpack.c.l.b16 %v2482
    %v2522 = vunpack.c.l.b16 %v2483
    %v2523 = vunpack.c.l.b16 %v2484
    %v2524 = vunpack.c.l.b16 %v2485
    %v2525 = vunpack.c.l.b16 %v2486
    %v2526 = vunpack.c.l.b16 %v2487
    %v2527 = vunpack.c.l.b16 %v2488
    %v2528 = vunpack.c.l.b16 %v2489
    %v2529 = vunpack.c.l.b16 %v2490
    %v2530 = vpack.c.b16 %v2515, %v2514
    %v2531 = vpack.c.b16 %v2517, %v2516
    %v2532 = vpack.c.b16 %v2519, %v2518
    %v2533 = vpack.c.b16 %v2521, %v2520
    %v2534 = vpack.c.b16 %v2523, %v2522
    %v2535 = vpack.c.b16 %v2525, %v2524
    %v2536 = vpack.c.b16 %v2527, %v2526
    %v2537 = vpack.c.b16 %v2529, %v2528
    %2546 = vmatprep.subr.bf16.mxu0 0
    %2547 = vmatpush1.bf16.msra.mxu0 %v2530
    %2548 = vmatprep.subr.bf16.mxu0 0
    %2549 = vmatpush1.bf16.msra.mxu0 %v2531
    %2550 = vmatprep.subr.bf16.mxu0 0
    %2551 = vmatpush1.bf16.msra.mxu0 %v2532
    %2552 = vmatprep.subr.bf16.mxu0 0
    %2553 = vmatpush1.bf16.msra.mxu0 %v2533
    %2554 = vmatprep.subr.bf16.mxu0 0
    %2555 = vmatpush1.bf16.msra.mxu0 %v2534
    %2556 = vmatprep.subr.bf16.mxu0 0
    %2557 = vmatpush1.bf16.msra.mxu0 %v2535
    %2558 = vmatprep.subr.bf16.mxu0 0
    %2559 = vmatpush1.bf16.msra.mxu0 %v2536
    %2560 = vmatprep.subr.bf16.mxu0 0
    %2561 = vmatpush1.bf16.msra.mxu0 %v2537
    %2562 = vmatprep.subr.bf16.mxu0 0
    %2563 = vmatpush1.bf16.msra.mxu0 0
    %2564 = vmatprep.subr.bf16.mxu0 0
    %2565 = vmatpush1.bf16.msra.mxu0 0
    %2566 = vmatprep.subr.bf16.mxu0 0
    %2567 = vmatpush1.bf16.msra.mxu0 0
    %2568 = vmatprep.subr.bf16.mxu0 0
    %2569 = vmatpush1.bf16.msra.mxu0 0
    %2570 = vmatprep.subr.bf16.mxu0 0
    %2571 = vmatpush1.bf16.msra.mxu0 0
    %2572 = vmatprep.subr.bf16.mxu0 0
    %2573 = vmatpush1.bf16.msra.mxu0 0
    %2574 = vmatprep.subr.bf16.mxu0 0
    %2575 = vmatpush1.bf16.msra.mxu0 0
    %2576 = vmatprep.subr.bf16.mxu0 0
    %2577 = vmatpush1.bf16.msra.mxu0 0
    %2578 = vmatprep.mubr.bf16.mxu0 0
    %2579 = vmatmul.mubr.bf16.gmra.mrb[0].mxu0 %v2474
    %v2580 = vpop.f32.mrb[0].mxu0
    %v2581 = vadd.f32 %v2496, %v2580
    %v2582 = vpop.f32.mrb[0].mxu0
    %v2583 = vpop.f32.mrb[0].mxu0
    %v2584 = vadd.f32 %v2496, %v2583
    %v2585 = vpop.f32.mrb[0].mxu0
    %2586 = vdwg.mxu0
    %2587 = vst [vmem:[#allocation14] sm:$0xff] %v2581
    %2588 = vst [vmem:[#allocation14 + $0x8] sm:$0xff] %v2584
    // Predicated region
    $region66: #{tpu_custom_call.1} parent=1 // pred_check
      _
    $region67: #{tpu_custom_call.1} parent=1 // pred_check_branch
      %2590 = sbr.rel (0) target = $region69
    $region68: #{tpu_custom_call.1} parent=1 // pred_region
      %s2592 = ssub.s32 256, 256
      %2593 = vsyncadd [#allocation4], %s2592
      %s2594 = sshll.u32 [#allocation13], 4
      %s2595 = int_to_ptr.vmem [resolvable:$true] %s2594
      %2600 = dma.vmem_to_hbm [thread:$0]  %s2595, 256, %s10, [#allocation4], 128, 128, 8
    $region69: #{tpu_custom_call.1} parent=1 // pred_fallthru
      _
    // Predicated region
    $region70: #{tpu_custom_call.1} parent=1 // pred_check
      _
    $region71: #{tpu_custom_call.1} parent=1 // pred_check_branch
      %2602 = sbr.rel (0) target = $region73
    $region72: #{tpu_custom_call.1} parent=1 // pred_region
      %s2604 = ssub.s32 256, 256
      %2605 = vsyncadd [#allocation15], %s2604
      %s2606 = sshll.u32 [#allocation14], 4
      %s2607 = int_to_ptr.vmem [resolvable:$true] %s2606
      %2612 = dma.vmem_to_hbm [thread:$0]  %s2607, 256, %s11, [#allocation15], 128, 128, 8
    $region73: #{tpu_custom_call.1} parent=1 // pred_fallthru
      _
    // Predicated region
    $region74: #{tpu_custom_call.1} parent=1 // pred_check
      _
    $region75: #{tpu_custom_call.1} parent=1 // pred_check_branch
      %2614 = sbr.rel (0) target = $region77
    $region76: #{tpu_custom_call.1} parent=1 // pred_region
      %2615 = dma.done [#allocation4], 256
    $region77: #{tpu_custom_call.1} parent=1 // pred_fallthru
      _
    // Predicated region
    $region78: #{tpu_custom_call.1} parent=1 // pred_check
      _
    $region79: #{tpu_custom_call.1} parent=1 // pred_check_branch
      %2617 = sbr.rel (0) target = $region81
    $region80: #{tpu_custom_call.1} parent=1 // pred_region
      %2618 = dma.done [#allocation15], 256
    $region81: #{tpu_custom_call.1} parent=1 // pred_fallthru
      _
    %2619 = vsyncpa [#allocation3], 1
    %2620 = vsyncpa [#allocation6], 1
    %2621 = vsyncpa [#allocation9], 1
    %2622 = vsyncpa [#allocation12], 1
    %2623 = vsyncpa [#allocation4], 1
    %2624 = vsyncpa [#allocation15], 1

</llo_original>
